<compile_context>
chip_gen: v5e
topology: v5e:2x2
jax: 0.10.0
libtpu: 0.0.40
codegen_flags: <defaults>
</compile_context>

<pallas_src>
import functools
import math

import numpy as np
import jax
import jax.numpy as jnp
from jax.experimental import pallas as pl
from jax.experimental.pallas import tpu as pltpu


# ----------------------------------------------------------------------------
# Frequency mode selection (faithful port of the PyTorch helper)
# ----------------------------------------------------------------------------
def get_frequency_modes(seq_len, modes=None, mode_select_method='random'):
    modes = min(modes, seq_len // 2)
    if mode_select_method == 'random':
        index = list(range(0, seq_len // 2))
        np.random.shuffle(index)
        index = index[:modes]
    else:
        index = list(range(0, modes))
    index.sort()
    return index


# ----------------------------------------------------------------------------
# Pallas kernel: transformer encoder layer on a (R = block_b * M, D) row slab.
# ----------------------------------------------------------------------------
def _encoder_layer_kernel(n_heads, n_modes, ffn_chunk,
                          x_ref,
                          wq_ref, bq_ref, wk_ref, bk_ref, wv_ref, bv_ref,
                          wo_ref, bo_ref,
                          ln1g_ref, ln1b_ref,
                          w1_ref, b1_ref, w2_ref, b2_ref,
                          ln2g_ref, ln2b_ref,
                          o_ref):
    R, D = x_ref.shape                       # R = bt * n_modes
    head_dim = D // n_heads

    x = x_ref[...]                           # (R, D) f32
    xb = x.astype(jnp.bfloat16)

    # In-kernel block-diagonal mask (no (R,R) operand / DMA).  Row i may only
    # attend to keys of its own batch element (i // M == j // M).  Built with
    # float floor((k+0.5)/M) which is exact for the k < R range used here.
    inv_m = 1.0 / float(n_modes)
    r_idx = (jax.lax.broadcasted_iota(jnp.int32, (R, R), 0)
             .astype(jnp.float32) + 0.5) * inv_m
    c_idx = (jax.lax.broadcasted_iota(jnp.int32, (R, R), 1)
             .astype(jnp.float32) + 0.5) * inv_m
    attn_bias = jnp.where(jnp.floor(r_idx) == jnp.floor(c_idx),
                          0.0, -1e30).astype(jnp.float32)        # (R, R)

    # --- QKV projections: bf16 MXU matmuls, f32 accumulation -----------------
    # (1/sqrt(head_dim) is already folded into wq/bq by prepare_encoder_params)
    q = jnp.dot(xb, wq_ref[...], preferred_element_type=jnp.float32) + bq_ref[...]
    k = jnp.dot(xb, wk_ref[...], preferred_element_type=jnp.float32) + bk_ref[...]
    v = jnp.dot(xb, wv_ref[...], preferred_element_type=jnp.float32) + bv_ref[...]
    qb = q.astype(jnp.bfloat16)
    kb = k.astype(jnp.bfloat16)
    vb = v.astype(jnp.bfloat16)

    # --- multi-head self-attention (block-diagonal over batch elements) ------
    ctx_parts = []
    for h in range(n_heads):                 # small static unroll over heads
        sl = slice(h * head_dim, (h + 1) * head_dim)
        s = jax.lax.dot_general(qb[:, sl], kb[:, sl], (((1,), (1,)), ((), ())),
                                preferred_element_type=jnp.float32)
        s = s + attn_bias                    # (R, R) f32
        s = s - jnp.max(s, axis=-1, keepdims=True)
        p = jnp.exp(s)
        p = p * pl.reciprocal(jnp.sum(p, axis=-1, keepdims=True), approx=True)
        ctx_parts.append(jnp.dot(p.astype(jnp.bfloat16), vb[:, sl],
                                 preferred_element_type=jnp.float32))
    # Single K=D output projection (no per-head K=head_dim matmuls).
    ctx = jnp.concatenate(ctx_parts, axis=-1).astype(jnp.bfloat16)   # (R, D)
    attn = jnp.dot(ctx, wo_ref[...],
                   preferred_element_type=jnp.float32) + bo_ref[...]

    # --- add & layernorm 1 (f32) ---------------------------------------------
    y = x + attn
    mu = jnp.mean(y, axis=-1, keepdims=True)
    var = jnp.mean((y - mu) * (y - mu), axis=-1, keepdims=True)
    y = (y - mu) * jax.lax.rsqrt(var + 1e-5) * ln1g_ref[...] + ln1b_ref[...]

    # --- feed-forward, chunked along d_ff (bounds the h1 temporary) ----------
    d_ff = w1_ref.shape[1]
    yb = y.astype(jnp.bfloat16)
    ffn = jnp.zeros((R, D), jnp.float32)
    for cstart in range(0, d_ff, ffn_chunk):
        csl = slice(cstart, cstart + ffn_chunk)
        h1 = jnp.dot(yb, w1_ref[:, csl],
                     preferred_element_type=jnp.float32) + b1_ref[:, csl]
        h1 = jnp.maximum(h1, 0.0).astype(jnp.bfloat16)
        ffn = ffn + jnp.dot(h1, w2_ref[csl, :],
                            preferred_element_type=jnp.float32)
    ffn = ffn + b2_ref[...]

    # --- add & layernorm 2 ----------------------------------------------------
    z = y + ffn
    mu2 = jnp.mean(z, axis=-1, keepdims=True)
    var2 = jnp.mean((z - mu2) * (z - mu2), axis=-1, keepdims=True)
    z = (z - mu2) * jax.lax.rsqrt(var2 + 1e-5) * ln2g_ref[...] + ln2b_ref[...]

    o_ref[...] = z


def encoder_layer_pallas(x, prep_args, n_heads, block_b=4):
    """x: (B, M, D) float32 -> (B, M, D) float32 (encoder layer per sample)."""
    B, M, D = x.shape

    # Batch tile: bt*M must be a multiple of 8 (sublane), and the grid should
    # have >= 2 steps so a v7x megacore can shard the "parallel" axis.
    unit = 8 // math.gcd(M, 8)
    bt = max(unit, (min(block_b, max(B, 1)) // unit) * unit)
    while bt > unit and -(-B // bt) < 2:
        bt -= unit
    Bp = -(-B // bt) * bt
    if Bp != B:
        x = jnp.pad(x, ((0, Bp - B), (0, 0), (0, 0)))

    R = bt * M                               # rows per grid step
    x2 = jnp.reshape(x.astype(jnp.float32), (Bp * M, D))
    grid = (Bp // bt,)

    # FFN d_ff chunking (static, must divide d_ff).
    d_ff = prep_args[10].shape[1]            # w1: (D, d_ff)
    ffn_chunk = 512 if (d_ff > 512 and d_ff % 512 == 0) else d_ff

    kern = functools.partial(_encoder_layer_kernel, n_heads, M, ffn_chunk)

    # Explicit VMEM budget: single-buffered weights + double-buffered x/out
    # blocks + score/FFN temporaries, with 2x headroom, capped at v7x's 64 MiB.
    weight_bytes = sum(int(np.prod(a.shape)) * a.dtype.itemsize
                       for a in prep_args)
    block_bytes = R * D * 4
    est = (2 * weight_bytes + 4 * block_bytes
           + 4 * R * R * 4 + 2 * R * ffn_chunk * 4)
    vmem_limit = int(min(max(2 * est, 32 * 2**20), 64 * 2**20))

    def make_call(single_buffer):
        def const_spec(a):
            # Constant block index -> fetched once; single-buffer to avoid the
            # useless second copy of every weight in VMEM.
            if single_buffer:
                return pl.BlockSpec(a.shape, lambda b: (0, 0),
                                    pipeline_mode=pl.Buffered(1))
            return pl.BlockSpec(a.shape, lambda b: (0, 0))

        in_specs = ([pl.BlockSpec((R, D), lambda b: (b, 0))]
                    + [const_spec(a) for a in prep_args])
        return pl.pallas_call(
            kern,
            out_shape=jax.ShapeDtypeStruct((Bp * M, D), jnp.float32),
            grid=grid,
            in_specs=in_specs,
            out_specs=pl.BlockSpec((R, D), lambda b: (b, 0)),
            compiler_params=pltpu.CompilerParams(
                dimension_semantics=("parallel",),
                vmem_limit_bytes=vmem_limit),
        )

    try:
        out = jax.block_until_ready(make_call(True)(x2, *prep_args))
    except Exception:
        # Fallback: default (double) buffering if Buffered(1) is rejected.
        out = jax.block_until_ready(make_call(False)(x2, *prep_args))

    return jnp.reshape(out, (Bp, M, D))[:B]


# ----------------------------------------------------------------------------
# One-time parameter preparation (bf16 weights, f32 biases, scale folded in).
# ----------------------------------------------------------------------------
def prepare_encoder_params(params, n_heads):
    d_model = params['wq'].shape[0]
    scale = 1.0 / math.sqrt(d_model // n_heads)
    bf = lambda a: jnp.asarray(a, jnp.bfloat16)
    f32 = lambda a: jnp.asarray(a, jnp.float32)
    return [
        bf(params['wq'] * scale), f32(params['bq'] * scale),
        bf(params['wk']), f32(params['bk']),
        bf(params['wv']), f32(params['bv']),
        bf(params['wo']), f32(params['bo']),
        f32(params['ln1_g']), f32(params['ln1_b']),
        bf(params['w1']), f32(params['b1']),
        bf(params['w2']), f32(params['b2']),
        f32(params['ln2_g']), f32(params['ln2_b']),
    ]


# ----------------------------------------------------------------------------
# TEM forward (FFT + mode select are plain-JAX glue around the Pallas kernel)
# ----------------------------------------------------------------------------
def tem_forward(x, prep_args, n_heads, modes=None, mode_select_method='random',
                block_b=4):
    bsz, nvar, seq_len, d_model = x.shape
    xr = jnp.reshape(x, (bsz * nvar, seq_len, d_model))

    # TODO(synk): rfft/irfft have no Pallas TPU primitive — done in plain JAX.
    x_ft = jnp.fft.rfft(xr, axis=1)                           # (B, F, D) complex64

    index = get_frequency_modes(seq_len, modes=modes,
                                mode_select_method=mode_select_method)
    idx = jnp.asarray(index, dtype=jnp.int32)

    x_ft_sel = x_ft[:, idx, :]                                # (B, M, D) complex64
    B = x_ft_sel.shape[0]

    # Fuse the real and imag encoder passes into ONE pallas_call by stacking
    # them along the batch axis (weights streamed once, one launch).
    stacked = jnp.concatenate(
        [jnp.real(x_ft_sel), jnp.imag(x_ft_sel)], axis=0).astype(jnp.float32)
    out = encoder_layer_pallas(stacked, prep_args, n_heads, block_b=block_b)
    real_out, imag_out = out[:B], out[B:]
    x_ft_new = jax.lax.complex(real_out, imag_out).astype(x_ft.dtype)

    y_ft = jnp.zeros_like(x_ft)
    y_ft = y_ft.at[:, idx, :].set(x_ft_new)
    y = jnp.fft.irfft(y_ft, n=seq_len, axis=1)                # (B, seq_len, D)
    return jnp.reshape(y, (bsz, nvar, seq_len, d_model))


# ----------------------------------------------------------------------------
# Deterministic parameter construction (synthetic weights)
# ----------------------------------------------------------------------------
def make_params(key, d_model, d_ff):
    ks = jax.random.split(key, 6)
    s = 1.0 / math.sqrt(d_model)
    return {
        'wq': jax.random.normal(ks[0], (d_model, d_model), jnp.float32) * s,
        'bq': jnp.zeros((1, d_model), jnp.float32),
        'wk': jax.random.normal(ks[1], (d_model, d_model), jnp.float32) * s,
        'bk': jnp.zeros((1, d_model), jnp.float32),
        'wv': jax.random.normal(ks[2], (d_model, d_model), jnp.float32) * s,
        'bv': jnp.zeros((1, d_model), jnp.float32),
        'wo': jax.random.normal(ks[3], (d_model, d_model), jnp.float32) * s,
        'bo': jnp.zeros((1, d_model), jnp.float32),
        'ln1_g': jnp.ones((1, d_model), jnp.float32),
        'ln1_b': jnp.zeros((1, d_model), jnp.float32),
        'w1': jax.random.normal(ks[4], (d_model, d_ff), jnp.float32) * s,
        'b1': jnp.zeros((1, d_ff), jnp.float32),
        'w2': jax.random.normal(ks[5], (d_ff, d_model), jnp.float32)
              * (1.0 / math.sqrt(d_ff)),
        'b2': jnp.zeros((1, d_model), jnp.float32),
        'ln2_g': jnp.ones((1, d_model), jnp.float32),
        'ln2_b': jnp.zeros((1, d_model), jnp.float32),
    }


if __name__ == "__main__":
    key = jax.random.PRNGKey(0)
    bsz, nvar, seq_len, d_model = 2, 4, 16, 32
    n_heads, modes = 4, 4
    d_ff = 4 * d_model

    kx, kp = jax.random.split(key)
    x = jax.random.normal(kx, (bsz, nvar, seq_len, d_model), jnp.float32)
    params = make_params(kp, d_model, d_ff)
    # Params are prepared (bf16 cast, attention scale folded in) exactly once,
    # outside the per-call path.
    prep_args = prepare_encoder_params(params, n_heads)

    # 'low' branch of the mode selector for determinism (the 'random' branch
    # uses unseeded np.random at trace time).
    y = tem_forward(x, prep_args, n_heads, modes=modes,
                    mode_select_method='low')
    y = jax.block_until_ready(y)
    assert y.shape == (bsz, nvar, seq_len, d_model)
    assert bool(jnp.all(jnp.isfinite(y)))
    print("KERNEL_OK")
</pallas_src>

<mosaic_0001>
module attributes {stable_mosaic.version = 11 : i64} {
  func.func @_encoder_layer_kernel(%arg0: i32, %arg1: memref<16x32xf32, #tpu.memory_space<vmem>>, %arg2: memref<32x32xbf16, #tpu.memory_space<vmem>>, %arg3: memref<1x32xf32, #tpu.memory_space<vmem>>, %arg4: memref<32x32xbf16, #tpu.memory_space<vmem>>, %arg5: memref<1x32xf32, #tpu.memory_space<vmem>>, %arg6: memref<32x32xbf16, #tpu.memory_space<vmem>>, %arg7: memref<1x32xf32, #tpu.memory_space<vmem>>, %arg8: memref<32x32xbf16, #tpu.memory_space<vmem>>, %arg9: memref<1x32xf32, #tpu.memory_space<vmem>>, %arg10: memref<1x32xf32, #tpu.memory_space<vmem>>, %arg11: memref<1x32xf32, #tpu.memory_space<vmem>>, %arg12: memref<32x128xbf16, #tpu.memory_space<vmem>>, %arg13: memref<1x128xf32, #tpu.memory_space<vmem>>, %arg14: memref<128x32xbf16, #tpu.memory_space<vmem>>, %arg15: memref<1x32xf32, #tpu.memory_space<vmem>>, %arg16: memref<1x32xf32, #tpu.memory_space<vmem>>, %arg17: memref<1x32xf32, #tpu.memory_space<vmem>>, %arg18: memref<16x32xf32, #tpu.memory_space<vmem>>) attributes {dimension_semantics = [#tpu.dimension_semantics<parallel>], iteration_bounds = array<i64: 4>, scalar_prefetch = 0 : i64, scratch_operands = 0 : i64, tpu.core_type = #tpu.core_type<tc>, window_params = [{transform_indices = @transform_0, window_bounds = array<i64: 16, 32>}, {pipeline_mode = #tpu.pipeline_mode<synchronous>, transform_indices = @transform_1, window_bounds = array<i64: 32, 32>}, {pipeline_mode = #tpu.pipeline_mode<synchronous>, transform_indices = @transform_2, window_bounds = array<i64: 1, 32>}, {pipeline_mode = #tpu.pipeline_mode<synchronous>, transform_indices = @transform_3, window_bounds = array<i64: 32, 32>}, {pipeline_mode = #tpu.pipeline_mode<synchronous>, transform_indices = @transform_4, window_bounds = array<i64: 1, 32>}, {pipeline_mode = #tpu.pipeline_mode<synchronous>, transform_indices = @transform_5, window_bounds = array<i64: 32, 32>}, {pipeline_mode = #tpu.pipeline_mode<synchronous>, transform_indices = @transform_6, window_bounds = array<i64: 1, 32>}, {pipeline_mode = #tpu.pipeline_mode<synchronous>, transform_indices = @transform_7, window_bounds = array<i64: 32, 32>}, {pipeline_mode = #tpu.pipeline_mode<synchronous>, transform_indices = @transform_8, window_bounds = array<i64: 1, 32>}, {pipeline_mode = #tpu.pipeline_mode<synchronous>, transform_indices = @transform_9, window_bounds = array<i64: 1, 32>}, {pipeline_mode = #tpu.pipeline_mode<synchronous>, transform_indices = @transform_10, window_bounds = array<i64: 1, 32>}, {pipeline_mode = #tpu.pipeline_mode<synchronous>, transform_indices = @transform_11, window_bounds = array<i64: 32, 128>}, {pipeline_mode = #tpu.pipeline_mode<synchronous>, transform_indices = @transform_12, window_bounds = array<i64: 1, 128>}, {pipeline_mode = #tpu.pipeline_mode<synchronous>, transform_indices = @transform_13, window_bounds = array<i64: 128, 32>}, {pipeline_mode = #tpu.pipeline_mode<synchronous>, transform_indices = @transform_14, window_bounds = array<i64: 1, 32>}, {pipeline_mode = #tpu.pipeline_mode<synchronous>, transform_indices = @transform_15, window_bounds = array<i64: 1, 32>}, {pipeline_mode = #tpu.pipeline_mode<synchronous>, transform_indices = @transform_16, window_bounds = array<i64: 1, 32>}, {transform_indices = @transform_17, window_bounds = array<i64: 16, 32>}]} {
    %c0 = arith.constant 0 : index
    %c0_0 = arith.constant 0 : index
    %0 = vector.load %arg1[%c0, %c0_0] : memref<16x32xf32, #tpu.memory_space<vmem>>, vector<16x32xf32>
    %1 = arith.truncf %0 : vector<16x32xf32> to vector<16x32xbf16>
    %2 = tpu.iota {dimensions = array<i32: 0>} : vector<16x16xi32>
    %3 = arith.sitofp %2 : vector<16x16xi32> to vector<16x16xf32>
    %cst = arith.constant 5.000000e-01 : f32
    %4 = vector.broadcast %cst : f32 to vector<16x16xf32>
    %5 = arith.addf %3, %4 : vector<16x16xf32>
    %cst_1 = arith.constant 2.500000e-01 : f32
    %6 = vector.broadcast %cst_1 : f32 to vector<16x16xf32>
    %7 = arith.mulf %5, %6 : vector<16x16xf32>
    %8 = tpu.iota {dimensions = array<i32: 1>} : vector<16x16xi32>
    %9 = arith.sitofp %8 : vector<16x16xi32> to vector<16x16xf32>
    %cst_2 = arith.constant 5.000000e-01 : f32
    %10 = vector.broadcast %cst_2 : f32 to vector<16x16xf32>
    %11 = arith.addf %9, %10 : vector<16x16xf32>
    %cst_3 = arith.constant 2.500000e-01 : f32
    %12 = vector.broadcast %cst_3 : f32 to vector<16x16xf32>
    %13 = arith.mulf %11, %12 : vector<16x16xf32>
    %14 = math.floor %7 : vector<16x16xf32>
    %15 = math.floor %13 : vector<16x16xf32>
    %16 = arith.cmpf oeq, %14, %15 : vector<16x16xf32>
    %cst_4 = arith.constant 0.000000e+00 : f32
    %cst_5 = arith.constant -1.000000e+30 : f32
    %17 = vector.broadcast %cst_4 : f32 to vector<16x16xf32>
    %18 = vector.broadcast %cst_5 : f32 to vector<16x16xf32>
    %19 = arith.select %16, %17, %18 : vector<16x16xi1>, vector<16x16xf32>
    %c0_6 = arith.constant 0 : index
    %c0_7 = arith.constant 0 : index
    %20 = vector.load %arg2[%c0_6, %c0_7] : memref<32x32xbf16, #tpu.memory_space<vmem>>, vector<32x32xbf16>
    %cst_8 = arith.constant dense<0.000000e+00> : vector<16x32xf32>
    %21 = tpu.matmul %1, %20, %cst_8 {dimension_numbers = #tpu.dot_dimension_numbers<[1], [0], [0], [1], [0, 0, 1, 1], [], []>} : vector<16x32xbf16>, vector<32x32xbf16>, vector<16x32xf32> -> vector<16x32xf32>
    %c0_9 = arith.constant 0 : index
    %c0_10 = arith.constant 0 : index
    %22 = vector.load %arg3[%c0_9, %c0_10] : memref<1x32xf32, #tpu.memory_space<vmem>>, vector<1x32xf32>
    %23 = vector.broadcast %22 : vector<1x32xf32> to vector<16x32xf32>
    %24 = arith.addf %21, %23 : vector<16x32xf32>
    %c0_11 = arith.constant 0 : index
    %c0_12 = arith.constant 0 : index
    %25 = vector.load %arg4[%c0_11, %c0_12] : memref<32x32xbf16, #tpu.memory_space<vmem>>, vector<32x32xbf16>
    %cst_13 = arith.constant dense<0.000000e+00> : vector<16x32xf32>
    %26 = tpu.matmul %1, %25, %cst_13 {dimension_numbers = #tpu.dot_dimension_numbers<[1], [0], [0], [1], [0, 0, 1, 1], [], []>} : vector<16x32xbf16>, vector<32x32xbf16>, vector<16x32xf32> -> vector<16x32xf32>
    %c0_14 = arith.constant 0 : index
    %c0_15 = arith.constant 0 : index
    %27 = vector.load %arg5[%c0_14, %c0_15] : memref<1x32xf32, #tpu.memory_space<vmem>>, vector<1x32xf32>
    %28 = vector.broadcast %27 : vector<1x32xf32> to vector<16x32xf32>
    %29 = arith.addf %26, %28 : vector<16x32xf32>
    %c0_16 = arith.constant 0 : index
    %c0_17 = arith.constant 0 : index
    %30 = vector.load %arg6[%c0_16, %c0_17] : memref<32x32xbf16, #tpu.memory_space<vmem>>, vector<32x32xbf16>
    %cst_18 = arith.constant dense<0.000000e+00> : vector<16x32xf32>
    %31 = tpu.matmul %1, %30, %cst_18 {dimension_numbers = #tpu.dot_dimension_numbers<[1], [0], [0], [1], [0, 0, 1, 1], [], []>} : vector<16x32xbf16>, vector<32x32xbf16>, vector<16x32xf32> -> vector<16x32xf32>
    %c0_19 = arith.constant 0 : index
    %c0_20 = arith.constant 0 : index
    %32 = vector.load %arg7[%c0_19, %c0_20] : memref<1x32xf32, #tpu.memory_space<vmem>>, vector<1x32xf32>
    %33 = vector.broadcast %32 : vector<1x32xf32> to vector<16x32xf32>
    %34 = arith.addf %31, %33 : vector<16x32xf32>
    %35 = arith.truncf %24 : vector<16x32xf32> to vector<16x32xbf16>
    %36 = arith.truncf %29 : vector<16x32xf32> to vector<16x32xbf16>
    %37 = arith.truncf %34 : vector<16x32xf32> to vector<16x32xbf16>
    %38 = vector.extract_strided_slice %35 {offsets = [0, 0], sizes = [16, 8], strides = [1, 1]} : vector<16x32xbf16> to vector<16x8xbf16>
    %39 = vector.extract_strided_slice %36 {offsets = [0, 0], sizes = [16, 8], strides = [1, 1]} : vector<16x32xbf16> to vector<16x8xbf16>
    %cst_21 = arith.constant dense<0.000000e+00> : vector<16x16xf32>
    %40 = tpu.matmul %38, %39, %cst_21 {dimension_numbers = #tpu.dot_dimension_numbers<[1], [1], [0], [0], [0, 0, 1, 0], [], []>} : vector<16x8xbf16>, vector<16x8xbf16>, vector<16x16xf32> -> vector<16x16xf32>
    %41 = arith.addf %40, %19 : vector<16x16xf32>
    %cst_22 = arith.constant dense<0xFF800000> : vector<16xf32>
    %42 = vector.multi_reduction <maximumf>, %41, %cst_22 [1] : vector<16x16xf32> to vector<16xf32>
    %43 = vector.shape_cast %42 : vector<16xf32> to vector<16x1xf32>
    %44 = vector.broadcast %43 : vector<16x1xf32> to vector<16x16xf32>
    %45 = arith.subf %41, %44 : vector<16x16xf32>
    %46 = math.exp %45 : vector<16x16xf32>
    %cst_23 = arith.constant dense<0.000000e+00> : vector<16xf32>
    %47 = vector.multi_reduction <add>, %46, %cst_23 [1] : vector<16x16xf32> to vector<16xf32>
    %48 = vector.shape_cast %47 : vector<16xf32> to vector<16x1xf32>
    %49 = tpu.reciprocal %48 {approx = true} : vector<16x1xf32> -> vector<16x1xf32>
    %50 = vector.broadcast %49 : vector<16x1xf32> to vector<16x16xf32>
    %51 = arith.mulf %46, %50 : vector<16x16xf32>
    %52 = arith.truncf %51 : vector<16x16xf32> to vector<16x16xbf16>
    %53 = vector.extract_strided_slice %37 {offsets = [0, 0], sizes = [16, 8], strides = [1, 1]} : vector<16x32xbf16> to vector<16x8xbf16>
    %cst_24 = arith.constant dense<0.000000e+00> : vector<16x8xf32>
    %54 = tpu.matmul %52, %53, %cst_24 {dimension_numbers = #tpu.dot_dimension_numbers<[1], [0], [0], [1], [0, 0, 1, 1], [], []>} : vector<16x16xbf16>, vector<16x8xbf16>, vector<16x8xf32> -> vector<16x8xf32>
    %55 = vector.extract_strided_slice %35 {offsets = [0, 8], sizes = [16, 8], strides = [1, 1]} : vector<16x32xbf16> to vector<16x8xbf16>
    %56 = vector.extract_strided_slice %36 {offsets = [0, 8], sizes = [16, 8], strides = [1, 1]} : vector<16x32xbf16> to vector<16x8xbf16>
    %cst_25 = arith.constant dense<0.000000e+00> : vector<16x16xf32>
    %57 = tpu.matmul %55, %56, %cst_25 {dimension_numbers = #tpu.dot_dimension_numbers<[1], [1], [0], [0], [0, 0, 1, 0], [], []>} : vector<16x8xbf16>, vector<16x8xbf16>, vector<16x16xf32> -> vector<16x16xf32>
    %58 = arith.addf %57, %19 : vector<16x16xf32>
    %cst_26 = arith.constant dense<0xFF800000> : vector<16xf32>
    %59 = vector.multi_reduction <maximumf>, %58, %cst_26 [1] : vector<16x16xf32> to vector<16xf32>
    %60 = vector.shape_cast %59 : vector<16xf32> to vector<16x1xf32>
    %61 = vector.broadcast %60 : vector<16x1xf32> to vector<16x16xf32>
    %62 = arith.subf %58, %61 : vector<16x16xf32>
    %63 = math.exp %62 : vector<16x16xf32>
    %cst_27 = arith.constant dense<0.000000e+00> : vector<16xf32>
    %64 = vector.multi_reduction <add>, %63, %cst_27 [1] : vector<16x16xf32> to vector<16xf32>
    %65 = vector.shape_cast %64 : vector<16xf32> to vector<16x1xf32>
    %66 = tpu.reciprocal %65 {approx = true} : vector<16x1xf32> -> vector<16x1xf32>
    %67 = vector.broadcast %66 : vector<16x1xf32> to vector<16x16xf32>
    %68 = arith.mulf %63, %67 : vector<16x16xf32>
    %69 = arith.truncf %68 : vector<16x16xf32> to vector<16x16xbf16>
    %70 = vector.extract_strided_slice %37 {offsets = [0, 8], sizes = [16, 8], strides = [1, 1]} : vector<16x32xbf16> to vector<16x8xbf16>
    %cst_28 = arith.constant dense<0.000000e+00> : vector<16x8xf32>
    %71 = tpu.matmul %69, %70, %cst_28 {dimension_numbers = #tpu.dot_dimension_numbers<[1], [0], [0], [1], [0, 0, 1, 1], [], []>} : vector<16x16xbf16>, vector<16x8xbf16>, vector<16x8xf32> -> vector<16x8xf32>
    %72 = vector.extract_strided_slice %35 {offsets = [0, 16], sizes = [16, 8], strides = [1, 1]} : vector<16x32xbf16> to vector<16x8xbf16>
    %73 = vector.extract_strided_slice %36 {offsets = [0, 16], sizes = [16, 8], strides = [1, 1]} : vector<16x32xbf16> to vector<16x8xbf16>
    %cst_29 = arith.constant dense<0.000000e+00> : vector<16x16xf32>
    %74 = tpu.matmul %72, %73, %cst_29 {dimension_numbers = #tpu.dot_dimension_numbers<[1], [1], [0], [0], [0, 0, 1, 0], [], []>} : vector<16x8xbf16>, vector<16x8xbf16>, vector<16x16xf32> -> vector<16x16xf32>
    %75 = arith.addf %74, %19 : vector<16x16xf32>
    %cst_30 = arith.constant dense<0xFF800000> : vector<16xf32>
    %76 = vector.multi_reduction <maximumf>, %75, %cst_30 [1] : vector<16x16xf32> to vector<16xf32>
    %77 = vector.shape_cast %76 : vector<16xf32> to vector<16x1xf32>
    %78 = vector.broadcast %77 : vector<16x1xf32> to vector<16x16xf32>
    %79 = arith.subf %75, %78 : vector<16x16xf32>
    %80 = math.exp %79 : vector<16x16xf32>
    %cst_31 = arith.constant dense<0.000000e+00> : vector<16xf32>
    %81 = vector.multi_reduction <add>, %80, %cst_31 [1] : vector<16x16xf32> to vector<16xf32>
    %82 = vector.shape_cast %81 : vector<16xf32> to vector<16x1xf32>
    %83 = tpu.reciprocal %82 {approx = true} : vector<16x1xf32> -> vector<16x1xf32>
    %84 = vector.broadcast %83 : vector<16x1xf32> to vector<16x16xf32>
    %85 = arith.mulf %80, %84 : vector<16x16xf32>
    %86 = arith.truncf %85 : vector<16x16xf32> to vector<16x16xbf16>
    %87 = vector.extract_strided_slice %37 {offsets = [0, 16], sizes = [16, 8], strides = [1, 1]} : vector<16x32xbf16> to vector<16x8xbf16>
    %cst_32 = arith.constant dense<0.000000e+00> : vector<16x8xf32>
    %88 = tpu.matmul %86, %87, %cst_32 {dimension_numbers = #tpu.dot_dimension_numbers<[1], [0], [0], [1], [0, 0, 1, 1], [], []>} : vector<16x16xbf16>, vector<16x8xbf16>, vector<16x8xf32> -> vector<16x8xf32>
    %89 = vector.extract_strided_slice %35 {offsets = [0, 24], sizes = [16, 8], strides = [1, 1]} : vector<16x32xbf16> to vector<16x8xbf16>
    %90 = vector.extract_strided_slice %36 {offsets = [0, 24], sizes = [16, 8], strides = [1, 1]} : vector<16x32xbf16> to vector<16x8xbf16>
    %cst_33 = arith.constant dense<0.000000e+00> : vector<16x16xf32>
    %91 = tpu.matmul %89, %90, %cst_33 {dimension_numbers = #tpu.dot_dimension_numbers<[1], [1], [0], [0], [0, 0, 1, 0], [], []>} : vector<16x8xbf16>, vector<16x8xbf16>, vector<16x16xf32> -> vector<16x16xf32>
    %92 = arith.addf %91, %19 : vector<16x16xf32>
    %cst_34 = arith.constant dense<0xFF800000> : vector<16xf32>
    %93 = vector.multi_reduction <maximumf>, %92, %cst_34 [1] : vector<16x16xf32> to vector<16xf32>
    %94 = vector.shape_cast %93 : vector<16xf32> to vector<16x1xf32>
    %95 = vector.broadcast %94 : vector<16x1xf32> to vector<16x16xf32>
    %96 = arith.subf %92, %95 : vector<16x16xf32>
    %97 = math.exp %96 : vector<16x16xf32>
    %cst_35 = arith.constant dense<0.000000e+00> : vector<16xf32>
    %98 = vector.multi_reduction <add>, %97, %cst_35 [1] : vector<16x16xf32> to vector<16xf32>
    %99 = vector.shape_cast %98 : vector<16xf32> to vector<16x1xf32>
    %100 = tpu.reciprocal %99 {approx = true} : vector<16x1xf32> -> vector<16x1xf32>
    %101 = vector.broadcast %100 : vector<16x1xf32> to vector<16x16xf32>
    %102 = arith.mulf %97, %101 : vector<16x16xf32>
    %103 = arith.truncf %102 : vector<16x16xf32> to vector<16x16xbf16>
    %104 = vector.extract_strided_slice %37 {offsets = [0, 24], sizes = [16, 8], strides = [1, 1]} : vector<16x32xbf16> to vector<16x8xbf16>
    %cst_36 = arith.constant dense<0.000000e+00> : vector<16x8xf32>
    %105 = tpu.matmul %103, %104, %cst_36 {dimension_numbers = #tpu.dot_dimension_numbers<[1], [0], [0], [1], [0, 0, 1, 1], [], []>} : vector<16x16xbf16>, vector<16x8xbf16>, vector<16x8xf32> -> vector<16x8xf32>
    %106 = tpu.concatenate %54, %71, %88, %105 in 1 : vector<16x8xf32>, vector<16x8xf32>, vector<16x8xf32>, vector<16x8xf32> -> vector<16x32xf32>
    %107 = arith.truncf %106 : vector<16x32xf32> to vector<16x32xbf16>
    %c0_37 = arith.constant 0 : index
    %c0_38 = arith.constant 0 : index
    %108 = vector.load %arg8[%c0_37, %c0_38] : memref<32x32xbf16, #tpu.memory_space<vmem>>, vector<32x32xbf16>
    %cst_39 = arith.constant dense<0.000000e+00> : vector<16x32xf32>
    %109 = tpu.matmul %107, %108, %cst_39 {dimension_numbers = #tpu.dot_dimension_numbers<[1], [0], [0], [1], [0, 0, 1, 1], [], []>} : vector<16x32xbf16>, vector<32x32xbf16>, vector<16x32xf32> -> vector<16x32xf32>
    %c0_40 = arith.constant 0 : index
    %c0_41 = arith.constant 0 : index
    %110 = vector.load %arg9[%c0_40, %c0_41] : memref<1x32xf32, #tpu.memory_space<vmem>>, vector<1x32xf32>
    %111 = vector.broadcast %110 : vector<1x32xf32> to vector<16x32xf32>
    %112 = arith.addf %109, %111 : vector<16x32xf32>
    %113 = arith.addf %0, %112 : vector<16x32xf32>
    %cst_42 = arith.constant dense<0.000000e+00> : vector<16xf32>
    %114 = vector.multi_reduction <add>, %113, %cst_42 [1] : vector<16x32xf32> to vector<16xf32>
    %115 = vector.shape_cast %114 : vector<16xf32> to vector<16x1xf32>
    %cst_43 = arith.constant 3.200000e+01 : f32
    %116 = vector.broadcast %cst_43 : f32 to vector<16x1xf32>
    %117 = arith.divf %115, %116 : vector<16x1xf32>
    %118 = vector.broadcast %117 : vector<16x1xf32> to vector<16x32xf32>
    %119 = arith.subf %113, %118 : vector<16x32xf32>
    %120 = vector.broadcast %117 : vector<16x1xf32> to vector<16x32xf32>
    %121 = arith.subf %113, %120 : vector<16x32xf32>
    %122 = arith.mulf %119, %121 : vector<16x32xf32>
    %cst_44 = arith.constant dense<0.000000e+00> : vector<16xf32>
    %123 = vector.multi_reduction <add>, %122, %cst_44 [1] : vector<16x32xf32> to vector<16xf32>
    %124 = vector.shape_cast %123 : vector<16xf32> to vector<16x1xf32>
    %cst_45 = arith.constant 3.200000e+01 : f32
    %125 = vector.broadcast %cst_45 : f32 to vector<16x1xf32>
    %126 = arith.divf %124, %125 : vector<16x1xf32>
    %127 = vector.broadcast %117 : vector<16x1xf32> to vector<16x32xf32>
    %128 = arith.subf %113, %127 : vector<16x32xf32>
    %cst_46 = arith.constant 9.99999974E-6 : f32
    %129 = vector.broadcast %cst_46 : f32 to vector<16x1xf32>
    %130 = arith.addf %126, %129 : vector<16x1xf32>
    %131 = math.rsqrt %130 : vector<16x1xf32>
    %132 = vector.broadcast %131 : vector<16x1xf32> to vector<16x32xf32>
    %133 = arith.mulf %128, %132 : vector<16x32xf32>
    %c0_47 = arith.constant 0 : index
    %c0_48 = arith.constant 0 : index
    %134 = vector.load %arg10[%c0_47, %c0_48] : memref<1x32xf32, #tpu.memory_space<vmem>>, vector<1x32xf32>
    %135 = vector.broadcast %134 : vector<1x32xf32> to vector<16x32xf32>
    %136 = arith.mulf %133, %135 : vector<16x32xf32>
    %c0_49 = arith.constant 0 : index
    %c0_50 = arith.constant 0 : index
    %137 = vector.load %arg11[%c0_49, %c0_50] : memref<1x32xf32, #tpu.memory_space<vmem>>, vector<1x32xf32>
    %138 = vector.broadcast %137 : vector<1x32xf32> to vector<16x32xf32>
    %139 = arith.addf %136, %138 : vector<16x32xf32>
    %140 = arith.truncf %139 : vector<16x32xf32> to vector<16x32xbf16>
    %cst_51 = arith.constant 0.000000e+00 : f32
    %141 = vector.broadcast %cst_51 : f32 to vector<16x32xf32>
    %c0_52 = arith.constant 0 : index
    %c0_53 = arith.constant 0 : index
    %142 = vector.load %arg12[%c0_52, %c0_53] : memref<32x128xbf16, #tpu.memory_space<vmem>>, vector<32x128xbf16>
    %cst_54 = arith.constant dense<0.000000e+00> : vector<16x128xf32>
    %143 = tpu.matmul %140, %142, %cst_54 {dimension_numbers = #tpu.dot_dimension_numbers<[1], [0], [0], [1], [0, 0, 1, 1], [], []>} : vector<16x32xbf16>, vector<32x128xbf16>, vector<16x128xf32> -> vector<16x128xf32>
    %c0_55 = arith.constant 0 : index
    %c0_56 = arith.constant 0 : index
    %144 = vector.load %arg13[%c0_55, %c0_56] : memref<1x128xf32, #tpu.memory_space<vmem>>, vector<1x128xf32>
    %145 = vector.broadcast %144 : vector<1x128xf32> to vector<16x128xf32>
    %146 = arith.addf %143, %145 : vector<16x128xf32>
    %cst_57 = arith.constant 0.000000e+00 : f32
    %147 = vector.broadcast %cst_57 : f32 to vector<16x128xf32>
    %148 = arith.maximumf %146, %147 : vector<16x128xf32>
    %149 = arith.truncf %148 : vector<16x128xf32> to vector<16x128xbf16>
    %c0_58 = arith.constant 0 : index
    %c0_59 = arith.constant 0 : index
    %150 = vector.load %arg14[%c0_58, %c0_59] : memref<128x32xbf16, #tpu.memory_space<vmem>>, vector<128x32xbf16>
    %cst_60 = arith.constant dense<0.000000e+00> : vector<16x32xf32>
    %151 = tpu.matmul %149, %150, %cst_60 {dimension_numbers = #tpu.dot_dimension_numbers<[1], [0], [0], [1], [0, 0, 1, 1], [], []>} : vector<16x128xbf16>, vector<128x32xbf16>, vector<16x32xf32> -> vector<16x32xf32>
    %152 = arith.addf %141, %151 : vector<16x32xf32>
    %c0_61 = arith.constant 0 : index
    %c0_62 = arith.constant 0 : index
    %153 = vector.load %arg15[%c0_61, %c0_62] : memref<1x32xf32, #tpu.memory_space<vmem>>, vector<1x32xf32>
    %154 = vector.broadcast %153 : vector<1x32xf32> to vector<16x32xf32>
    %155 = arith.addf %152, %154 : vector<16x32xf32>
    %156 = arith.addf %139, %155 : vector<16x32xf32>
    %cst_63 = arith.constant dense<0.000000e+00> : vector<16xf32>
    %157 = vector.multi_reduction <add>, %156, %cst_63 [1] : vector<16x32xf32> to vector<16xf32>
    %158 = vector.shape_cast %157 : vector<16xf32> to vector<16x1xf32>
    %cst_64 = arith.constant 3.200000e+01 : f32
    %159 = vector.broadcast %cst_64 : f32 to vector<16x1xf32>
    %160 = arith.divf %158, %159 : vector<16x1xf32>
    %161 = vector.broadcast %160 : vector<16x1xf32> to vector<16x32xf32>
    %162 = arith.subf %156, %161 : vector<16x32xf32>
    %163 = vector.broadcast %160 : vector<16x1xf32> to vector<16x32xf32>
    %164 = arith.subf %156, %163 : vector<16x32xf32>
    %165 = arith.mulf %162, %164 : vector<16x32xf32>
    %cst_65 = arith.constant dense<0.000000e+00> : vector<16xf32>
    %166 = vector.multi_reduction <add>, %165, %cst_65 [1] : vector<16x32xf32> to vector<16xf32>
    %167 = vector.shape_cast %166 : vector<16xf32> to vector<16x1xf32>
    %cst_66 = arith.constant 3.200000e+01 : f32
    %168 = vector.broadcast %cst_66 : f32 to vector<16x1xf32>
    %169 = arith.divf %167, %168 : vector<16x1xf32>
    %170 = vector.broadcast %160 : vector<16x1xf32> to vector<16x32xf32>
    %171 = arith.subf %156, %170 : vector<16x32xf32>
    %cst_67 = arith.constant 9.99999974E-6 : f32
    %172 = vector.broadcast %cst_67 : f32 to vector<16x1xf32>
    %173 = arith.addf %169, %172 : vector<16x1xf32>
    %174 = math.rsqrt %173 : vector<16x1xf32>
    %175 = vector.broadcast %174 : vector<16x1xf32> to vector<16x32xf32>
    %176 = arith.mulf %171, %175 : vector<16x32xf32>
    %c0_68 = arith.constant 0 : index
    %c0_69 = arith.constant 0 : index
    %177 = vector.load %arg16[%c0_68, %c0_69] : memref<1x32xf32, #tpu.memory_space<vmem>>, vector<1x32xf32>
    %178 = vector.broadcast %177 : vector<1x32xf32> to vector<16x32xf32>
    %179 = arith.mulf %176, %178 : vector<16x32xf32>
    %c0_70 = arith.constant 0 : index
    %c0_71 = arith.constant 0 : index
    %180 = vector.load %arg17[%c0_70, %c0_71] : memref<1x32xf32, #tpu.memory_space<vmem>>, vector<1x32xf32>
    %181 = vector.broadcast %180 : vector<1x32xf32> to vector<16x32xf32>
    %182 = arith.addf %179, %181 : vector<16x32xf32>
    %c0_72 = arith.constant 0 : index
    %c0_73 = arith.constant 0 : index
    %183 = vector.load %arg18[%c0_72, %c0_73] : memref<16x32xf32, #tpu.memory_space<vmem>>, vector<16x32xf32>
    tpu.vector_store %arg18[%c0_72, %c0_73], %182 {strides = array<i32>} : memref<16x32xf32, #tpu.memory_space<vmem>>, vector<16x32xf32>,
    return
  }
  func.func @transform_0(%arg0: i32) -> (i32, i32) {
    %c0_i32 = arith.constant 0 : i32
    %c0_i32_0 = arith.constant 0 : i32
    return %arg0, %c0_i32 : i32, i32
  }
  func.func @transform_1(%arg0: i32) -> (i32, i32) {
    %c0_i32 = arith.constant 0 : i32
    %c0_i32_0 = arith.constant 0 : i32
    %c0_i32_1 = arith.constant 0 : i32
    return %c0_i32, %c0_i32_0 : i32, i32
  }
  func.func @transform_2(%arg0: i32) -> (i32, i32) {
    %c0_i32 = arith.constant 0 : i32
    %c0_i32_0 = arith.constant 0 : i32
    %c0_i32_1 = arith.constant 0 : i32
    return %c0_i32, %c0_i32_0 : i32, i32
  }
  func.func @transform_3(%arg0: i32) -> (i32, i32) {
    %c0_i32 = arith.constant 0 : i32
    %c0_i32_0 = arith.constant 0 : i32
    %c0_i32_1 = arith.constant 0 : i32
    return %c0_i32, %c0_i32_0 : i32, i32
  }
  func.func @transform_4(%arg0: i32) -> (i32, i32) {
    %c0_i32 = arith.constant 0 : i32
    %c0_i32_0 = arith.constant 0 : i32
    %c0_i32_1 = arith.constant 0 : i32
    return %c0_i32, %c0_i32_0 : i32, i32
  }
  func.func @transform_5(%arg0: i32) -> (i32, i32) {
    %c0_i32 = arith.constant 0 : i32
    %c0_i32_0 = arith.constant 0 : i32
    %c0_i32_1 = arith.constant 0 : i32
    return %c0_i32, %c0_i32_0 : i32, i32
  }
  func.func @transform_6(%arg0: i32) -> (i32, i32) {
    %c0_i32 = arith.constant 0 : i32
    %c0_i32_0 = arith.constant 0 : i32
    %c0_i32_1 = arith.constant 0 : i32
    return %c0_i32, %c0_i32_0 : i32, i32
  }
  func.func @transform_7(%arg0: i32) -> (i32, i32) {
    %c0_i32 = arith.constant 0 : i32
    %c0_i32_0 = arith.constant 0 : i32
    %c0_i32_1 = arith.constant 0 : i32
    return %c0_i32, %c0_i32_0 : i32, i32
  }
  func.func @transform_8(%arg0: i32) -> (i32, i32) {
    %c0_i32 = arith.constant 0 : i32
    %c0_i32_0 = arith.constant 0 : i32
    %c0_i32_1 = arith.constant 0 : i32
    return %c0_i32, %c0_i32_0 : i32, i32
  }
  func.func @transform_9(%arg0: i32) -> (i32, i32) {
    %c0_i32 = arith.constant 0 : i32
    %c0_i32_0 = arith.constant 0 : i32
    %c0_i32_1 = arith.constant 0 : i32
    return %c0_i32, %c0_i32_0 : i32, i32
  }
  func.func @transform_10(%arg0: i32) -> (i32, i32) {
    %c0_i32 = arith.constant 0 : i32
    %c0_i32_0 = arith.constant 0 : i32
    %c0_i32_1 = arith.constant 0 : i32
    return %c0_i32, %c0_i32_0 : i32, i32
  }
  func.func @transform_11(%arg0: i32) -> (i32, i32) {
    %c0_i32 = arith.constant 0 : i32
    %c0_i32_0 = arith.constant 0 : i32
    %c0_i32_1 = arith.constant 0 : i32
    return %c0_i32, %c0_i32_0 : i32, i32
  }
  func.func @transform_12(%arg0: i32) -> (i32, i32) {
    %c0_i32 = arith.constant 0 : i32
    %c0_i32_0 = arith.constant 0 : i32
    %c0_i32_1 = arith.constant 0 : i32
    return %c0_i32, %c0_i32_0 : i32, i32
  }
  func.func @transform_13(%arg0: i32) -> (i32, i32) {
    %c0_i32 = arith.constant 0 : i32
    %c0_i32_0 = arith.constant 0 : i32
    %c0_i32_1 = arith.constant 0 : i32
    return %c0_i32, %c0_i32_0 : i32, i32
  }
  func.func @transform_14(%arg0: i32) -> (i32, i32) {
    %c0_i32 = arith.constant 0 : i32
    %c0_i32_0 = arith.constant 0 : i32
    %c0_i32_1 = arith.constant 0 : i32
    return %c0_i32, %c0_i32_0 : i32, i32
  }
  func.func @transform_15(%arg0: i32) -> (i32, i32) {
    %c0_i32 = arith.constant 0 : i32
    %c0_i32_0 = arith.constant 0 : i32
    %c0_i32_1 = arith.constant 0 : i32
    return %c0_i32, %c0_i32_0 : i32, i32
  }
  func.func @transform_16(%arg0: i32) -> (i32, i32) {
    %c0_i32 = arith.constant 0 : i32
    %c0_i32_0 = arith.constant 0 : i32
    %c0_i32_1 = arith.constant 0 : i32
    return %c0_i32, %c0_i32_0 : i32, i32
  }
  func.func @transform_17(%arg0: i32) -> (i32, i32) {
    %c0_i32 = arith.constant 0 : i32
    %c0_i32_0 = arith.constant 0 : i32
    return %arg0, %c0_i32 : i32, i32
  }
}

module attributes {stable_mosaic.version = 11 : i64} {
  func.func @_encoder_layer_kernel(%arg0: i32, %arg1: memref<16x32xf32, #tpu.memory_space<vmem>>, %arg2: memref<32x32xbf16, #tpu.memory_space<vmem>>, %arg3: memref<1x32xf32, #tpu.memory_space<vmem>>, %arg4: memref<32x32xbf16, #tpu.memory_space<vmem>>, %arg5: memref<1x32xf32, #tpu.memory_space<vmem>>, %arg6: memref<32x32xbf16, #tpu.memory_space<vmem>>, %arg7: memref<1x32xf32, #tpu.memory_space<vmem>>, %arg8: memref<32x32xbf16, #tpu.memory_space<vmem>>, %arg9: memref<1x32xf32, #tpu.memory_space<vmem>>, %arg10: memref<1x32xf32, #tpu.memory_space<vmem>>, %arg11: memref<1x32xf32, #tpu.memory_space<vmem>>, %arg12: memref<32x128xbf16, #tpu.memory_space<vmem>>, %arg13: memref<1x128xf32, #tpu.memory_space<vmem>>, %arg14: memref<128x32xbf16, #tpu.memory_space<vmem>>, %arg15: memref<1x32xf32, #tpu.memory_space<vmem>>, %arg16: memref<1x32xf32, #tpu.memory_space<vmem>>, %arg17: memref<1x32xf32, #tpu.memory_space<vmem>>, %arg18: memref<16x32xf32, #tpu.memory_space<vmem>>) attributes {dimension_semantics = [#tpu.dimension_semantics<parallel>], iteration_bounds = array<i64: 4>, scalar_prefetch = 0 : i64, scratch_operands = 0 : i64, tpu.core_type = #tpu.core_type<tc>, window_params = [{transform_indices = @transform_0, window_bounds = array<i64: 16, 32>}, {pipeline_mode = #tpu.pipeline_mode<synchronous>, transform_indices = @transform_1, window_bounds = array<i64: 32, 32>}, {pipeline_mode = #tpu.pipeline_mode<synchronous>, transform_indices = @transform_2, window_bounds = array<i64: 1, 32>}, {pipeline_mode = #tpu.pipeline_mode<synchronous>, transform_indices = @transform_3, window_bounds = array<i64: 32, 32>}, {pipeline_mode = #tpu.pipeline_mode<synchronous>, transform_indices = @transform_4, window_bounds = array<i64: 1, 32>}, {pipeline_mode = #tpu.pipeline_mode<synchronous>, transform_indices = @transform_5, window_bounds = array<i64: 32, 32>}, {pipeline_mode = #tpu.pipeline_mode<synchronous>, transform_indices = @transform_6, window_bounds = array<i64: 1, 32>}, {pipeline_mode = #tpu.pipeline_mode<synchronous>, transform_indices = @transform_7, window_bounds = array<i64: 32, 32>}, {pipeline_mode = #tpu.pipeline_mode<synchronous>, transform_indices = @transform_8, window_bounds = array<i64: 1, 32>}, {pipeline_mode = #tpu.pipeline_mode<synchronous>, transform_indices = @transform_9, window_bounds = array<i64: 1, 32>}, {pipeline_mode = #tpu.pipeline_mode<synchronous>, transform_indices = @transform_10, window_bounds = array<i64: 1, 32>}, {pipeline_mode = #tpu.pipeline_mode<synchronous>, transform_indices = @transform_11, window_bounds = array<i64: 32, 128>}, {pipeline_mode = #tpu.pipeline_mode<synchronous>, transform_indices = @transform_12, window_bounds = array<i64: 1, 128>}, {pipeline_mode = #tpu.pipeline_mode<synchronous>, transform_indices = @transform_13, window_bounds = array<i64: 128, 32>}, {pipeline_mode = #tpu.pipeline_mode<synchronous>, transform_indices = @transform_14, window_bounds = array<i64: 1, 32>}, {pipeline_mode = #tpu.pipeline_mode<synchronous>, transform_indices = @transform_15, window_bounds = array<i64: 1, 32>}, {pipeline_mode = #tpu.pipeline_mode<synchronous>, transform_indices = @transform_16, window_bounds = array<i64: 1, 32>}, {transform_indices = @transform_17, window_bounds = array<i64: 16, 32>}]} {
    %c0 = arith.constant 0 : index
    %c0_0 = arith.constant 0 : index
    %0 = vector.load %arg1[%c0, %c0_0] : memref<16x32xf32, #tpu.memory_space<vmem>>, vector<16x32xf32>
    %1 = arith.truncf %0 : vector<16x32xf32> to vector<16x32xbf16>
    %2 = tpu.iota {dimensions = array<i32: 0>} : vector<16x16xi32>
    %3 = arith.sitofp %2 : vector<16x16xi32> to vector<16x16xf32>
    %cst = arith.constant 5.000000e-01 : f32
    %4 = vector.broadcast %cst : f32 to vector<16x16xf32>
    %5 = arith.addf %3, %4 : vector<16x16xf32>
    %cst_1 = arith.constant 2.500000e-01 : f32
    %6 = vector.broadcast %cst_1 : f32 to vector<16x16xf32>
    %7 = arith.mulf %5, %6 : vector<16x16xf32>
    %8 = tpu.iota {dimensions = array<i32: 1>} : vector<16x16xi32>
    %9 = arith.sitofp %8 : vector<16x16xi32> to vector<16x16xf32>
    %cst_2 = arith.constant 5.000000e-01 : f32
    %10 = vector.broadcast %cst_2 : f32 to vector<16x16xf32>
    %11 = arith.addf %9, %10 : vector<16x16xf32>
    %cst_3 = arith.constant 2.500000e-01 : f32
    %12 = vector.broadcast %cst_3 : f32 to vector<16x16xf32>
    %13 = arith.mulf %11, %12 : vector<16x16xf32>
    %14 = math.floor %7 : vector<16x16xf32>
    %15 = math.floor %13 : vector<16x16xf32>
    %16 = arith.cmpf oeq, %14, %15 : vector<16x16xf32>
    %cst_4 = arith.constant 0.000000e+00 : f32
    %cst_5 = arith.constant -1.000000e+30 : f32
    %17 = vector.broadcast %cst_4 : f32 to vector<16x16xf32>
    %18 = vector.broadcast %cst_5 : f32 to vector<16x16xf32>
    %19 = arith.select %16, %17, %18 : vector<16x16xi1>, vector<16x16xf32>
    %c0_6 = arith.constant 0 : index
    %c0_7 = arith.constant 0 : index
    %20 = vector.load %arg2[%c0_6, %c0_7] : memref<32x32xbf16, #tpu.memory_space<vmem>>, vector<32x32xbf16>
    %cst_8 = arith.constant dense<0.000000e+00> : vector<16x32xf32>
    %21 = tpu.matmul %1, %20, %cst_8 {dimension_numbers = #tpu.dot_dimension_numbers<[1], [0], [0], [1], [0, 0, 1, 1], [], []>} : vector<16x32xbf16>, vector<32x32xbf16>, vector<16x32xf32> -> vector<16x32xf32>
    %c0_9 = arith.constant 0 : index
    %c0_10 = arith.constant 0 : index
    %22 = vector.load %arg3[%c0_9, %c0_10] : memref<1x32xf32, #tpu.memory_space<vmem>>, vector<1x32xf32>
    %23 = vector.broadcast %22 : vector<1x32xf32> to vector<16x32xf32>
    %24 = arith.addf %21, %23 : vector<16x32xf32>
    %c0_11 = arith.constant 0 : index
    %c0_12 = arith.constant 0 : index
    %25 = vector.load %arg4[%c0_11, %c0_12] : memref<32x32xbf16, #tpu.memory_space<vmem>>, vector<32x32xbf16>
    %cst_13 = arith.constant dense<0.000000e+00> : vector<16x32xf32>
    %26 = tpu.matmul %1, %25, %cst_13 {dimension_numbers = #tpu.dot_dimension_numbers<[1], [0], [0], [1], [0, 0, 1, 1], [], []>} : vector<16x32xbf16>, vector<32x32xbf16>, vector<16x32xf32> -> vector<16x32xf32>
    %c0_14 = arith.constant 0 : index
    %c0_15 = arith.constant 0 : index
    %27 = vector.load %arg5[%c0_14, %c0_15] : memref<1x32xf32, #tpu.memory_space<vmem>>, vector<1x32xf32>
    %28 = vector.broadcast %27 : vector<1x32xf32> to vector<16x32xf32>
    %29 = arith.addf %26, %28 : vector<16x32xf32>
    %c0_16 = arith.constant 0 : index
    %c0_17 = arith.constant 0 : index
    %30 = vector.load %arg6[%c0_16, %c0_17] : memref<32x32xbf16, #tpu.memory_space<vmem>>, vector<32x32xbf16>
    %cst_18 = arith.constant dense<0.000000e+00> : vector<16x32xf32>
    %31 = tpu.matmul %1, %30, %cst_18 {dimension_numbers = #tpu.dot_dimension_numbers<[1], [0], [0], [1], [0, 0, 1, 1], [], []>} : vector<16x32xbf16>, vector<32x32xbf16>, vector<16x32xf32> -> vector<16x32xf32>
    %c0_19 = arith.constant 0 : index
    %c0_20 = arith.constant 0 : index
    %32 = vector.load %arg7[%c0_19, %c0_20] : memref<1x32xf32, #tpu.memory_space<vmem>>, vector<1x32xf32>
    %33 = vector.broadcast %32 : vector<1x32xf32> to vector<16x32xf32>
    %34 = arith.addf %31, %33 : vector<16x32xf32>
    %35 = arith.truncf %24 : vector<16x32xf32> to vector<16x32xbf16>
    %36 = arith.truncf %29 : vector<16x32xf32> to vector<16x32xbf16>
    %37 = arith.truncf %34 : vector<16x32xf32> to vector<16x32xbf16>
    %38 = vector.extract_strided_slice %35 {offsets = [0, 0], sizes = [16, 8], strides = [1, 1]} : vector<16x32xbf16> to vector<16x8xbf16>
    %39 = vector.extract_strided_slice %36 {offsets = [0, 0], sizes = [16, 8], strides = [1, 1]} : vector<16x32xbf16> to vector<16x8xbf16>
    %cst_21 = arith.constant dense<0.000000e+00> : vector<16x16xf32>
    %40 = tpu.matmul %38, %39, %cst_21 {dimension_numbers = #tpu.dot_dimension_numbers<[1], [1], [0], [0], [0, 0, 1, 0], [], []>} : vector<16x8xbf16>, vector<16x8xbf16>, vector<16x16xf32> -> vector<16x16xf32>
    %41 = arith.addf %40, %19 : vector<16x16xf32>
    %cst_22 = arith.constant dense<0xFF800000> : vector<16xf32>
    %42 = vector.multi_reduction <maximumf>, %41, %cst_22 [1] : vector<16x16xf32> to vector<16xf32>
    %43 = vector.shape_cast %42 : vector<16xf32> to vector<16x1xf32>
    %44 = vector.broadcast %43 : vector<16x1xf32> to vector<16x16xf32>
    %45 = arith.subf %41, %44 : vector<16x16xf32>
    %46 = math.exp %45 : vector<16x16xf32>
    %cst_23 = arith.constant dense<0.000000e+00> : vector<16xf32>
    %47 = vector.multi_reduction <add>, %46, %cst_23 [1] : vector<16x16xf32> to vector<16xf32>
    %48 = vector.shape_cast %47 : vector<16xf32> to vector<16x1xf32>
    %49 = tpu.reciprocal %48 {approx = true} : vector<16x1xf32> -> vector<16x1xf32>
    %50 = vector.broadcast %49 : vector<16x1xf32> to vector<16x16xf32>
    %51 = arith.mulf %46, %50 : vector<16x16xf32>
    %52 = arith.truncf %51 : vector<16x16xf32> to vector<16x16xbf16>
    %53 = vector.extract_strided_slice %37 {offsets = [0, 0], sizes = [16, 8], strides = [1, 1]} : vector<16x32xbf16> to vector<16x8xbf16>
    %cst_24 = arith.constant dense<0.000000e+00> : vector<16x8xf32>
    %54 = tpu.matmul %52, %53, %cst_24 {dimension_numbers = #tpu.dot_dimension_numbers<[1], [0], [0], [1], [0, 0, 1, 1], [], []>} : vector<16x16xbf16>, vector<16x8xbf16>, vector<16x8xf32> -> vector<16x8xf32>
    %55 = vector.extract_strided_slice %35 {offsets = [0, 8], sizes = [16, 8], strides = [1, 1]} : vector<16x32xbf16> to vector<16x8xbf16>
    %56 = vector.extract_strided_slice %36 {offsets = [0, 8], sizes = [16, 8], strides = [1, 1]} : vector<16x32xbf16> to vector<16x8xbf16>
    %cst_25 = arith.constant dense<0.000000e+00> : vector<16x16xf32>
    %57 = tpu.matmul %55, %56, %cst_25 {dimension_numbers = #tpu.dot_dimension_numbers<[1], [1], [0], [0], [0, 0, 1, 0], [], []>} : vector<16x8xbf16>, vector<16x8xbf16>, vector<16x16xf32> -> vector<16x16xf32>
    %58 = arith.addf %57, %19 : vector<16x16xf32>
    %cst_26 = arith.constant dense<0xFF800000> : vector<16xf32>
    %59 = vector.multi_reduction <maximumf>, %58, %cst_26 [1] : vector<16x16xf32> to vector<16xf32>
    %60 = vector.shape_cast %59 : vector<16xf32> to vector<16x1xf32>
    %61 = vector.broadcast %60 : vector<16x1xf32> to vector<16x16xf32>
    %62 = arith.subf %58, %61 : vector<16x16xf32>
    %63 = math.exp %62 : vector<16x16xf32>
    %cst_27 = arith.constant dense<0.000000e+00> : vector<16xf32>
    %64 = vector.multi_reduction <add>, %63, %cst_27 [1] : vector<16x16xf32> to vector<16xf32>
    %65 = vector.shape_cast %64 : vector<16xf32> to vector<16x1xf32>
    %66 = tpu.reciprocal %65 {approx = true} : vector<16x1xf32> -> vector<16x1xf32>
    %67 = vector.broadcast %66 : vector<16x1xf32> to vector<16x16xf32>
    %68 = arith.mulf %63, %67 : vector<16x16xf32>
    %69 = arith.truncf %68 : vector<16x16xf32> to vector<16x16xbf16>
    %70 = vector.extract_strided_slice %37 {offsets = [0, 8], sizes = [16, 8], strides = [1, 1]} : vector<16x32xbf16> to vector<16x8xbf16>
    %cst_28 = arith.constant dense<0.000000e+00> : vector<16x8xf32>
    %71 = tpu.matmul %69, %70, %cst_28 {dimension_numbers = #tpu.dot_dimension_numbers<[1], [0], [0], [1], [0, 0, 1, 1], [], []>} : vector<16x16xbf16>, vector<16x8xbf16>, vector<16x8xf32> -> vector<16x8xf32>
    %72 = vector.extract_strided_slice %35 {offsets = [0, 16], sizes = [16, 8], strides = [1, 1]} : vector<16x32xbf16> to vector<16x8xbf16>
    %73 = vector.extract_strided_slice %36 {offsets = [0, 16], sizes = [16, 8], strides = [1, 1]} : vector<16x32xbf16> to vector<16x8xbf16>
    %cst_29 = arith.constant dense<0.000000e+00> : vector<16x16xf32>
    %74 = tpu.matmul %72, %73, %cst_29 {dimension_numbers = #tpu.dot_dimension_numbers<[1], [1], [0], [0], [0, 0, 1, 0], [], []>} : vector<16x8xbf16>, vector<16x8xbf16>, vector<16x16xf32> -> vector<16x16xf32>
    %75 = arith.addf %74, %19 : vector<16x16xf32>
    %cst_30 = arith.constant dense<0xFF800000> : vector<16xf32>
    %76 = vector.multi_reduction <maximumf>, %75, %cst_30 [1] : vector<16x16xf32> to vector<16xf32>
    %77 = vector.shape_cast %76 : vector<16xf32> to vector<16x1xf32>
    %78 = vector.broadcast %77 : vector<16x1xf32> to vector<16x16xf32>
    %79 = arith.subf %75, %78 : vector<16x16xf32>
    %80 = math.exp %79 : vector<16x16xf32>
    %cst_31 = arith.constant dense<0.000000e+00> : vector<16xf32>
    %81 = vector.multi_reduction <add>, %80, %cst_31 [1] : vector<16x16xf32> to vector<16xf32>
    %82 = vector.shape_cast %81 : vector<16xf32> to vector<16x1xf32>
    %83 = tpu.reciprocal %82 {approx = true} : vector<16x1xf32> -> vector<16x1xf32>
    %84 = vector.broadcast %83 : vector<16x1xf32> to vector<16x16xf32>
    %85 = arith.mulf %80, %84 : vector<16x16xf32>
    %86 = arith.truncf %85 : vector<16x16xf32> to vector<16x16xbf16>
    %87 = vector.extract_strided_slice %37 {offsets = [0, 16], sizes = [16, 8], strides = [1, 1]} : vector<16x32xbf16> to vector<16x8xbf16>
    %cst_32 = arith.constant dense<0.000000e+00> : vector<16x8xf32>
    %88 = tpu.matmul %86, %87, %cst_32 {dimension_numbers = #tpu.dot_dimension_numbers<[1], [0], [0], [1], [0, 0, 1, 1], [], []>} : vector<16x16xbf16>, vector<16x8xbf16>, vector<16x8xf32> -> vector<16x8xf32>
    %89 = vector.extract_strided_slice %35 {offsets = [0, 24], sizes = [16, 8], strides = [1, 1]} : vector<16x32xbf16> to vector<16x8xbf16>
    %90 = vector.extract_strided_slice %36 {offsets = [0, 24], sizes = [16, 8], strides = [1, 1]} : vector<16x32xbf16> to vector<16x8xbf16>
    %cst_33 = arith.constant dense<0.000000e+00> : vector<16x16xf32>
    %91 = tpu.matmul %89, %90, %cst_33 {dimension_numbers = #tpu.dot_dimension_numbers<[1], [1], [0], [0], [0, 0, 1, 0], [], []>} : vector<16x8xbf16>, vector<16x8xbf16>, vector<16x16xf32> -> vector<16x16xf32>
    %92 = arith.addf %91, %19 : vector<16x16xf32>
    %cst_34 = arith.constant dense<0xFF800000> : vector<16xf32>
    %93 = vector.multi_reduction <maximumf>, %92, %cst_34 [1] : vector<16x16xf32> to vector<16xf32>
    %94 = vector.shape_cast %93 : vector<16xf32> to vector<16x1xf32>
    %95 = vector.broadcast %94 : vector<16x1xf32> to vector<16x16xf32>
    %96 = arith.subf %92, %95 : vector<16x16xf32>
    %97 = math.exp %96 : vector<16x16xf32>
    %cst_35 = arith.constant dense<0.000000e+00> : vector<16xf32>
    %98 = vector.multi_reduction <add>, %97, %cst_35 [1] : vector<16x16xf32> to vector<16xf32>
    %99 = vector.shape_cast %98 : vector<16xf32> to vector<16x1xf32>
    %100 = tpu.reciprocal %99 {approx = true} : vector<16x1xf32> -> vector<16x1xf32>
    %101 = vector.broadcast %100 : vector<16x1xf32> to vector<16x16xf32>
    %102 = arith.mulf %97, %101 : vector<16x16xf32>
    %103 = arith.truncf %102 : vector<16x16xf32> to vector<16x16xbf16>
    %104 = vector.extract_strided_slice %37 {offsets = [0, 24], sizes = [16, 8], strides = [1, 1]} : vector<16x32xbf16> to vector<16x8xbf16>
    %cst_36 = arith.constant dense<0.000000e+00> : vector<16x8xf32>
    %105 = tpu.matmul %103, %104, %cst_36 {dimension_numbers = #tpu.dot_dimension_numbers<[1], [0], [0], [1], [0, 0, 1, 1], [], []>} : vector<16x16xbf16>, vector<16x8xbf16>, vector<16x8xf32> -> vector<16x8xf32>
    %106 = tpu.concatenate %54, %71, %88, %105 in 1 : vector<16x8xf32>, vector<16x8xf32>, vector<16x8xf32>, vector<16x8xf32> -> vector<16x32xf32>
    %107 = arith.truncf %106 : vector<16x32xf32> to vector<16x32xbf16>
    %c0_37 = arith.constant 0 : index
    %c0_38 = arith.constant 0 : index
    %108 = vector.load %arg8[%c0_37, %c0_38] : memref<32x32xbf16, #tpu.memory_space<vmem>>, vector<32x32xbf16>
    %cst_39 = arith.constant dense<0.000000e+00> : vector<16x32xf32>
    %109 = tpu.matmul %107, %108, %cst_39 {dimension_numbers = #tpu.dot_dimension_numbers<[1], [0], [0], [1], [0, 0, 1, 1], [], []>} : vector<16x32xbf16>, vector<32x32xbf16>, vector<16x32xf32> -> vector<16x32xf32>
    %c0_40 = arith.constant 0 : index
    %c0_41 = arith.constant 0 : index
    %110 = vector.load %arg9[%c0_40, %c0_41] : memref<1x32xf32, #tpu.memory_space<vmem>>, vector<1x32xf32>
    %111 = vector.broadcast %110 : vector<1x32xf32> to vector<16x32xf32>
    %112 = arith.addf %109, %111 : vector<16x32xf32>
    %113 = arith.addf %0, %112 : vector<16x32xf32>
    %cst_42 = arith.constant dense<0.000000e+00> : vector<16xf32>
    %114 = vector.multi_reduction <add>, %113, %cst_42 [1] : vector<16x32xf32> to vector<16xf32>
    %115 = vector.shape_cast %114 : vector<16xf32> to vector<16x1xf32>
    %cst_43 = arith.constant 3.200000e+01 : f32
    %116 = vector.broadcast %cst_43 : f32 to vector<16x1xf32>
    %117 = arith.divf %115, %116 : vector<16x1xf32>
    %118 = vector.broadcast %117 : vector<16x1xf32> to vector<16x32xf32>
    %119 = arith.subf %113, %118 : vector<16x32xf32>
    %120 = vector.broadcast %117 : vector<16x1xf32> to vector<16x32xf32>
    %121 = arith.subf %113, %120 : vector<16x32xf32>
    %122 = arith.mulf %119, %121 : vector<16x32xf32>
    %cst_44 = arith.constant dense<0.000000e+00> : vector<16xf32>
    %123 = vector.multi_reduction <add>, %122, %cst_44 [1] : vector<16x32xf32> to vector<16xf32>
    %124 = vector.shape_cast %123 : vector<16xf32> to vector<16x1xf32>
    %cst_45 = arith.constant 3.200000e+01 : f32
    %125 = vector.broadcast %cst_45 : f32 to vector<16x1xf32>
    %126 = arith.divf %124, %125 : vector<16x1xf32>
    %127 = vector.broadcast %117 : vector<16x1xf32> to vector<16x32xf32>
    %128 = arith.subf %113, %127 : vector<16x32xf32>
    %cst_46 = arith.constant 9.99999974E-6 : f32
    %129 = vector.broadcast %cst_46 : f32 to vector<16x1xf32>
    %130 = arith.addf %126, %129 : vector<16x1xf32>
    %131 = math.rsqrt %130 : vector<16x1xf32>
    %132 = vector.broadcast %131 : vector<16x1xf32> to vector<16x32xf32>
    %133 = arith.mulf %128, %132 : vector<16x32xf32>
    %c0_47 = arith.constant 0 : index
    %c0_48 = arith.constant 0 : index
    %134 = vector.load %arg10[%c0_47, %c0_48] : memref<1x32xf32, #tpu.memory_space<vmem>>, vector<1x32xf32>
    %135 = vector.broadcast %134 : vector<1x32xf32> to vector<16x32xf32>
    %136 = arith.mulf %133, %135 : vector<16x32xf32>
    %c0_49 = arith.constant 0 : index
    %c0_50 = arith.constant 0 : index
    %137 = vector.load %arg11[%c0_49, %c0_50] : memref<1x32xf32, #tpu.memory_space<vmem>>, vector<1x32xf32>
    %138 = vector.broadcast %137 : vector<1x32xf32> to vector<16x32xf32>
    %139 = arith.addf %136, %138 : vector<16x32xf32>
    %140 = arith.truncf %139 : vector<16x32xf32> to vector<16x32xbf16>
    %cst_51 = arith.constant 0.000000e+00 : f32
    %141 = vector.broadcast %cst_51 : f32 to vector<16x32xf32>
    %c0_52 = arith.constant 0 : index
    %c0_53 = arith.constant 0 : index
    %142 = vector.load %arg12[%c0_52, %c0_53] : memref<32x128xbf16, #tpu.memory_space<vmem>>, vector<32x128xbf16>
    %cst_54 = arith.constant dense<0.000000e+00> : vector<16x128xf32>
    %143 = tpu.matmul %140, %142, %cst_54 {dimension_numbers = #tpu.dot_dimension_numbers<[1], [0], [0], [1], [0, 0, 1, 1], [], []>} : vector<16x32xbf16>, vector<32x128xbf16>, vector<16x128xf32> -> vector<16x128xf32>
    %c0_55 = arith.constant 0 : index
    %c0_56 = arith.constant 0 : index
    %144 = vector.load %arg13[%c0_55, %c0_56] : memref<1x128xf32, #tpu.memory_space<vmem>>, vector<1x128xf32>
    %145 = vector.broadcast %144 : vector<1x128xf32> to vector<16x128xf32>
    %146 = arith.addf %143, %145 : vector<16x128xf32>
    %cst_57 = arith.constant 0.000000e+00 : f32
    %147 = vector.broadcast %cst_57 : f32 to vector<16x128xf32>
    %148 = arith.maximumf %146, %147 : vector<16x128xf32>
    %149 = arith.truncf %148 : vector<16x128xf32> to vector<16x128xbf16>
    %c0_58 = arith.constant 0 : index
    %c0_59 = arith.constant 0 : index
    %150 = vector.load %arg14[%c0_58, %c0_59] : memref<128x32xbf16, #tpu.memory_space<vmem>>, vector<128x32xbf16>
    %cst_60 = arith.constant dense<0.000000e+00> : vector<16x32xf32>
    %151 = tpu.matmul %149, %150, %cst_60 {dimension_numbers = #tpu.dot_dimension_numbers<[1], [0], [0], [1], [0, 0, 1, 1], [], []>} : vector<16x128xbf16>, vector<128x32xbf16>, vector<16x32xf32> -> vector<16x32xf32>
    %152 = arith.addf %141, %151 : vector<16x32xf32>
    %c0_61 = arith.constant 0 : index
    %c0_62 = arith.constant 0 : index
    %153 = vector.load %arg15[%c0_61, %c0_62] : memref<1x32xf32, #tpu.memory_space<vmem>>, vector<1x32xf32>
    %154 = vector.broadcast %153 : vector<1x32xf32> to vector<16x32xf32>
    %155 = arith.addf %152, %154 : vector<16x32xf32>
    %156 = arith.addf %139, %155 : vector<16x32xf32>
    %cst_63 = arith.constant dense<0.000000e+00> : vector<16xf32>
    %157 = vector.multi_reduction <add>, %156, %cst_63 [1] : vector<16x32xf32> to vector<16xf32>
    %158 = vector.shape_cast %157 : vector<16xf32> to vector<16x1xf32>
    %cst_64 = arith.constant 3.200000e+01 : f32
    %159 = vector.broadcast %cst_64 : f32 to vector<16x1xf32>
    %160 = arith.divf %158, %159 : vector<16x1xf32>
    %161 = vector.broadcast %160 : vector<16x1xf32> to vector<16x32xf32>
    %162 = arith.subf %156, %161 : vector<16x32xf32>
    %163 = vector.broadcast %160 : vector<16x1xf32> to vector<16x32xf32>
    %164 = arith.subf %156, %163 : vector<16x32xf32>
    %165 = arith.mulf %162, %164 : vector<16x32xf32>
    %cst_65 = arith.constant dense<0.000000e+00> : vector<16xf32>
    %166 = vector.multi_reduction <add>, %165, %cst_65 [1] : vector<16x32xf32> to vector<16xf32>
    %167 = vector.shape_cast %166 : vector<16xf32> to vector<16x1xf32>
    %cst_66 = arith.constant 3.200000e+01 : f32
    %168 = vector.broadcast %cst_66 : f32 to vector<16x1xf32>
    %169 = arith.divf %167, %168 : vector<16x1xf32>
    %170 = vector.broadcast %160 : vector<16x1xf32> to vector<16x32xf32>
    %171 = arith.subf %156, %170 : vector<16x32xf32>
    %cst_67 = arith.constant 9.99999974E-6 : f32
    %172 = vector.broadcast %cst_67 : f32 to vector<16x1xf32>
    %173 = arith.addf %169, %172 : vector<16x1xf32>
    %174 = math.rsqrt %173 : vector<16x1xf32>
    %175 = vector.broadcast %174 : vector<16x1xf32> to vector<16x32xf32>
    %176 = arith.mulf %171, %175 : vector<16x32xf32>
    %c0_68 = arith.constant 0 : index
    %c0_69 = arith.constant 0 : index
    %177 = vector.load %arg16[%c0_68, %c0_69] : memref<1x32xf32, #tpu.memory_space<vmem>>, vector<1x32xf32>
    %178 = vector.broadcast %177 : vector<1x32xf32> to vector<16x32xf32>
    %179 = arith.mulf %176, %178 : vector<16x32xf32>
    %c0_70 = arith.constant 0 : index
    %c0_71 = arith.constant 0 : index
    %180 = vector.load %arg17[%c0_70, %c0_71] : memref<1x32xf32, #tpu.memory_space<vmem>>, vector<1x32xf32>
    %181 = vector.broadcast %180 : vector<1x32xf32> to vector<16x32xf32>
    %182 = arith.addf %179, %181 : vector<16x32xf32>
    %c0_72 = arith.constant 0 : index
    %c0_73 = arith.constant 0 : index
    %183 = vector.load %arg18[%c0_72, %c0_73] : memref<16x32xf32, #tpu.memory_space<vmem>>, vector<16x32xf32>
    tpu.vector_store %arg18[%c0_72, %c0_73], %182 {strides = array<i32>} : memref<16x32xf32, #tpu.memory_space<vmem>>, vector<16x32xf32>,
    return
  }
  func.func @transform_0(%arg0: i32) -> (i32, i32) {
    %c0_i32 = arith.constant 0 : i32
    %c0_i32_0 = arith.constant 0 : i32
    return %arg0, %c0_i32 : i32, i32
  }
  func.func @transform_1(%arg0: i32) -> (i32, i32) {
    %c0_i32 = arith.constant 0 : i32
    %c0_i32_0 = arith.constant 0 : i32
    %c0_i32_1 = arith.constant 0 : i32
    return %c0_i32, %c0_i32_0 : i32, i32
  }
  func.func @transform_2(%arg0: i32) -> (i32, i32) {
    %c0_i32 = arith.constant 0 : i32
    %c0_i32_0 = arith.constant 0 : i32
    %c0_i32_1 = arith.constant 0 : i32
    return %c0_i32, %c0_i32_0 : i32, i32
  }
  func.func @transform_3(%arg0: i32) -> (i32, i32) {
    %c0_i32 = arith.constant 0 : i32
    %c0_i32_0 = arith.constant 0 : i32
    %c0_i32_1 = arith.constant 0 : i32
    return %c0_i32, %c0_i32_0 : i32, i32
  }
  func.func @transform_4(%arg0: i32) -> (i32, i32) {
    %c0_i32 = arith.constant 0 : i32
    %c0_i32_0 = arith.constant 0 : i32
    %c0_i32_1 = arith.constant 0 : i32
    return %c0_i32, %c0_i32_0 : i32, i32
  }
  func.func @transform_5(%arg0: i32) -> (i32, i32) {
    %c0_i32 = arith.constant 0 : i32
    %c0_i32_0 = arith.constant 0 : i32
    %c0_i32_1 = arith.constant 0 : i32
    return %c0_i32, %c0_i32_0 : i32, i32
  }
  func.func @transform_6(%arg0: i32) -> (i32, i32) {
    %c0_i32 = arith.constant 0 : i32
    %c0_i32_0 = arith.constant 0 : i32
    %c0_i32_1 = arith.constant 0 : i32
    return %c0_i32, %c0_i32_0 : i32, i32
  }
  func.func @transform_7(%arg0: i32) -> (i32, i32) {
    %c0_i32 = arith.constant 0 : i32
    %c0_i32_0 = arith.constant 0 : i32
    %c0_i32_1 = arith.constant 0 : i32
    return %c0_i32, %c0_i32_0 : i32, i32
  }
  func.func @transform_8(%arg0: i32) -> (i32, i32) {
    %c0_i32 = arith.constant 0 : i32
    %c0_i32_0 = arith.constant 0 : i32
    %c0_i32_1 = arith.constant 0 : i32
    return %c0_i32, %c0_i32_0 : i32, i32
  }
  func.func @transform_9(%arg0: i32) -> (i32, i32) {
    %c0_i32 = arith.constant 0 : i32
    %c0_i32_0 = arith.constant 0 : i32
    %c0_i32_1 = arith.constant 0 : i32
    return %c0_i32, %c0_i32_0 : i32, i32
  }
  func.func @transform_10(%arg0: i32) -> (i32, i32) {
    %c0_i32 = arith.constant 0 : i32
    %c0_i32_0 = arith.constant 0 : i32
    %c0_i32_1 = arith.constant 0 : i32
    return %c0_i32, %c0_i32_0 : i32, i32
  }
  func.func @transform_11(%arg0: i32) -> (i32, i32) {
    %c0_i32 = arith.constant 0 : i32
    %c0_i32_0 = arith.constant 0 : i32
    %c0_i32_1 = arith.constant 0 : i32
    return %c0_i32, %c0_i32_0 : i32, i32
  }
  func.func @transform_12(%arg0: i32) -> (i32, i32) {
    %c0_i32 = arith.constant 0 : i32
    %c0_i32_0 = arith.constant 0 : i32
    %c0_i32_1 = arith.constant 0 : i32
    return %c0_i32, %c0_i32_0 : i32, i32
  }
  func.func @transform_13(%arg0: i32) -> (i32, i32) {
    %c0_i32 = arith.constant 0 : i32
    %c0_i32_0 = arith.constant 0 : i32
    %c0_i32_1 = arith.constant 0 : i32
    return %c0_i32, %c0_i32_0 : i32, i32
  }
  func.func @transform_14(%arg0: i32) -> (i32, i32) {
    %c0_i32 = arith.constant 0 : i32
    %c0_i32_0 = arith.constant 0 : i32
    %c0_i32_1 = arith.constant 0 : i32
    return %c0_i32, %c0_i32_0 : i32, i32
  }
  func.func @transform_15(%arg0: i32) -> (i32, i32) {
    %c0_i32 = arith.constant 0 : i32
    %c0_i32_0 = arith.constant 0 : i32
    %c0_i32_1 = arith.constant 0 : i32
    return %c0_i32, %c0_i32_0 : i32, i32
  }
  func.func @transform_16(%arg0: i32) -> (i32, i32) {
    %c0_i32 = arith.constant 0 : i32
    %c0_i32_0 = arith.constant 0 : i32
    %c0_i32_1 = arith.constant 0 : i32
    return %c0_i32, %c0_i32_0 : i32, i32
  }
  func.func @transform_17(%arg0: i32) -> (i32, i32) {
    %c0_i32 = arith.constant 0 : i32
    %c0_i32_0 = arith.constant 0 : i32
    return %arg0, %c0_i32 : i32, i32
  }
}

</mosaic_0001>

<llo_original>
// kernel: tpu_custom_call.1
$region0: #{tpu_custom_call.1}
  #allocation0 [shape = 'u32[]', space=smem, size = 0x4, offset = 0x4, fixed_abs, tag = 'smem constant byte address 0x4 - core index']
  #allocation1 [shape = 'u32[72,128]{1,0:T(1,128)}', space=vmem, size = 0x9000, scoped, tag = 'internal scratch']
  %s0 = inlined_call_operand.vmem [shape: f32[64,32], index: 0, kind: input, shape index: {}]
  %s1 = inlined_call_operand.vmem [shape: bf16[32,32], index: 1, kind: input, shape index: {}]
  %s2 = inlined_call_operand.vmem [shape: f32[1,32], index: 2, kind: input, shape index: {}]
  %s3 = inlined_call_operand.vmem [shape: bf16[32,32], index: 3, kind: input, shape index: {}]
  %s4 = inlined_call_operand.vmem [shape: f32[1,32], index: 4, kind: input, shape index: {}]
  %s5 = inlined_call_operand.vmem [shape: bf16[32,32], index: 5, kind: input, shape index: {}]
  %s6 = inlined_call_operand.vmem [shape: f32[1,32], index: 6, kind: input, shape index: {}]
  %s7 = inlined_call_operand.vmem [shape: bf16[32,32], index: 7, kind: input, shape index: {}]
  %s8 = inlined_call_operand.vmem [shape: f32[1,32], index: 8, kind: input, shape index: {}]
  %s9 = inlined_call_operand.vmem [shape: f32[1,32], index: 9, kind: input, shape index: {}]
  %s10 = inlined_call_operand.vmem [shape: f32[1,32], index: 10, kind: input, shape index: {}]
  %s11 = inlined_call_operand.vmem [shape: bf16[32,128], index: 11, kind: input, shape index: {}]
  %s12 = inlined_call_operand.vmem [shape: f32[1,128], index: 12, kind: input, shape index: {}]
  %s13 = inlined_call_operand.vmem [shape: bf16[128,32], index: 13, kind: input, shape index: {}]
  %s14 = inlined_call_operand.vmem [shape: f32[1,32], index: 14, kind: input, shape index: {}]
  %s15 = inlined_call_operand.vmem [shape: f32[1,32], index: 15, kind: input, shape index: {}]
  %s16 = inlined_call_operand.vmem [shape: f32[1,32], index: 16, kind: input, shape index: {}]
  %s17 = inlined_call_operand.vmem [shape: f32[64,32], index: 17, kind: output, shape index: {}]
  %s18 = sld [smem:[#allocation0]]
  $region101: #{tpu_custom_call.1} parent=0
    _
  %s20 = ssub.s32 1, %s18
  %s21 = scalar_select 0, %s20, %s18
  loop: start=0, step=1, limit=6
  $region2: #{tpu_custom_call.1} parent=0 // loop_pre_header
    _
  $region3: #{tpu_custom_call.1} parent=0 // loop_header
    %s23 = sphi 0, %s27
    %p24 = scmp.ge.s32.totalorder %s23, 6
    %s33 = sphi 0, %s35
    %s36 = sphi 0, %s33
    %s37 = sphi 0, %s36
    %s53 = sphi 0, %s37
    %s57 = sphi 0, %s57
    %s59 = sphi 0, %s57
    %s60 = sphi 0, %s59
    %s74 = sphi 0, %s60
    %s78 = sphi 0, %s78
    %s80 = sphi 0, %s78
    %s81 = sphi 0, %s80
    %s95 = sphi 0, %s81
    %s99 = sphi 0, %s99
    %s101 = sphi 0, %s99
    %s102 = sphi 0, %s101
    %s116 = sphi 0, %s102
    %s120 = sphi 0, %s120
    %s122 = sphi 0, %s120
    %s123 = sphi 0, %s122
    %s137 = sphi 0, %s123
    %s141 = sphi 0, %s141
    %s143 = sphi 0, %s141
    %s144 = sphi 0, %s143
    %s158 = sphi 0, %s144
    %s162 = sphi 0, %s162
    %s164 = sphi 0, %s162
    %s165 = sphi 0, %s164
    %s179 = sphi 0, %s165
    %s183 = sphi 0, %s183
    %s185 = sphi 0, %s183
    %s186 = sphi 0, %s185
    %s200 = sphi 0, %s186
    %s204 = sphi 0, %s204
    %s206 = sphi 0, %s204
    %s207 = sphi 0, %s206
    %s221 = sphi 0, %s207
    %s225 = sphi 0, %s225
    %s227 = sphi 0, %s225
    %s228 = sphi 0, %s227
    %s242 = sphi 0, %s228
    %s246 = sphi 0, %s246
    %s248 = sphi 0, %s246
    %s249 = sphi 0, %s248
    %s263 = sphi 0, %s249
    %s267 = sphi 0, %s267
    %s269 = sphi 0, %s267
    %s270 = sphi 0, %s269
    %s284 = sphi 0, %s270
    %s288 = sphi 0, %s288
    %s290 = sphi 0, %s288
    %s291 = sphi 0, %s290
    %s305 = sphi 0, %s291
    %s309 = sphi 0, %s309
    %s311 = sphi 0, %s309
    %s312 = sphi 0, %s311
    %s326 = sphi 0, %s312
    %s330 = sphi 0, %s330
    %s332 = sphi 0, %s330
    %s333 = sphi 0, %s332
    %s347 = sphi 0, %s333
    %s351 = sphi 0, %s351
    %s353 = sphi 0, %s351
    %s354 = sphi 0, %s353
    %s368 = sphi 0, %s354
    %s372 = sphi 0, %s372
    %s374 = sphi 0, %s372
    %s375 = sphi 0, %s374
    %s389 = sphi 0, %s375
    %s395 = sphi 0, %s397
    %s398 = sphi 0, %s395
    %s399 = sphi 0, %s398
    %s415 = sphi 0, %s399
  $region4: #{tpu_custom_call.1} parent=0 // loop_header_branch
    %26 = sbr.rel (%p24) target = $region8
  $region5: #{tpu_custom_call.1} parent=0 // loop_body
    %s28 = ssub.s32 %s23, 1
    %s29 = ssub.s32 %s23, 2
    %s30 = sadd.s32 %s23, 1
    %s31 = ssub.s32 %s23, %s30
    %p32 = scmp.eq.s32.totalorder %s31, 0
    %s34 = sadd.s32 %s33, 1
    %s35 = scalar_select %p32, %s33, %s34
    %p38 = pneg %p32
    %p39 = scmp.eq.s32.totalorder %s23, 3
    %p40 = por %p38, %p39
    %p41 = scmp.ne.s32.totalorder %s33, %s36
    %p42 = scmp.eq.s32.totalorder %s23, 0
    %p43 = por %p41, %p42
    %p44 = scmp.ne.s32.totalorder %s33, %s36
    %p45 = scmp.eq.s32.totalorder %s28, 3
    %p46 = por %p44, %p45
    %p47 = scmp.ne.s32.totalorder %s36, %s37
    %p48 = scmp.eq.s32.totalorder %s28, 0
    %p49 = por %p47, %p48
    %p50 = scmp.ne.s32.totalorder %s36, %s37
    %p51 = scmp.eq.s32.totalorder %s29, 3
    %p52 = por %p50, %p51
    %p54 = scmp.ne.s32.totalorder %s37, %s53
    %p55 = scmp.eq.s32.totalorder %s29, 0
    %p56 = por %p54, %p55
    %s58 = sadd.s32 %s57, 1
    %p61 = scmp.eq.s32.totalorder %s23, 3
    %p62 = scmp.ne.s32.totalorder %s57, %s59
    %p63 = scmp.eq.s32.totalorder %s23, 0
    %p64 = por %p62, %p63
    %p65 = scmp.ne.s32.totalorder %s57, %s59
    %p66 = scmp.eq.s32.totalorder %s28, 3
    %p67 = por %p65, %p66
    %p68 = scmp.ne.s32.totalorder %s59, %s60
    %p69 = scmp.eq.s32.totalorder %s28, 0
    %p70 = por %p68, %p69
    %p71 = scmp.ne.s32.totalorder %s59, %s60
    %p72 = scmp.eq.s32.totalorder %s29, 3
    %p73 = por %p71, %p72
    %p75 = scmp.ne.s32.totalorder %s60, %s74
    %p76 = scmp.eq.s32.totalorder %s29, 0
    %p77 = por %p75, %p76
    %s79 = sadd.s32 %s78, 1
    %p82 = scmp.eq.s32.totalorder %s23, 3
    %p83 = scmp.ne.s32.totalorder %s78, %s80
    %p84 = scmp.eq.s32.totalorder %s23, 0
    %p85 = por %p83, %p84
    %p86 = scmp.ne.s32.totalorder %s78, %s80
    %p87 = scmp.eq.s32.totalorder %s28, 3
    %p88 = por %p86, %p87
    %p89 = scmp.ne.s32.totalorder %s80, %s81
    %p90 = scmp.eq.s32.totalorder %s28, 0
    %p91 = por %p89, %p90
    %p92 = scmp.ne.s32.totalorder %s80, %s81
    %p93 = scmp.eq.s32.totalorder %s29, 3
    %p94 = por %p92, %p93
    %p96 = scmp.ne.s32.totalorder %s81, %s95
    %p97 = scmp.eq.s32.totalorder %s29, 0
    %p98 = por %p96, %p97
    %s100 = sadd.s32 %s99, 1
    %p103 = scmp.eq.s32.totalorder %s23, 3
    %p104 = scmp.ne.s32.totalorder %s99, %s101
    %p105 = scmp.eq.s32.totalorder %s23, 0
    %p106 = por %p104, %p105
    %p107 = scmp.ne.s32.totalorder %s99, %s101
    %p108 = scmp.eq.s32.totalorder %s28, 3
    %p109 = por %p107, %p108
    %p110 = scmp.ne.s32.totalorder %s101, %s102
    %p111 = scmp.eq.s32.totalorder %s28, 0
    %p112 = por %p110, %p111
    %p113 = scmp.ne.s32.totalorder %s101, %s102
    %p114 = scmp.eq.s32.totalorder %s29, 3
    %p115 = por %p113, %p114
    %p117 = scmp.ne.s32.totalorder %s102, %s116
    %p118 = scmp.eq.s32.totalorder %s29, 0
    %p119 = por %p117, %p118
    %s121 = sadd.s32 %s120, 1
    %p124 = scmp.eq.s32.totalorder %s23, 3
    %p125 = scmp.ne.s32.totalorder %s120, %s122
    %p126 = scmp.eq.s32.totalorder %s23, 0
    %p127 = por %p125, %p126
    %p128 = scmp.ne.s32.totalorder %s120, %s122
    %p129 = scmp.eq.s32.totalorder %s28, 3
    %p130 = por %p128, %p129
    %p131 = scmp.ne.s32.totalorder %s122, %s123
    %p132 = scmp.eq.s32.totalorder %s28, 0
    %p133 = por %p131, %p132
    %p134 = scmp.ne.s32.totalorder %s122, %s123
    %p135 = scmp.eq.s32.totalorder %s29, 3
    %p136 = por %p134, %p135
    %p138 = scmp.ne.s32.totalorder %s123, %s137
    %p139 = scmp.eq.s32.totalorder %s29, 0
    %p140 = por %p138, %p139
    %s142 = sadd.s32 %s141, 1
    %p145 = scmp.eq.s32.totalorder %s23, 3
    %p146 = scmp.ne.s32.totalorder %s141, %s143
    %p147 = scmp.eq.s32.totalorder %s23, 0
    %p148 = por %p146, %p147
    %p149 = scmp.ne.s32.totalorder %s141, %s143
    %p150 = scmp.eq.s32.totalorder %s28, 3
    %p151 = por %p149, %p150
    %p152 = scmp.ne.s32.totalorder %s143, %s144
    %p153 = scmp.eq.s32.totalorder %s28, 0
    %p154 = por %p152, %p153
    %p155 = scmp.ne.s32.totalorder %s143, %s144
    %p156 = scmp.eq.s32.totalorder %s29, 3
    %p157 = por %p155, %p156
    %p159 = scmp.ne.s32.totalorder %s144, %s158
    %p160 = scmp.eq.s32.totalorder %s29, 0
    %p161 = por %p159, %p160
    %s163 = sadd.s32 %s162, 1
    %p166 = scmp.eq.s32.totalorder %s23, 3
    %p167 = scmp.ne.s32.totalorder %s162, %s164
    %p168 = scmp.eq.s32.totalorder %s23, 0
    %p169 = por %p167, %p168
    %p170 = scmp.ne.s32.totalorder %s162, %s164
    %p171 = scmp.eq.s32.totalorder %s28, 3
    %p172 = por %p170, %p171
    %p173 = scmp.ne.s32.totalorder %s164, %s165
    %p174 = scmp.eq.s32.totalorder %s28, 0
    %p175 = por %p173, %p174
    %p176 = scmp.ne.s32.totalorder %s164, %s165
    %p177 = scmp.eq.s32.totalorder %s29, 3
    %p178 = por %p176, %p177
    %p180 = scmp.ne.s32.totalorder %s165, %s179
    %p181 = scmp.eq.s32.totalorder %s29, 0
    %p182 = por %p180, %p181
    %s184 = sadd.s32 %s183, 1
    %p187 = scmp.eq.s32.totalorder %s23, 3
    %p188 = scmp.ne.s32.totalorder %s183, %s185
    %p189 = scmp.eq.s32.totalorder %s23, 0
    %p190 = por %p188, %p189
    %p191 = scmp.ne.s32.totalorder %s183, %s185
    %p192 = scmp.eq.s32.totalorder %s28, 3
    %p193 = por %p191, %p192
    %p194 = scmp.ne.s32.totalorder %s185, %s186
    %p195 = scmp.eq.s32.totalorder %s28, 0
    %p196 = por %p194, %p195
    %p197 = scmp.ne.s32.totalorder %s185, %s186
    %p198 = scmp.eq.s32.totalorder %s29, 3
    %p199 = por %p197, %p198
    %p201 = scmp.ne.s32.totalorder %s186, %s200
    %p202 = scmp.eq.s32.totalorder %s29, 0
    %p203 = por %p201, %p202
    %s205 = sadd.s32 %s204, 1
    %p208 = scmp.eq.s32.totalorder %s23, 3
    %p209 = scmp.ne.s32.totalorder %s204, %s206
    %p210 = scmp.eq.s32.totalorder %s23, 0
    %p211 = por %p209, %p210
    %p212 = scmp.ne.s32.totalorder %s204, %s206
    %p213 = scmp.eq.s32.totalorder %s28, 3
    %p214 = por %p212, %p213
    %p215 = scmp.ne.s32.totalorder %s206, %s207
    %p216 = scmp.eq.s32.totalorder %s28, 0
    %p217 = por %p215, %p216
    %p218 = scmp.ne.s32.totalorder %s206, %s207
    %p219 = scmp.eq.s32.totalorder %s29, 3
    %p220 = por %p218, %p219
    %p222 = scmp.ne.s32.totalorder %s207, %s221
    %p223 = scmp.eq.s32.totalorder %s29, 0
    %p224 = por %p222, %p223
    %s226 = sadd.s32 %s225, 1
    %p229 = scmp.eq.s32.totalorder %s23, 3
    %p230 = scmp.ne.s32.totalorder %s225, %s227
    %p231 = scmp.eq.s32.totalorder %s23, 0
    %p232 = por %p230, %p231
    %p233 = scmp.ne.s32.totalorder %s225, %s227
    %p234 = scmp.eq.s32.totalorder %s28, 3
    %p235 = por %p233, %p234
    %p236 = scmp.ne.s32.totalorder %s227, %s228
    %p237 = scmp.eq.s32.totalorder %s28, 0
    %p238 = por %p236, %p237
    %p239 = scmp.ne.s32.totalorder %s227, %s228
    %p240 = scmp.eq.s32.totalorder %s29, 3
    %p241 = por %p239, %p240
    %p243 = scmp.ne.s32.totalorder %s228, %s242
    %p244 = scmp.eq.s32.totalorder %s29, 0
    %p245 = por %p243, %p244
    %s247 = sadd.s32 %s246, 1
    %p250 = scmp.eq.s32.totalorder %s23, 3
    %p251 = scmp.ne.s32.totalorder %s246, %s248
    %p252 = scmp.eq.s32.totalorder %s23, 0
    %p253 = por %p251, %p252
    %p254 = scmp.ne.s32.totalorder %s246, %s248
    %p255 = scmp.eq.s32.totalorder %s28, 3
    %p256 = por %p254, %p255
    %p257 = scmp.ne.s32.totalorder %s248, %s249
    %p258 = scmp.eq.s32.totalorder %s28, 0
    %p259 = por %p257, %p258
    %p260 = scmp.ne.s32.totalorder %s248, %s249
    %p261 = scmp.eq.s32.totalorder %s29, 3
    %p262 = por %p260, %p261
    %p264 = scmp.ne.s32.totalorder %s249, %s263
    %p265 = scmp.eq.s32.totalorder %s29, 0
    %p266 = por %p264, %p265
    %s268 = sadd.s32 %s267, 1
    %p271 = scmp.eq.s32.totalorder %s23, 3
    %p272 = scmp.ne.s32.totalorder %s267, %s269
    %p273 = scmp.eq.s32.totalorder %s23, 0
    %p274 = por %p272, %p273
    %p275 = scmp.ne.s32.totalorder %s267, %s269
    %p276 = scmp.eq.s32.totalorder %s28, 3
    %p277 = por %p275, %p276
    %p278 = scmp.ne.s32.totalorder %s269, %s270
    %p279 = scmp.eq.s32.totalorder %s28, 0
    %p280 = por %p278, %p279
    %p281 = scmp.ne.s32.totalorder %s269, %s270
    %p282 = scmp.eq.s32.totalorder %s29, 3
    %p283 = por %p281, %p282
    %p285 = scmp.ne.s32.totalorder %s270, %s284
    %p286 = scmp.eq.s32.totalorder %s29, 0
    %p287 = por %p285, %p286
    %s289 = sadd.s32 %s288, 1
    %p292 = scmp.eq.s32.totalorder %s23, 3
    %p293 = scmp.ne.s32.totalorder %s288, %s290
    %p294 = scmp.eq.s32.totalorder %s23, 0
    %p295 = por %p293, %p294
    %p296 = scmp.ne.s32.totalorder %s288, %s290
    %p297 = scmp.eq.s32.totalorder %s28, 3
    %p298 = por %p296, %p297
    %p299 = scmp.ne.s32.totalorder %s290, %s291
    %p300 = scmp.eq.s32.totalorder %s28, 0
    %p301 = por %p299, %p300
    %p302 = scmp.ne.s32.totalorder %s290, %s291
    %p303 = scmp.eq.s32.totalorder %s29, 3
    %p304 = por %p302, %p303
    %p306 = scmp.ne.s32.totalorder %s291, %s305
    %p307 = scmp.eq.s32.totalorder %s29, 0
    %p308 = por %p306, %p307
    %s310 = sadd.s32 %s309, 1
    %p313 = scmp.eq.s32.totalorder %s23, 3
    %p314 = scmp.ne.s32.totalorder %s309, %s311
    %p315 = scmp.eq.s32.totalorder %s23, 0
    %p316 = por %p314, %p315
    %p317 = scmp.ne.s32.totalorder %s309, %s311
    %p318 = scmp.eq.s32.totalorder %s28, 3
    %p319 = por %p317, %p318
    %p320 = scmp.ne.s32.totalorder %s311, %s312
    %p321 = scmp.eq.s32.totalorder %s28, 0
    %p322 = por %p320, %p321
    %p323 = scmp.ne.s32.totalorder %s311, %s312
    %p324 = scmp.eq.s32.totalorder %s29, 3
    %p325 = por %p323, %p324
    %p327 = scmp.ne.s32.totalorder %s312, %s326
    %p328 = scmp.eq.s32.totalorder %s29, 0
    %p329 = por %p327, %p328
    %s331 = sadd.s32 %s330, 1
    %p334 = scmp.eq.s32.totalorder %s23, 3
    %p335 = scmp.ne.s32.totalorder %s330, %s332
    %p336 = scmp.eq.s32.totalorder %s23, 0
    %p337 = por %p335, %p336
    %p338 = scmp.ne.s32.totalorder %s330, %s332
    %p339 = scmp.eq.s32.totalorder %s28, 3
    %p340 = por %p338, %p339
    %p341 = scmp.ne.s32.totalorder %s332, %s333
    %p342 = scmp.eq.s32.totalorder %s28, 0
    %p343 = por %p341, %p342
    %p344 = scmp.ne.s32.totalorder %s332, %s333
    %p345 = scmp.eq.s32.totalorder %s29, 3
    %p346 = por %p344, %p345
    %p348 = scmp.ne.s32.totalorder %s333, %s347
    %p349 = scmp.eq.s32.totalorder %s29, 0
    %p350 = por %p348, %p349
    %s352 = sadd.s32 %s351, 1
    %p355 = scmp.eq.s32.totalorder %s23, 3
    %p356 = scmp.ne.s32.totalorder %s351, %s353
    %p357 = scmp.eq.s32.totalorder %s23, 0
    %p358 = por %p356, %p357
    %p359 = scmp.ne.s32.totalorder %s351, %s353
    %p360 = scmp.eq.s32.totalorder %s28, 3
    %p361 = por %p359, %p360
    %p362 = scmp.ne.s32.totalorder %s353, %s354
    %p363 = scmp.eq.s32.totalorder %s28, 0
    %p364 = por %p362, %p363
    %p365 = scmp.ne.s32.totalorder %s353, %s354
    %p366 = scmp.eq.s32.totalorder %s29, 3
    %p367 = por %p365, %p366
    %p369 = scmp.ne.s32.totalorder %s354, %s368
    %p370 = scmp.eq.s32.totalorder %s29, 0
    %p371 = por %p369, %p370
    %s373 = sadd.s32 %s372, 1
    %p376 = scmp.eq.s32.totalorder %s23, 3
    %p377 = scmp.ne.s32.totalorder %s372, %s374
    %p378 = scmp.eq.s32.totalorder %s23, 0
    %p379 = por %p377, %p378
    %p380 = scmp.ne.s32.totalorder %s372, %s374
    %p381 = scmp.eq.s32.totalorder %s28, 3
    %p382 = por %p380, %p381
    %p383 = scmp.ne.s32.totalorder %s374, %s375
    %p384 = scmp.eq.s32.totalorder %s28, 0
    %p385 = por %p383, %p384
    %p386 = scmp.ne.s32.totalorder %s374, %s375
    %p387 = scmp.eq.s32.totalorder %s29, 3
    %p388 = por %p386, %p387
    %p390 = scmp.ne.s32.totalorder %s375, %s389
    %p391 = scmp.eq.s32.totalorder %s29, 0
    %p392 = por %p390, %p391
    %s393 = ssub.s32 %s23, %s30
    %p394 = scmp.eq.s32.totalorder %s393, 0
    %s396 = sadd.s32 %s395, 1
    %s397 = scalar_select %p394, %s395, %s396
    %p400 = pneg %p394
    %p401 = scmp.eq.s32.totalorder %s23, 3
    %p402 = por %p400, %p401
    %p403 = scmp.ne.s32.totalorder %s395, %s398
    %p404 = scmp.eq.s32.totalorder %s23, 0
    %p405 = por %p403, %p404
    %p406 = scmp.ne.s32.totalorder %s395, %s398
    %p407 = scmp.eq.s32.totalorder %s28, 3
    %p408 = por %p406, %p407
    %p409 = scmp.ne.s32.totalorder %s398, %s399
    %p410 = scmp.eq.s32.totalorder %s28, 0
    %p411 = por %p409, %p410
    %p412 = scmp.ne.s32.totalorder %s398, %s399
    %p413 = scmp.eq.s32.totalorder %s29, 3
    %p414 = por %p412, %p413
    %p416 = scmp.ne.s32.totalorder %s399, %s415
    %p417 = scmp.eq.s32.totalorder %s29, 0
    %p418 = por %p416, %p417
    %p419 = scmp.le.s32.totalorder 1, %s23
    %p420 = scmp.lt.s32.totalorder %s23, 5
    %p421 = pnand %p419, %p420
    %p422 = pneg %p421
    // Predicated region
    $region9: #{tpu_custom_call.1} parent=5 // pred_check
      _
    $region10: #{tpu_custom_call.1} parent=5 // pred_check_branch
      %424 = sbr.rel (%p421) target = $region12
    $region11: #{tpu_custom_call.1} parent=5 // pred_region
      %s425 = ssub.s32 %s23, 1
      // Predicated region
      $region13: #{tpu_custom_call.1} parent=11 // pred_check
        %p426 = pneg %p70
      $region14: #{tpu_custom_call.1} parent=11 // pred_check_branch
        %428 = sbr.rel (%p426) target = $region16
      $region15: #{tpu_custom_call.1} parent=11 // pred_region
        _
      $region16: #{tpu_custom_call.1} parent=11 // pred_fallthru
        _
      // Predicated region
      $region17: #{tpu_custom_call.1} parent=11 // pred_check
        %p429 = pneg %p91
      $region18: #{tpu_custom_call.1} parent=11 // pred_check_branch
        %431 = sbr.rel (%p429) target = $region20
      $region19: #{tpu_custom_call.1} parent=11 // pred_region
        _
      $region20: #{tpu_custom_call.1} parent=11 // pred_fallthru
        _
      // Predicated region
      $region21: #{tpu_custom_call.1} parent=11 // pred_check
        %p432 = pneg %p112
      $region22: #{tpu_custom_call.1} parent=11 // pred_check_branch
        %434 = sbr.rel (%p432) target = $region24
      $region23: #{tpu_custom_call.1} parent=11 // pred_region
        _
      $region24: #{tpu_custom_call.1} parent=11 // pred_fallthru
        _
      // Predicated region
      $region25: #{tpu_custom_call.1} parent=11 // pred_check
        %p435 = pneg %p133
      $region26: #{tpu_custom_call.1} parent=11 // pred_check_branch
        %437 = sbr.rel (%p435) target = $region28
      $region27: #{tpu_custom_call.1} parent=11 // pred_region
        _
      $region28: #{tpu_custom_call.1} parent=11 // pred_fallthru
        _
      // Predicated region
      $region29: #{tpu_custom_call.1} parent=11 // pred_check
        %p438 = pneg %p154
      $region30: #{tpu_custom_call.1} parent=11 // pred_check_branch
        %440 = sbr.rel (%p438) target = $region32
      $region31: #{tpu_custom_call.1} parent=11 // pred_region
        _
      $region32: #{tpu_custom_call.1} parent=11 // pred_fallthru
        _
      // Predicated region
      $region33: #{tpu_custom_call.1} parent=11 // pred_check
        %p441 = pneg %p175
      $region34: #{tpu_custom_call.1} parent=11 // pred_check_branch
        %443 = sbr.rel (%p441) target = $region36
      $region35: #{tpu_custom_call.1} parent=11 // pred_region
        _
      $region36: #{tpu_custom_call.1} parent=11 // pred_fallthru
        _
      // Predicated region
      $region37: #{tpu_custom_call.1} parent=11 // pred_check
        %p444 = pneg %p196
      $region38: #{tpu_custom_call.1} parent=11 // pred_check_branch
        %446 = sbr.rel (%p444) target = $region40
      $region39: #{tpu_custom_call.1} parent=11 // pred_region
        _
      $region40: #{tpu_custom_call.1} parent=11 // pred_fallthru
        _
      // Predicated region
      $region41: #{tpu_custom_call.1} parent=11 // pred_check
        %p447 = pneg %p217
      $region42: #{tpu_custom_call.1} parent=11 // pred_check_branch
        %449 = sbr.rel (%p447) target = $region44
      $region43: #{tpu_custom_call.1} parent=11 // pred_region
        _
      $region44: #{tpu_custom_call.1} parent=11 // pred_fallthru
        _
      // Predicated region
      $region45: #{tpu_custom_call.1} parent=11 // pred_check
        %p450 = pneg %p238
      $region46: #{tpu_custom_call.1} parent=11 // pred_check_branch
        %452 = sbr.rel (%p450) target = $region48
      $region47: #{tpu_custom_call.1} parent=11 // pred_region
        _
      $region48: #{tpu_custom_call.1} parent=11 // pred_fallthru
        _
      // Predicated region
      $region49: #{tpu_custom_call.1} parent=11 // pred_check
        %p453 = pneg %p259
      $region50: #{tpu_custom_call.1} parent=11 // pred_check_branch
        %455 = sbr.rel (%p453) target = $region52
      $region51: #{tpu_custom_call.1} parent=11 // pred_region
        _
      $region52: #{tpu_custom_call.1} parent=11 // pred_fallthru
        _
      // Predicated region
      $region53: #{tpu_custom_call.1} parent=11 // pred_check
        %p456 = pneg %p280
      $region54: #{tpu_custom_call.1} parent=11 // pred_check_branch
        %458 = sbr.rel (%p456) target = $region56
      $region55: #{tpu_custom_call.1} parent=11 // pred_region
        _
      $region56: #{tpu_custom_call.1} parent=11 // pred_fallthru
        _
      // Predicated region
      $region57: #{tpu_custom_call.1} parent=11 // pred_check
        %p459 = pneg %p301
      $region58: #{tpu_custom_call.1} parent=11 // pred_check_branch
        %461 = sbr.rel (%p459) target = $region60
      $region59: #{tpu_custom_call.1} parent=11 // pred_region
        _
      $region60: #{tpu_custom_call.1} parent=11 // pred_fallthru
        _
      // Predicated region
      $region61: #{tpu_custom_call.1} parent=11 // pred_check
        %p462 = pneg %p322
      $region62: #{tpu_custom_call.1} parent=11 // pred_check_branch
        %464 = sbr.rel (%p462) target = $region64
      $region63: #{tpu_custom_call.1} parent=11 // pred_region
        _
      $region64: #{tpu_custom_call.1} parent=11 // pred_fallthru
        _
      // Predicated region
      $region65: #{tpu_custom_call.1} parent=11 // pred_check
        %p465 = pneg %p343
      $region66: #{tpu_custom_call.1} parent=11 // pred_check_branch
        %467 = sbr.rel (%p465) target = $region68
      $region67: #{tpu_custom_call.1} parent=11 // pred_region
        _
      $region68: #{tpu_custom_call.1} parent=11 // pred_fallthru
        _
      // Predicated region
      $region69: #{tpu_custom_call.1} parent=11 // pred_check
        %p468 = pneg %p364
      $region70: #{tpu_custom_call.1} parent=11 // pred_check_branch
        %470 = sbr.rel (%p468) target = $region72
      $region71: #{tpu_custom_call.1} parent=11 // pred_region
        _
      $region72: #{tpu_custom_call.1} parent=11 // pred_fallthru
        _
      // Predicated region
      $region73: #{tpu_custom_call.1} parent=11 // pred_check
        %p471 = pneg %p385
      $region74: #{tpu_custom_call.1} parent=11 // pred_check_branch
        %473 = sbr.rel (%p471) target = $region76
      $region75: #{tpu_custom_call.1} parent=11 // pred_region
        _
      $region76: #{tpu_custom_call.1} parent=11 // pred_fallthru
        _
    $region12: #{tpu_custom_call.1} parent=5 // pred_fallthru
      _
    %p474 = scmp.lt.s32.totalorder %s23, 4
    // Predicated region
    $region77: #{tpu_custom_call.1} parent=5 // pred_check
      %p475 = pneg %p474
    $region78: #{tpu_custom_call.1} parent=5 // pred_check_branch
      %477 = sbr.rel (%p475) target = $region80
    $region79: #{tpu_custom_call.1} parent=5 // pred_region
      // Predicated region
      $region81: #{tpu_custom_call.1} parent=79 // pred_check
        %p478 = pneg %p43
      $region82: #{tpu_custom_call.1} parent=79 // pred_check_branch
        %480 = sbr.rel (%p478) target = $region84
      $region83: #{tpu_custom_call.1} parent=79 // pred_region
        %s481 = smul.u32 2, %s23
        %p482 = scmp.lt.s32.totalorder %s481, 7
        %s483 = scalar_select %p482, %s481, 7
        %s484 = smul.addr %s483, 8
        %s485 = scalar_lea.vmem %s0, %s484
        %s486 = smul.u32 2, %s23
      $region84: #{tpu_custom_call.1} parent=79 // pred_fallthru
        _
    $region80: #{tpu_custom_call.1} parent=5 // pred_fallthru
      _
    %p487 = scmp.le.s32.totalorder 1, %s23
    %p488 = scmp.lt.s32.totalorder %s23, 5
    %p489 = pnand %p487, %p488
    %p490 = pneg %p489
    // Predicated region
    $region85: #{tpu_custom_call.1} parent=5 // pred_check
      _
    $region86: #{tpu_custom_call.1} parent=5 // pred_check_branch
      %492 = sbr.rel (%p489) target = $region88
    $region87: #{tpu_custom_call.1} parent=5 // pred_region
      %s493 = ssub.s32 %s23, 1
      %s494 = smul.u32 2, %s28
      %p495 = scmp.lt.s32.totalorder %s494, 7
      %s496 = scalar_select %p495, %s494, 7
      %s497 = smul.addr %s496, 8
      %s498 = scalar_lea.vmem %s0, %s497
      %p499 = pneg %p49
      %p500 = pneg %p46
      %p501 = pneg %p70
      %p502 = pneg %p67
      %p503 = pneg %p91
      %p504 = pneg %p88
      %p505 = pneg %p112
      %p506 = pneg %p109
      %p507 = pneg %p133
      %p508 = pneg %p130
      %p509 = pneg %p154
      %p510 = pneg %p151
      %p511 = pneg %p175
      %p512 = pneg %p172
      %p513 = pneg %p196
      %p514 = pneg %p193
      %p515 = pneg %p217
      %p516 = pneg %p214
      %p517 = pneg %p238
      %p518 = pneg %p235
      %p519 = pneg %p259
      %p520 = pneg %p256
      %p521 = pneg %p280
      %p522 = pneg %p277
      %p523 = pneg %p301
      %p524 = pneg %p298
      %p525 = pneg %p322
      %p526 = pneg %p319
      %p527 = pneg %p343
      %p528 = pneg %p340
      %p529 = pneg %p364
      %p530 = pneg %p361
      %p531 = pneg %p385
      %p532 = pneg %p382
      %p533 = pneg %p411
      %p534 = pneg %p408
      %s535 = smul.u32 2, %s28
      %p536 = scmp.lt.s32.totalorder %s535, 7
      %s537 = scalar_select %p536, %s535, 7
      %s538 = smul.addr %s537, 8
      %s539 = scalar_lea.vmem %s17, %s538
      %s540 = smul.u32 2, %s28
      %p541 = scmp.lt.s32.totalorder %s540, 7
      %s542 = scalar_select %p541, %s540, 7
      %s543 = smul.addr %s542, 8
      %s544 = scalar_lea.vmem %s0, %s543
      %s545 = smul.u32 2, %s28
      %s546 = smul.u32 2, %s28
      %p547 = scmp.lt.s32.totalorder %s546, 7
      %s548 = scalar_select %p547, %s546, 7
      %s549 = smul.addr %s548, 8
      %s550 = scalar_lea.vmem %s17, %s549
      %s551 = smul.u32 2, %s28
      %v553 = vld [vmem:[%s544] sm:$0xff]
      %v554 = vld [vmem:[%s544 + $0x8] sm:$0xff]
      %v555 = vpack.c.bf16 %v554, %v553
      %v556 = vlaneseq
      %v557 = vshrl.u32 %v556, 7
      %v558 = vadd.s32 %v557, 8
      %v559 = vcvt.s32.f32 %v557
      %v560 = vcvt.s32.f32 %v558
      %v561 = vadd.f32 %v559, 0.5
      %v562 = vadd.f32 %v560, 0.5
      %v563 = vmul.f32 %v561, 0.25
      %v564 = vmul.f32 %v562, 0.25
      %v565 = vlaneseq
      %v566 = vand.u32 %v565, 127
      %v567 = vcvt.s32.f32 %v566
      %v568 = vadd.f32 %v567, 0.5
      %v569 = vmul.f32 %v568, 0.25
      %v570 = vfloor.f32 %v563
      %v571 = vfloor.f32 %v564
      %v572 = vfloor.f32 %v569
      %vm573 = vcmp.eq.f32.partialorder %v570, %v572
      %vm574 = vcmp.eq.f32.partialorder %v571, %v572
      %v575 = vsel %vm573, 0.0, -1e+30
      %v576 = vsel %vm574, 0.0, -1e+30
      %v577 = vld [vmem:[%s1] sm:$0xf]
      %v578 = vld [vmem:[%s1 + $0x4] sm:$0xf]
      %v579 = vld [vmem:[%s1 + $0x8] sm:$0xf]
      %v580 = vld [vmem:[%s1 + $0xc] sm:$0xf]
      %v581 = vld [vmem:[%s2] sm:$0x1]
      %v583 = vperm.slane %v581, 0
      %v589 = vunpack.c.l.b16 %v577
      %v590 = vunpack.c.l.b16 %v578
      %v591 = vunpack.c.l.b16 %v579
      %v592 = vunpack.c.l.b16 %v580
      %v593 = vpack.c.b16 %v590, %v589
      %v594 = vpack.c.b16 %v592, %v591
      %vm597 = vcmask 261120
      %v599 = vsel %vm597, %v555, 0
      %601 = vmatpush.bf16.msra.mxu0 0
      %602 = vmatpush.bf16.msra.mxu0 0
      %603 = vmatpush.bf16.msra.mxu0 0
      %604 = vmatpush.bf16.msra.mxu0 0
      %605 = vmatpush.bf16.msra.mxu0 0
      %606 = vmatpush.bf16.msra.mxu0 0
      %607 = vmatpush.bf16.msra.mxu0 %v594
      %608 = vmatpush.bf16.msra.mxu0 %v593
      %609 = vmatmul.bf16.gmra.mxu0 %v599
      %v610 = vpop.f32.mrf.mxu0
      %v611 = vadd.f32 %v583, %v610
      %v612 = vpop.f32.mrf.mxu0
      %v613 = vadd.f32 %v583, %v612
      %614 = vdwg.mxu0
      %v615 = vld [vmem:[%s3] sm:$0xf]
      %v616 = vld [vmem:[%s3 + $0x4] sm:$0xf]
      %v617 = vld [vmem:[%s3 + $0x8] sm:$0xf]
      %v618 = vld [vmem:[%s3 + $0xc] sm:$0xf]
      %v619 = vld [vmem:[%s4] sm:$0x1]
      %v621 = vperm.slane %v619, 0
      %v627 = vunpack.c.l.b16 %v615
      %v628 = vunpack.c.l.b16 %v616
      %v629 = vunpack.c.l.b16 %v617
      %v630 = vunpack.c.l.b16 %v618
      %v631 = vpack.c.b16 %v628, %v627
      %v632 = vpack.c.b16 %v630, %v629
      %635 = vmatpush.bf16.msra.mxu0 0
      %636 = vmatpush.bf16.msra.mxu0 0
      %637 = vmatpush.bf16.msra.mxu0 0
      %638 = vmatpush.bf16.msra.mxu0 0
      %639 = vmatpush.bf16.msra.mxu0 0
      %640 = vmatpush.bf16.msra.mxu0 0
      %641 = vmatpush.bf16.msra.mxu0 %v632
      %642 = vmatpush.bf16.msra.mxu0 %v631
      %643 = vmatmul.bf16.gmra.mxu0 %v599
      %v644 = vpop.f32.mrf.mxu0
      %v645 = vadd.f32 %v621, %v644
      %v646 = vpop.f32.mrf.mxu0
      %v647 = vadd.f32 %v621, %v646
      %648 = vdwg.mxu0
      %v649 = vld [vmem:[%s5] sm:$0xf]
      %v650 = vld [vmem:[%s5 + $0x4] sm:$0xf]
      %v651 = vld [vmem:[%s5 + $0x8] sm:$0xf]
      %v652 = vld [vmem:[%s5 + $0xc] sm:$0xf]
      %v653 = vld [vmem:[%s6] sm:$0x1]
      %v655 = vperm.slane %v653, 0
      %v661 = vunpack.c.l.b16 %v649
      %v662 = vunpack.c.l.b16 %v650
      %v663 = vunpack.c.l.b16 %v651
      %v664 = vunpack.c.l.b16 %v652
      %v665 = vpack.c.b16 %v662, %v661
      %v666 = vpack.c.b16 %v664, %v663
      %669 = vmatpush.bf16.msra.mxu0 0
      %670 = vmatpush.bf16.msra.mxu0 0
      %671 = vmatpush.bf16.msra.mxu0 0
      %672 = vmatpush.bf16.msra.mxu0 0
      %673 = vmatpush.bf16.msra.mxu0 0
      %674 = vmatpush.bf16.msra.mxu0 0
      %675 = vmatpush.bf16.msra.mxu0 %v666
      %676 = vmatpush.bf16.msra.mxu0 %v665
      %677 = vmatmul.bf16.gmra.mxu0 %v599
      %v678 = vpop.f32.mrf.mxu0
      %v679 = vadd.f32 %v655, %v678
      %v680 = vpop.f32.mrf.mxu0
      %v681 = vadd.f32 %v655, %v680
      %682 = vdwg.mxu0
      %v683 = vpack.c.bf16 %v611, %v611
      %v684 = vpack.c.bf16 %v613, %v613
      %v685 = vpack.c.bf16 %v645, %v645
      %v686 = vpack.c.bf16 %v647, %v647
      %v687 = vpack.c.bf16 %v679, %v679
      %v688 = vpack.c.bf16 %v681, %v681
      %v691 = vunpack.c.l.b16 %v683
      %v692 = vunpack.c.l.b16 %v684
      %v693 = vpack.c.b16 %v692, %v691
      %v696 = vunpack.c.l.b16 %v685
      %v697 = vunpack.c.l.b16 %v686
      %v698 = vpack.c.b16 %v697, %v696
      %vm699 = vcmask 64512
      %v701 = vsel %vm699, %v693, 0
      %v704 = vsel %vm699, %v698, 0
      %706 = vmatpush.bf16.xpose.msra.mxu0 0
      %707 = vmatpush.bf16.xpose.msra.mxu0 0
      %708 = vmatpush.bf16.xpose.msra.mxu0 0
      %709 = vmatpush.bf16.xpose.msra.mxu0 0
      %710 = vmatpush.bf16.xpose.msra.mxu0 0
      %711 = vmatpush.bf16.xpose.msra.mxu0 0
      %712 = vmatpush.bf16.xpose.msra.mxu0 0
      %713 = vmatpush.bf16.xpose.msra.mxu0 %v704
      %714 = vmatmul.bf16.gmra.mxu0 %v701
      %v715 = vpop.f32.mrf.mxu0
      %v716 = vadd.f32 %v575, %v715
      %v717 = vpop.f32.mrf.mxu0
      %v718 = vadd.f32 %v576, %v717
      %719 = vdwg.mxu0
      %vm720 = vcmask 130048
      %v721 = vsel %vm720, %v716, -inf
      %722 = vmax.xlane.f32.xlu0 %v721
      %v723 = vpop.xlane.xlu0 %722
      %v724 = vsel %vm720, %v718, -inf
      %725 = vmax.xlane.f32.xlu0 %v724
      %v726 = vpop.xlane.xlu0 %725
      %v727 = vsub.f32 %v716, %v723
      %v728 = vsub.f32 %v718, %v726
      %v729 = vmul.f32 %v727, 1.442695
      %v730 = vpow.pop %v729
      %v731 = vmul.f32 %v728, 1.442695
      %v732 = vpow.pop %v731
      %v733 = vsel %vm720, %v730, 0.0
      %734 = vadd.xlane.f32.xlu0 %v733
      %v735 = vpop.xlane.xlu0 %734
      %v736 = vsel %vm720, %v732, 0.0
      %737 = vadd.xlane.f32.xlu0 %v736
      %v738 = vpop.xlane.xlu0 %737
      %v739 = vrcp.pop %v735
      %v740 = vrcp.pop %v738
      %v741 = vmul.f32 %v730, %v739
      %v742 = vmul.f32 %v732, %v740
      %v743 = vpack.c.bf16 %v742, %v741
      %v746 = vunpack.c.l.b16 %v687
      %v747 = vunpack.c.l.b16 %v688
      %v748 = vpack.c.b16 %v747, %v746
      %v751 = vsel %vm720, %v743, 0
      %753 = vmatpush.bf16.msra.mxu0 0
      %754 = vmatpush.bf16.msra.mxu0 0
      %755 = vmatpush.bf16.msra.mxu0 0
      %756 = vmatpush.bf16.msra.mxu0 0
      %757 = vmatpush.bf16.msra.mxu0 0
      %758 = vmatpush.bf16.msra.mxu0 0
      %759 = vmatpush.bf16.msra.mxu0 0
      %760 = vmatpush.bf16.msra.mxu0 %v748
      %761 = vmatmul.bf16.gmra.mxu0 %v751
      %v762 = vpop.f32.mrf.mxu0
      %v763 = vadd.f32 0.0, %v762
      %v764 = vpop.f32.mrf.mxu0
      %v765 = vadd.f32 0.0, %v764
      %766 = vdwg.mxu0
      %767 = vrot.lane.b32.xlu0 %v693, 120
      %v768 = vpop.permute.xlu0 %767
      %769 = vrot.lane.b32.xlu0 %v698, 120
      %v770 = vpop.permute.xlu0 %769
      %v772 = vsel %vm699, %v768, 0
      %v775 = vsel %vm699, %v770, 0
      %777 = vmatpush.bf16.xpose.msra.mxu0 0
      %778 = vmatpush.bf16.xpose.msra.mxu0 0
      %779 = vmatpush.bf16.xpose.msra.mxu0 0
      %780 = vmatpush.bf16.xpose.msra.mxu0 0
      %781 = vmatpush.bf16.xpose.msra.mxu0 0
      %782 = vmatpush.bf16.xpose.msra.mxu0 0
      %783 = vmatpush.bf16.xpose.msra.mxu0 0
      %784 = vmatpush.bf16.xpose.msra.mxu0 %v775
      %785 = vmatmul.bf16.gmra.mxu0 %v772
      %v786 = vpop.f32.mrf.mxu0
      %v787 = vadd.f32 %v575, %v786
      %v788 = vpop.f32.mrf.mxu0
      %v789 = vadd.f32 %v576, %v788
      %790 = vdwg.mxu0
      %v791 = vsel %vm720, %v787, -inf
      %792 = vmax.xlane.f32.xlu0 %v791
      %v793 = vpop.xlane.xlu0 %792
      %v794 = vsel %vm720, %v789, -inf
      %795 = vmax.xlane.f32.xlu0 %v794
      %v796 = vpop.xlane.xlu0 %795
      %v797 = vsub.f32 %v787, %v793
      %v798 = vsub.f32 %v789, %v796
      %v799 = vmul.f32 %v797, 1.442695
      %v800 = vpow.pop %v799
      %v801 = vmul.f32 %v798, 1.442695
      %v802 = vpow.pop %v801
      %v803 = vsel %vm720, %v800, 0.0
      %804 = vadd.xlane.f32.xlu0 %v803
      %v805 = vpop.xlane.xlu0 %804
      %v806 = vsel %vm720, %v802, 0.0
      %807 = vadd.xlane.f32.xlu0 %v806
      %v808 = vpop.xlane.xlu0 %807
      %v809 = vrcp.pop %v805
      %v810 = vrcp.pop %v808
      %v811 = vmul.f32 %v800, %v809
      %v812 = vmul.f32 %v802, %v810
      %v813 = vpack.c.bf16 %v812, %v811
      %814 = vrot.lane.b32.xlu0 %v748, 120
      %v815 = vpop.permute.xlu0 %814
      %v818 = vsel %vm720, %v813, 0
      %820 = vmatpush.bf16.msra.mxu0 0
      %821 = vmatpush.bf16.msra.mxu0 0
      %822 = vmatpush.bf16.msra.mxu0 0
      %823 = vmatpush.bf16.msra.mxu0 0
      %824 = vmatpush.bf16.msra.mxu0 0
      %825 = vmatpush.bf16.msra.mxu0 0
      %826 = vmatpush.bf16.msra.mxu0 0
      %827 = vmatpush.bf16.msra.mxu0 %v815
      %828 = vmatmul.bf16.gmra.mxu0 %v818
      %v829 = vpop.f32.mrf.mxu0
      %v830 = vadd.f32 0.0, %v829
      %v831 = vpop.f32.mrf.mxu0
      %v832 = vadd.f32 0.0, %v831
      %833 = vdwg.mxu0
      %834 = vrot.lane.b32.xlu0 %v693, 112
      %v835 = vpop.permute.xlu0 %834
      %836 = vrot.lane.b32.xlu0 %v698, 112
      %v837 = vpop.permute.xlu0 %836
      %v839 = vsel %vm699, %v835, 0
      %v842 = vsel %vm699, %v837, 0
      %844 = vmatpush.bf16.xpose.msra.mxu0 0
      %845 = vmatpush.bf16.xpose.msra.mxu0 0
      %846 = vmatpush.bf16.xpose.msra.mxu0 0
      %847 = vmatpush.bf16.xpose.msra.mxu0 0
      %848 = vmatpush.bf16.xpose.msra.mxu0 0
      %849 = vmatpush.bf16.xpose.msra.mxu0 0
      %850 = vmatpush.bf16.xpose.msra.mxu0 0
      %851 = vmatpush.bf16.xpose.msra.mxu0 %v842
      %852 = vmatmul.bf16.gmra.mxu0 %v839
      %v853 = vpop.f32.mrf.mxu0
      %v854 = vadd.f32 %v575, %v853
      %v855 = vpop.f32.mrf.mxu0
      %v856 = vadd.f32 %v576, %v855
      %857 = vdwg.mxu0
      %v858 = vsel %vm720, %v854, -inf
      %859 = vmax.xlane.f32.xlu0 %v858
      %v860 = vpop.xlane.xlu0 %859
      %v861 = vsel %vm720, %v856, -inf
      %862 = vmax.xlane.f32.xlu0 %v861
      %v863 = vpop.xlane.xlu0 %862
      %v864 = vsub.f32 %v854, %v860
      %v865 = vsub.f32 %v856, %v863
      %v866 = vmul.f32 %v864, 1.442695
      %v867 = vpow.pop %v866
      %v868 = vmul.f32 %v865, 1.442695
      %v869 = vpow.pop %v868
      %v870 = vsel %vm720, %v867, 0.0
      %871 = vadd.xlane.f32.xlu0 %v870
      %v872 = vpop.xlane.xlu0 %871
      %v873 = vsel %vm720, %v869, 0.0
      %874 = vadd.xlane.f32.xlu0 %v873
      %v875 = vpop.xlane.xlu0 %874
      %v876 = vrcp.pop %v872
      %v877 = vrcp.pop %v875
      %v878 = vmul.f32 %v867, %v876
      %v879 = vmul.f32 %v869, %v877
      %v880 = vpack.c.bf16 %v879, %v878
      %881 = vrot.lane.b32.xlu0 %v748, 112
      %v882 = vpop.permute.xlu0 %881
      %v885 = vsel %vm720, %v880, 0
      %887 = vmatpush.bf16.msra.mxu0 0
      %888 = vmatpush.bf16.msra.mxu0 0
      %889 = vmatpush.bf16.msra.mxu0 0
      %890 = vmatpush.bf16.msra.mxu0 0
      %891 = vmatpush.bf16.msra.mxu0 0
      %892 = vmatpush.bf16.msra.mxu0 0
      %893 = vmatpush.bf16.msra.mxu0 0
      %894 = vmatpush.bf16.msra.mxu0 %v882
      %895 = vmatmul.bf16.gmra.mxu0 %v885
      %v896 = vpop.f32.mrf.mxu0
      %v897 = vadd.f32 0.0, %v896
      %v898 = vpop.f32.mrf.mxu0
      %v899 = vadd.f32 0.0, %v898
      %900 = vdwg.mxu0
      %901 = vrot.lane.b32.xlu0 %v693, 104
      %v902 = vpop.permute.xlu0 %901
      %903 = vrot.lane.b32.xlu0 %v698, 104
      %v904 = vpop.permute.xlu0 %903
      %v906 = vsel %vm699, %v902, 0
      %v909 = vsel %vm699, %v904, 0
      %911 = vmatpush.bf16.xpose.msra.mxu0 0
      %912 = vmatpush.bf16.xpose.msra.mxu0 0
      %913 = vmatpush.bf16.xpose.msra.mxu0 0
      %914 = vmatpush.bf16.xpose.msra.mxu0 0
      %915 = vmatpush.bf16.xpose.msra.mxu0 0
      %916 = vmatpush.bf16.xpose.msra.mxu0 0
      %917 = vmatpush.bf16.xpose.msra.mxu0 0
      %918 = vmatpush.bf16.xpose.msra.mxu0 %v909
      %919 = vmatmul.bf16.gmra.mxu0 %v906
      %v920 = vpop.f32.mrf.mxu0
      %v921 = vadd.f32 %v575, %v920
      %v922 = vpop.f32.mrf.mxu0
      %v923 = vadd.f32 %v576, %v922
      %924 = vdwg.mxu0
      %v925 = vsel %vm720, %v921, -inf
      %926 = vmax.xlane.f32.xlu0 %v925
      %v927 = vpop.xlane.xlu0 %926
      %v928 = vsel %vm720, %v923, -inf
      %929 = vmax.xlane.f32.xlu0 %v928
      %v930 = vpop.xlane.xlu0 %929
      %v931 = vsub.f32 %v921, %v927
      %v932 = vsub.f32 %v923, %v930
      %v933 = vmul.f32 %v931, 1.442695
      %v934 = vpow.pop %v933
      %v935 = vmul.f32 %v932, 1.442695
      %v936 = vpow.pop %v935
      %v937 = vsel %vm720, %v934, 0.0
      %938 = vadd.xlane.f32.xlu0 %v937
      %v939 = vpop.xlane.xlu0 %938
      %v940 = vsel %vm720, %v936, 0.0
      %941 = vadd.xlane.f32.xlu0 %v940
      %v942 = vpop.xlane.xlu0 %941
      %v943 = vrcp.pop %v939
      %v944 = vrcp.pop %v942
      %v945 = vmul.f32 %v934, %v943
      %v946 = vmul.f32 %v936, %v944
      %v947 = vpack.c.bf16 %v946, %v945
      %948 = vrot.lane.b32.xlu0 %v748, 104
      %v949 = vpop.permute.xlu0 %948
      %v952 = vsel %vm720, %v947, 0
      %954 = vmatpush.bf16.msra.mxu0 0
      %955 = vmatpush.bf16.msra.mxu0 0
      %956 = vmatpush.bf16.msra.mxu0 0
      %957 = vmatpush.bf16.msra.mxu0 0
      %958 = vmatpush.bf16.msra.mxu0 0
      %959 = vmatpush.bf16.msra.mxu0 0
      %960 = vmatpush.bf16.msra.mxu0 0
      %961 = vmatpush.bf16.msra.mxu0 %v949
      %962 = vmatmul.bf16.gmra.mxu0 %v952
      %v963 = vpop.f32.mrf.mxu0
      %v964 = vadd.f32 0.0, %v963
      %v965 = vpop.f32.mrf.mxu0
      %v966 = vadd.f32 0.0, %v965
      %967 = vdwg.mxu0
      %970 = vrot.lane.b32.xlu0 %v830, 8
      %v971 = vpop.permute.xlu0 %970
      %972 = vrot.lane.b32.xlu0 %v832, 8
      %v973 = vpop.permute.xlu0 %972
      %978 = vrot.lane.b32.xlu0 %v897, 16
      %v979 = vpop.permute.xlu0 %978
      %980 = vrot.lane.b32.xlu0 %v899, 16
      %v981 = vpop.permute.xlu0 %980
      %986 = vrot.lane.b32.xlu0 %v964, 24
      %v987 = vpop.permute.xlu0 %986
      %988 = vrot.lane.b32.xlu0 %v966, 24
      %v989 = vpop.permute.xlu0 %988
      %v992 = vsel %vm699, %v763, %v971
      %v993 = vsel %vm699, %v765, %v973
      %v994 = vsel %vm720, %v992, %v979
      %v995 = vsel %vm720, %v993, %v981
      %vm996 = vcmask 195584
      %v997 = vsel %vm996, %v994, %v987
      %v998 = vsel %vm996, %v995, %v989
      %v999 = vpack.c.bf16 %v998, %v997
      %v1000 = vld [vmem:[%s7] sm:$0xf]
      %v1001 = vld [vmem:[%s7 + $0x4] sm:$0xf]
      %v1002 = vld [vmem:[%s7 + $0x8] sm:$0xf]
      %v1003 = vld [vmem:[%s7 + $0xc] sm:$0xf]
      %v1004 = vld [vmem:[%s8] sm:$0x1]
      %v1006 = vperm.slane %v1004, 0
      %v1012 = vunpack.c.l.b16 %v1000
      %v1013 = vunpack.c.l.b16 %v1001
      %v1014 = vunpack.c.l.b16 %v1002
      %v1015 = vunpack.c.l.b16 %v1003
      %v1016 = vpack.c.b16 %v1013, %v1012
      %v1017 = vpack.c.b16 %v1015, %v1014
      %v1021 = vsel %vm597, %v999, 0
      %1023 = vmatpush.bf16.msra.mxu0 0
      %1024 = vmatpush.bf16.msra.mxu0 0
      %1025 = vmatpush.bf16.msra.mxu0 0
      %1026 = vmatpush.bf16.msra.mxu0 0
      %1027 = vmatpush.bf16.msra.mxu0 0
      %1028 = vmatpush.bf16.msra.mxu0 0
      %1029 = vmatpush.bf16.msra.mxu0 %v1017
      %1030 = vmatpush.bf16.msra.mxu0 %v1016
      %1031 = vmatmul.bf16.gmra.mxu0 %v1021
      %v1032 = vpop.f32.mrf.mxu0
      %v1033 = vadd.f32 %v1006, %v1032
      %v1034 = vpop.f32.mrf.mxu0
      %v1035 = vadd.f32 %v1006, %v1034
      %1036 = vdwg.mxu0
      %v1037 = vadd.f32 %v553, %v1033
      %v1038 = vadd.f32 %v554, %v1035
      %v1039 = vsel %vm597, %v1037, 0.0
      %1040 = vadd.xlane.f32.xlu0 %v1039
      %v1041 = vpop.xlane.xlu0 %1040
      %v1042 = vsel %vm597, %v1038, 0.0
      %1043 = vadd.xlane.f32.xlu0 %v1042
      %v1044 = vpop.xlane.xlu0 %1043
      %v1045 = vrcp.pop 32.0
      %v1046 = vmul.f32 32.0, %v1045
      %v1047 = vsub.f32 1.0, %v1046
      %v1048 = vmul.f32 %v1045, %v1047
      %v1049 = vadd.f32 %v1045, %v1048
      %vm1050 = vweird.f32 %v1045
      %v1051 = vsel %vm1050, %v1045, %v1049
      %v1052 = vmul.f32 %v1041, %v1051
      %v1053 = vmul.f32 %v1044, %v1051
      %v1054 = vsub.f32 %v1037, %v1052
      %v1055 = vsub.f32 %v1038, %v1053
      %v1056 = vmul.f32 %v1054, %v1054
      %v1057 = vmul.f32 %v1055, %v1055
      %v1058 = vsel %vm597, %v1056, 0.0
      %1059 = vadd.xlane.f32.xlu0 %v1058
      %v1060 = vpop.xlane.xlu0 %1059
      %v1061 = vsel %vm597, %v1057, 0.0
      %1062 = vadd.xlane.f32.xlu0 %v1061
      %v1063 = vpop.xlane.xlu0 %1062
      %v1064 = vmul.f32 %v1060, %v1051
      %v1065 = vmul.f32 %v1063, %v1051
      %v1066 = vadd.f32 %v1064, 1e-05
      %v1067 = vadd.f32 %v1065, 1e-05
      %v1068 = vrsqrt.pop %v1066
      %v1069 = vmul.f32 %v1068, %v1066
      %v1070 = vmul.f32 %v1069, %v1068
      %v1071 = vmul.f32 0.5, %v1070
      %v1072 = vsub.f32 1.5, %v1071
      %v1073 = vmul.f32 %v1068, %v1072
      %vm1074 = vweird.f32 %v1066
      %vm1075 = vweird.f32 %v1068
      %vm1076 = vmor %vm1074, %vm1075
      %v1077 = vsel %vm1076, %v1068, %v1073
      %v1078 = vrsqrt.pop %v1067
      %v1079 = vmul.f32 %v1078, %v1067
      %v1080 = vmul.f32 %v1079, %v1078
      %v1081 = vmul.f32 0.5, %v1080
      %v1082 = vsub.f32 1.5, %v1081
      %v1083 = vmul.f32 %v1078, %v1082
      %vm1084 = vweird.f32 %v1067
      %vm1085 = vweird.f32 %v1078
      %vm1086 = vmor %vm1084, %vm1085
      %v1087 = vsel %vm1086, %v1078, %v1083
      %v1088 = vmul.f32 %v1054, %v1077
      %v1089 = vmul.f32 %v1055, %v1087
      %v1090 = vld [vmem:[%s9] sm:$0x1]
      %v1092 = vperm.slane %v1090, 0
      %v1094 = vmul.f32 %v1088, %v1092
      %v1095 = vmul.f32 %v1089, %v1092
      %v1096 = vld [vmem:[%s10] sm:$0x1]
      %v1098 = vperm.slane %v1096, 0
      %v1100 = vadd.f32 %v1094, %v1098
      %v1101 = vadd.f32 %v1095, %v1098
      %v1102 = vpack.c.bf16 %v1101, %v1100
      %v1103 = vld [vmem:[%s11] sm:$0xf]
      %v1104 = vld [vmem:[%s11 + $0x4] sm:$0xf]
      %v1105 = vld [vmem:[%s11 + $0x8] sm:$0xf]
      %v1106 = vld [vmem:[%s11 + $0xc] sm:$0xf]
      %v1107 = vld [vmem:[%s12] sm:$0x1]
      %v1109 = vperm.slane %v1107, 0
      %v1115 = vunpack.c.l.b16 %v1103
      %v1116 = vunpack.c.l.b16 %v1104
      %v1117 = vunpack.c.l.b16 %v1105
      %v1118 = vunpack.c.l.b16 %v1106
      %v1119 = vpack.c.b16 %v1116, %v1115
      %v1120 = vpack.c.b16 %v1118, %v1117
      %v1124 = vsel %vm597, %v1102, 0
      %1126 = vmatpush.bf16.msra.mxu0 0
      %1127 = vmatpush.bf16.msra.mxu0 0
      %1128 = vmatpush.bf16.msra.mxu0 0
      %1129 = vmatpush.bf16.msra.mxu0 0
      %1130 = vmatpush.bf16.msra.mxu0 0
      %1131 = vmatpush.bf16.msra.mxu0 0
      %1132 = vmatpush.bf16.msra.mxu0 %v1120
      %1133 = vmatpush.bf16.msra.mxu0 %v1119
      %1134 = vmatmul.bf16.gmra.mxu0 %v1124
      %v1135 = vpop.f32.mrf.mxu0
      %v1136 = vadd.f32 %v1109, %v1135
      %v1137 = vpop.f32.mrf.mxu0
      %v1138 = vadd.f32 %v1109, %v1137
      %1139 = vdwg.mxu0
      %v1140 = vmax.f32 %v1136, 0.0
      %v1141 = vmax.f32 %v1138, 0.0
      %v1142 = vpack.c.bf16 %v1141, %v1140
      %v1143 = vld [vmem:[%s13] sm:$0xf]
      %v1144 = vld [vmem:[%s13 + $0x4] sm:$0xf]
      %v1145 = vld [vmem:[%s13 + $0x8] sm:$0xf]
      %v1146 = vld [vmem:[%s13 + $0xc] sm:$0xf]
      %v1147 = vld [vmem:[%s13 + $0x10] sm:$0xf]
      %v1148 = vld [vmem:[%s13 + $0x14] sm:$0xf]
      %v1149 = vld [vmem:[%s13 + $0x18] sm:$0xf]
      %v1150 = vld [vmem:[%s13 + $0x1c] sm:$0xf]
      %v1151 = vld [vmem:[%s13 + $0x20] sm:$0xf]
      %v1152 = vld [vmem:[%s13 + $0x24] sm:$0xf]
      %v1153 = vld [vmem:[%s13 + $0x28] sm:$0xf]
      %v1154 = vld [vmem:[%s13 + $0x2c] sm:$0xf]
      %v1155 = vld [vmem:[%s13 + $0x30] sm:$0xf]
      %v1156 = vld [vmem:[%s13 + $0x34] sm:$0xf]
      %v1157 = vld [vmem:[%s13 + $0x38] sm:$0xf]
      %v1158 = vld [vmem:[%s13 + $0x3c] sm:$0xf]
      %v1159 = vld [vmem:[%s14] sm:$0x1]
      %v1161 = vperm.slane %v1159, 0
      %v1179 = vunpack.c.l.b16 %v1143
      %v1180 = vunpack.c.l.b16 %v1144
      %v1181 = vunpack.c.l.b16 %v1145
      %v1182 = vunpack.c.l.b16 %v1146
      %v1183 = vunpack.c.l.b16 %v1147
      %v1184 = vunpack.c.l.b16 %v1148
      %v1185 = vunpack.c.l.b16 %v1149
      %v1186 = vunpack.c.l.b16 %v1150
      %v1187 = vunpack.c.l.b16 %v1151
      %v1188 = vunpack.c.l.b16 %v1152
      %v1189 = vunpack.c.l.b16 %v1153
      %v1190 = vunpack.c.l.b16 %v1154
      %v1191 = vunpack.c.l.b16 %v1155
      %v1192 = vunpack.c.l.b16 %v1156
      %v1193 = vunpack.c.l.b16 %v1157
      %v1194 = vunpack.c.l.b16 %v1158
      %v1195 = vpack.c.b16 %v1180, %v1179
      %v1196 = vpack.c.b16 %v1182, %v1181
      %v1197 = vpack.c.b16 %v1184, %v1183
      %v1198 = vpack.c.b16 %v1186, %v1185
      %v1199 = vpack.c.b16 %v1188, %v1187
      %v1200 = vpack.c.b16 %v1190, %v1189
      %v1201 = vpack.c.b16 %v1192, %v1191
      %v1202 = vpack.c.b16 %v1194, %v1193
      %1211 = vmatpush.bf16.msra.mxu0 %v1202
      %1212 = vmatpush.bf16.msra.mxu0 %v1201
      %1213 = vmatpush.bf16.msra.mxu0 %v1200
      %1214 = vmatpush.bf16.msra.mxu0 %v1199
      %1215 = vmatpush.bf16.msra.mxu0 %v1198
      %1216 = vmatpush.bf16.msra.mxu0 %v1197
      %1217 = vmatpush.bf16.msra.mxu0 %v1196
      %1218 = vmatpush.bf16.msra.mxu0 %v1195
      %1219 = vmatmul.bf16.gmra.mxu0 %v1142
      %v1220 = vpop.f32.mrf.mxu0
      %v1221 = vadd.f32 %v1161, %v1220
      %v1222 = vpop.f32.mrf.mxu0
      %v1223 = vadd.f32 %v1161, %v1222
      %1224 = vdwg.mxu0
      %v1225 = vadd.f32 %v1100, %v1221
      %v1226 = vadd.f32 %v1101, %v1223
      %v1227 = vsel %vm597, %v1225, 0.0
      %1228 = vadd.xlane.f32.xlu0 %v1227
      %v1229 = vpop.xlane.xlu0 %1228
      %v1230 = vsel %vm597, %v1226, 0.0
      %1231 = vadd.xlane.f32.xlu0 %v1230
      %v1232 = vpop.xlane.xlu0 %1231
      %v1233 = vmul.f32 %v1229, %v1051
      %v1234 = vmul.f32 %v1232, %v1051
      %v1235 = vsub.f32 %v1225, %v1233
      %v1236 = vsub.f32 %v1226, %v1234
      %v1237 = vmul.f32 %v1235, %v1235
      %v1238 = vmul.f32 %v1236, %v1236
      %v1239 = vsel %vm597, %v1237, 0.0
      %1240 = vadd.xlane.f32.xlu0 %v1239
      %v1241 = vpop.xlane.xlu0 %1240
      %v1242 = vsel %vm597, %v1238, 0.0
      %1243 = vadd.xlane.f32.xlu0 %v1242
      %v1244 = vpop.xlane.xlu0 %1243
      %v1245 = vmul.f32 %v1241, %v1051
      %v1246 = vmul.f32 %v1244, %v1051
      %v1247 = vadd.f32 %v1245, 1e-05
      %v1248 = vadd.f32 %v1246, 1e-05
      %v1249 = vrsqrt.pop %v1247
      %v1250 = vmul.f32 %v1249, %v1247
      %v1251 = vmul.f32 %v1250, %v1249
      %v1252 = vmul.f32 0.5, %v1251
      %v1253 = vsub.f32 1.5, %v1252
      %v1254 = vmul.f32 %v1249, %v1253
      %vm1255 = vweird.f32 %v1247
      %vm1256 = vweird.f32 %v1249
      %vm1257 = vmor %vm1255, %vm1256
      %v1258 = vsel %vm1257, %v1249, %v1254
      %v1259 = vrsqrt.pop %v1248
      %v1260 = vmul.f32 %v1259, %v1248
      %v1261 = vmul.f32 %v1260, %v1259
      %v1262 = vmul.f32 0.5, %v1261
      %v1263 = vsub.f32 1.5, %v1262
      %v1264 = vmul.f32 %v1259, %v1263
      %vm1265 = vweird.f32 %v1248
      %vm1266 = vweird.f32 %v1259
      %vm1267 = vmor %vm1265, %vm1266
      %v1268 = vsel %vm1267, %v1259, %v1264
      %v1269 = vmul.f32 %v1235, %v1258
      %v1270 = vmul.f32 %v1236, %v1268
      %v1271 = vld [vmem:[%s15] sm:$0x1]
      %v1273 = vperm.slane %v1271, 0
      %v1275 = vmul.f32 %v1269, %v1273
      %v1276 = vmul.f32 %v1270, %v1273
      %v1277 = vld [vmem:[%s16] sm:$0x1]
      %v1279 = vperm.slane %v1277, 0
      %v1281 = vadd.f32 %v1275, %v1279
      %v1282 = vadd.f32 %v1276, %v1279
      %1283 = vst.msk [vmem:[%s550] sm:$0xff] %vm597, %v1281
      %1284 = vst.msk [vmem:[%s550 + $0x8] sm:$0xff] %vm597, %v1282
      %s1285 = smul.u32 2, %s28
      %p1286 = scmp.lt.s32.totalorder %s1285, 7
      %s1287 = scalar_select %p1286, %s1285, 7
      %s1288 = smul.addr %s1287, 8
      %s1289 = scalar_lea.vmem %s17, %s1288
      // Predicated region
      $region89: #{tpu_custom_call.1} parent=87 // pred_check
        %p1290 = pneg %p408
      $region90: #{tpu_custom_call.1} parent=87 // pred_check_branch
        %1292 = sbr.rel (%p1290) target = $region92
      $region91: #{tpu_custom_call.1} parent=87 // pred_region
        %s1293 = smul.u32 2, %s28
      $region92: #{tpu_custom_call.1} parent=87 // pred_fallthru
        _
    $region88: #{tpu_custom_call.1} parent=5 // pred_fallthru
      _
    %p1294 = scmp.le.s32.totalorder 2, %s23
    // Predicated region
    $region93: #{tpu_custom_call.1} parent=5 // pred_check
      %p1295 = pneg %p1294
    $region94: #{tpu_custom_call.1} parent=5 // pred_check_branch
      %1297 = sbr.rel (%p1295) target = $region96
    $region95: #{tpu_custom_call.1} parent=5 // pred_region
      %s1298 = ssub.s32 %s23, 2
      // Predicated region
      $region97: #{tpu_custom_call.1} parent=95 // pred_check
        %p1299 = pneg %p414
      $region98: #{tpu_custom_call.1} parent=95 // pred_check_branch
        %1301 = sbr.rel (%p1299) target = $region100
      $region99: #{tpu_custom_call.1} parent=95 // pred_region
        %s1302 = smul.u32 2, %s29
        %p1303 = scmp.lt.s32.totalorder %s1302, 7
        %s1304 = scalar_select %p1303, %s1302, 7
        %s1305 = smul.addr %s1304, 8
        %s1306 = scalar_lea.vmem %s17, %s1305
      $region100: #{tpu_custom_call.1} parent=95 // pred_fallthru
        _
    $region96: #{tpu_custom_call.1} parent=5 // pred_fallthru
      _
  $region6: #{tpu_custom_call.1} parent=0 // loop_footer
    %s27 = sadd.s32 1, %s23
  $region7: #{tpu_custom_call.1} parent=0 // loop_footer_branch
    %22 = sbr.rel target = $region3
  $region8: #{tpu_custom_call.1} parent=0 // loop_exit
    _

// kernel: tpu_custom_call.1
$region0: #{tpu_custom_call.1}
  #allocation0 [shape = 'u32[]', space=smem, size = 0x4, offset = 0x4, fixed_abs, tag = 'smem constant byte address 0x4 - core index']
  #allocation1 [shape = 'u32[72,128]{1,0:T(1,128)}', space=vmem, size = 0x9000, scoped, tag = 'internal scratch']
  %s0 = inlined_call_operand.vmem [shape: f32[64,32], index: 0, kind: input, shape index: {}]
  %s1 = inlined_call_operand.vmem [shape: bf16[32,32], index: 1, kind: input, shape index: {}]
  %s2 = inlined_call_operand.vmem [shape: f32[1,32], index: 2, kind: input, shape index: {}]
  %s3 = inlined_call_operand.vmem [shape: bf16[32,32], index: 3, kind: input, shape index: {}]
  %s4 = inlined_call_operand.vmem [shape: f32[1,32], index: 4, kind: input, shape index: {}]
  %s5 = inlined_call_operand.vmem [shape: bf16[32,32], index: 5, kind: input, shape index: {}]
  %s6 = inlined_call_operand.vmem [shape: f32[1,32], index: 6, kind: input, shape index: {}]
  %s7 = inlined_call_operand.vmem [shape: bf16[32,32], index: 7, kind: input, shape index: {}]
  %s8 = inlined_call_operand.vmem [shape: f32[1,32], index: 8, kind: input, shape index: {}]
  %s9 = inlined_call_operand.vmem [shape: f32[1,32], index: 9, kind: input, shape index: {}]
  %s10 = inlined_call_operand.vmem [shape: f32[1,32], index: 10, kind: input, shape index: {}]
  %s11 = inlined_call_operand.vmem [shape: bf16[32,128], index: 11, kind: input, shape index: {}]
  %s12 = inlined_call_operand.vmem [shape: f32[1,128], index: 12, kind: input, shape index: {}]
  %s13 = inlined_call_operand.vmem [shape: bf16[128,32], index: 13, kind: input, shape index: {}]
  %s14 = inlined_call_operand.vmem [shape: f32[1,32], index: 14, kind: input, shape index: {}]
  %s15 = inlined_call_operand.vmem [shape: f32[1,32], index: 15, kind: input, shape index: {}]
  %s16 = inlined_call_operand.vmem [shape: f32[1,32], index: 16, kind: input, shape index: {}]
  %s17 = inlined_call_operand.vmem [shape: f32[64,32], index: 17, kind: output, shape index: {}]
  %s18 = sld [smem:[#allocation0]]
  $region101: #{tpu_custom_call.1} parent=0
    _
  %s20 = ssub.s32 1, %s18
  %s21 = scalar_select 0, %s20, %s18
  loop: start=0, step=1, limit=6
  $region2: #{tpu_custom_call.1} parent=0 // loop_pre_header
    _
  $region3: #{tpu_custom_call.1} parent=0 // loop_header
    %s23 = sphi 0, %s27
    %p24 = scmp.ge.s32.totalorder %s23, 6
    %s33 = sphi 0, %s35
    %s36 = sphi 0, %s33
    %s37 = sphi 0, %s36
    %s53 = sphi 0, %s37
    %s57 = sphi 0, %s57
    %s59 = sphi 0, %s57
    %s60 = sphi 0, %s59
    %s74 = sphi 0, %s60
    %s78 = sphi 0, %s78
    %s80 = sphi 0, %s78
    %s81 = sphi 0, %s80
    %s95 = sphi 0, %s81
    %s99 = sphi 0, %s99
    %s101 = sphi 0, %s99
    %s102 = sphi 0, %s101
    %s116 = sphi 0, %s102
    %s120 = sphi 0, %s120
    %s122 = sphi 0, %s120
    %s123 = sphi 0, %s122
    %s137 = sphi 0, %s123
    %s141 = sphi 0, %s141
    %s143 = sphi 0, %s141
    %s144 = sphi 0, %s143
    %s158 = sphi 0, %s144
    %s162 = sphi 0, %s162
    %s164 = sphi 0, %s162
    %s165 = sphi 0, %s164
    %s179 = sphi 0, %s165
    %s183 = sphi 0, %s183
    %s185 = sphi 0, %s183
    %s186 = sphi 0, %s185
    %s200 = sphi 0, %s186
    %s204 = sphi 0, %s204
    %s206 = sphi 0, %s204
    %s207 = sphi 0, %s206
    %s221 = sphi 0, %s207
    %s225 = sphi 0, %s225
    %s227 = sphi 0, %s225
    %s228 = sphi 0, %s227
    %s242 = sphi 0, %s228
    %s246 = sphi 0, %s246
    %s248 = sphi 0, %s246
    %s249 = sphi 0, %s248
    %s263 = sphi 0, %s249
    %s267 = sphi 0, %s267
    %s269 = sphi 0, %s267
    %s270 = sphi 0, %s269
    %s284 = sphi 0, %s270
    %s288 = sphi 0, %s288
    %s290 = sphi 0, %s288
    %s291 = sphi 0, %s290
    %s305 = sphi 0, %s291
    %s309 = sphi 0, %s309
    %s311 = sphi 0, %s309
    %s312 = sphi 0, %s311
    %s326 = sphi 0, %s312
    %s330 = sphi 0, %s330
    %s332 = sphi 0, %s330
    %s333 = sphi 0, %s332
    %s347 = sphi 0, %s333
    %s351 = sphi 0, %s351
    %s353 = sphi 0, %s351
    %s354 = sphi 0, %s353
    %s368 = sphi 0, %s354
    %s372 = sphi 0, %s372
    %s374 = sphi 0, %s372
    %s375 = sphi 0, %s374
    %s389 = sphi 0, %s375
    %s395 = sphi 0, %s397
    %s398 = sphi 0, %s395
    %s399 = sphi 0, %s398
    %s415 = sphi 0, %s399
  $region4: #{tpu_custom_call.1} parent=0 // loop_header_branch
    %26 = sbr.rel (%p24) target = $region8
  $region5: #{tpu_custom_call.1} parent=0 // loop_body
    %s28 = ssub.s32 %s23, 1
    %s29 = ssub.s32 %s23, 2
    %s30 = sadd.s32 %s23, 1
    %s31 = ssub.s32 %s23, %s30
    %p32 = scmp.eq.s32.totalorder %s31, 0
    %s34 = sadd.s32 %s33, 1
    %s35 = scalar_select %p32, %s33, %s34
    %p38 = pneg %p32
    %p39 = scmp.eq.s32.totalorder %s23, 3
    %p40 = por %p38, %p39
    %p41 = scmp.ne.s32.totalorder %s33, %s36
    %p42 = scmp.eq.s32.totalorder %s23, 0
    %p43 = por %p41, %p42
    %p44 = scmp.ne.s32.totalorder %s33, %s36
    %p45 = scmp.eq.s32.totalorder %s28, 3
    %p46 = por %p44, %p45
    %p47 = scmp.ne.s32.totalorder %s36, %s37
    %p48 = scmp.eq.s32.totalorder %s28, 0
    %p49 = por %p47, %p48
    %p50 = scmp.ne.s32.totalorder %s36, %s37
    %p51 = scmp.eq.s32.totalorder %s29, 3
    %p52 = por %p50, %p51
    %p54 = scmp.ne.s32.totalorder %s37, %s53
    %p55 = scmp.eq.s32.totalorder %s29, 0
    %p56 = por %p54, %p55
    %s58 = sadd.s32 %s57, 1
    %p61 = scmp.eq.s32.totalorder %s23, 3
    %p62 = scmp.ne.s32.totalorder %s57, %s59
    %p63 = scmp.eq.s32.totalorder %s23, 0
    %p64 = por %p62, %p63
    %p65 = scmp.ne.s32.totalorder %s57, %s59
    %p66 = scmp.eq.s32.totalorder %s28, 3
    %p67 = por %p65, %p66
    %p68 = scmp.ne.s32.totalorder %s59, %s60
    %p69 = scmp.eq.s32.totalorder %s28, 0
    %p70 = por %p68, %p69
    %p71 = scmp.ne.s32.totalorder %s59, %s60
    %p72 = scmp.eq.s32.totalorder %s29, 3
    %p73 = por %p71, %p72
    %p75 = scmp.ne.s32.totalorder %s60, %s74
    %p76 = scmp.eq.s32.totalorder %s29, 0
    %p77 = por %p75, %p76
    %s79 = sadd.s32 %s78, 1
    %p82 = scmp.eq.s32.totalorder %s23, 3
    %p83 = scmp.ne.s32.totalorder %s78, %s80
    %p84 = scmp.eq.s32.totalorder %s23, 0
    %p85 = por %p83, %p84
    %p86 = scmp.ne.s32.totalorder %s78, %s80
    %p87 = scmp.eq.s32.totalorder %s28, 3
    %p88 = por %p86, %p87
    %p89 = scmp.ne.s32.totalorder %s80, %s81
    %p90 = scmp.eq.s32.totalorder %s28, 0
    %p91 = por %p89, %p90
    %p92 = scmp.ne.s32.totalorder %s80, %s81
    %p93 = scmp.eq.s32.totalorder %s29, 3
    %p94 = por %p92, %p93
    %p96 = scmp.ne.s32.totalorder %s81, %s95
    %p97 = scmp.eq.s32.totalorder %s29, 0
    %p98 = por %p96, %p97
    %s100 = sadd.s32 %s99, 1
    %p103 = scmp.eq.s32.totalorder %s23, 3
    %p104 = scmp.ne.s32.totalorder %s99, %s101
    %p105 = scmp.eq.s32.totalorder %s23, 0
    %p106 = por %p104, %p105
    %p107 = scmp.ne.s32.totalorder %s99, %s101
    %p108 = scmp.eq.s32.totalorder %s28, 3
    %p109 = por %p107, %p108
    %p110 = scmp.ne.s32.totalorder %s101, %s102
    %p111 = scmp.eq.s32.totalorder %s28, 0
    %p112 = por %p110, %p111
    %p113 = scmp.ne.s32.totalorder %s101, %s102
    %p114 = scmp.eq.s32.totalorder %s29, 3
    %p115 = por %p113, %p114
    %p117 = scmp.ne.s32.totalorder %s102, %s116
    %p118 = scmp.eq.s32.totalorder %s29, 0
    %p119 = por %p117, %p118
    %s121 = sadd.s32 %s120, 1
    %p124 = scmp.eq.s32.totalorder %s23, 3
    %p125 = scmp.ne.s32.totalorder %s120, %s122
    %p126 = scmp.eq.s32.totalorder %s23, 0
    %p127 = por %p125, %p126
    %p128 = scmp.ne.s32.totalorder %s120, %s122
    %p129 = scmp.eq.s32.totalorder %s28, 3
    %p130 = por %p128, %p129
    %p131 = scmp.ne.s32.totalorder %s122, %s123
    %p132 = scmp.eq.s32.totalorder %s28, 0
    %p133 = por %p131, %p132
    %p134 = scmp.ne.s32.totalorder %s122, %s123
    %p135 = scmp.eq.s32.totalorder %s29, 3
    %p136 = por %p134, %p135
    %p138 = scmp.ne.s32.totalorder %s123, %s137
    %p139 = scmp.eq.s32.totalorder %s29, 0
    %p140 = por %p138, %p139
    %s142 = sadd.s32 %s141, 1
    %p145 = scmp.eq.s32.totalorder %s23, 3
    %p146 = scmp.ne.s32.totalorder %s141, %s143
    %p147 = scmp.eq.s32.totalorder %s23, 0
    %p148 = por %p146, %p147
    %p149 = scmp.ne.s32.totalorder %s141, %s143
    %p150 = scmp.eq.s32.totalorder %s28, 3
    %p151 = por %p149, %p150
    %p152 = scmp.ne.s32.totalorder %s143, %s144
    %p153 = scmp.eq.s32.totalorder %s28, 0
    %p154 = por %p152, %p153
    %p155 = scmp.ne.s32.totalorder %s143, %s144
    %p156 = scmp.eq.s32.totalorder %s29, 3
    %p157 = por %p155, %p156
    %p159 = scmp.ne.s32.totalorder %s144, %s158
    %p160 = scmp.eq.s32.totalorder %s29, 0
    %p161 = por %p159, %p160
    %s163 = sadd.s32 %s162, 1
    %p166 = scmp.eq.s32.totalorder %s23, 3
    %p167 = scmp.ne.s32.totalorder %s162, %s164
    %p168 = scmp.eq.s32.totalorder %s23, 0
    %p169 = por %p167, %p168
    %p170 = scmp.ne.s32.totalorder %s162, %s164
    %p171 = scmp.eq.s32.totalorder %s28, 3
    %p172 = por %p170, %p171
    %p173 = scmp.ne.s32.totalorder %s164, %s165
    %p174 = scmp.eq.s32.totalorder %s28, 0
    %p175 = por %p173, %p174
    %p176 = scmp.ne.s32.totalorder %s164, %s165
    %p177 = scmp.eq.s32.totalorder %s29, 3
    %p178 = por %p176, %p177
    %p180 = scmp.ne.s32.totalorder %s165, %s179
    %p181 = scmp.eq.s32.totalorder %s29, 0
    %p182 = por %p180, %p181
    %s184 = sadd.s32 %s183, 1
    %p187 = scmp.eq.s32.totalorder %s23, 3
    %p188 = scmp.ne.s32.totalorder %s183, %s185
    %p189 = scmp.eq.s32.totalorder %s23, 0
    %p190 = por %p188, %p189
    %p191 = scmp.ne.s32.totalorder %s183, %s185
    %p192 = scmp.eq.s32.totalorder %s28, 3
    %p193 = por %p191, %p192
    %p194 = scmp.ne.s32.totalorder %s185, %s186
    %p195 = scmp.eq.s32.totalorder %s28, 0
    %p196 = por %p194, %p195
    %p197 = scmp.ne.s32.totalorder %s185, %s186
    %p198 = scmp.eq.s32.totalorder %s29, 3
    %p199 = por %p197, %p198
    %p201 = scmp.ne.s32.totalorder %s186, %s200
    %p202 = scmp.eq.s32.totalorder %s29, 0
    %p203 = por %p201, %p202
    %s205 = sadd.s32 %s204, 1
    %p208 = scmp.eq.s32.totalorder %s23, 3
    %p209 = scmp.ne.s32.totalorder %s204, %s206
    %p210 = scmp.eq.s32.totalorder %s23, 0
    %p211 = por %p209, %p210
    %p212 = scmp.ne.s32.totalorder %s204, %s206
    %p213 = scmp.eq.s32.totalorder %s28, 3
    %p214 = por %p212, %p213
    %p215 = scmp.ne.s32.totalorder %s206, %s207
    %p216 = scmp.eq.s32.totalorder %s28, 0
    %p217 = por %p215, %p216
    %p218 = scmp.ne.s32.totalorder %s206, %s207
    %p219 = scmp.eq.s32.totalorder %s29, 3
    %p220 = por %p218, %p219
    %p222 = scmp.ne.s32.totalorder %s207, %s221
    %p223 = scmp.eq.s32.totalorder %s29, 0
    %p224 = por %p222, %p223
    %s226 = sadd.s32 %s225, 1
    %p229 = scmp.eq.s32.totalorder %s23, 3
    %p230 = scmp.ne.s32.totalorder %s225, %s227
    %p231 = scmp.eq.s32.totalorder %s23, 0
    %p232 = por %p230, %p231
    %p233 = scmp.ne.s32.totalorder %s225, %s227
    %p234 = scmp.eq.s32.totalorder %s28, 3
    %p235 = por %p233, %p234
    %p236 = scmp.ne.s32.totalorder %s227, %s228
    %p237 = scmp.eq.s32.totalorder %s28, 0
    %p238 = por %p236, %p237
    %p239 = scmp.ne.s32.totalorder %s227, %s228
    %p240 = scmp.eq.s32.totalorder %s29, 3
    %p241 = por %p239, %p240
    %p243 = scmp.ne.s32.totalorder %s228, %s242
    %p244 = scmp.eq.s32.totalorder %s29, 0
    %p245 = por %p243, %p244
    %s247 = sadd.s32 %s246, 1
    %p250 = scmp.eq.s32.totalorder %s23, 3
    %p251 = scmp.ne.s32.totalorder %s246, %s248
    %p252 = scmp.eq.s32.totalorder %s23, 0
    %p253 = por %p251, %p252
    %p254 = scmp.ne.s32.totalorder %s246, %s248
    %p255 = scmp.eq.s32.totalorder %s28, 3
    %p256 = por %p254, %p255
    %p257 = scmp.ne.s32.totalorder %s248, %s249
    %p258 = scmp.eq.s32.totalorder %s28, 0
    %p259 = por %p257, %p258
    %p260 = scmp.ne.s32.totalorder %s248, %s249
    %p261 = scmp.eq.s32.totalorder %s29, 3
    %p262 = por %p260, %p261
    %p264 = scmp.ne.s32.totalorder %s249, %s263
    %p265 = scmp.eq.s32.totalorder %s29, 0
    %p266 = por %p264, %p265
    %s268 = sadd.s32 %s267, 1
    %p271 = scmp.eq.s32.totalorder %s23, 3
    %p272 = scmp.ne.s32.totalorder %s267, %s269
    %p273 = scmp.eq.s32.totalorder %s23, 0
    %p274 = por %p272, %p273
    %p275 = scmp.ne.s32.totalorder %s267, %s269
    %p276 = scmp.eq.s32.totalorder %s28, 3
    %p277 = por %p275, %p276
    %p278 = scmp.ne.s32.totalorder %s269, %s270
    %p279 = scmp.eq.s32.totalorder %s28, 0
    %p280 = por %p278, %p279
    %p281 = scmp.ne.s32.totalorder %s269, %s270
    %p282 = scmp.eq.s32.totalorder %s29, 3
    %p283 = por %p281, %p282
    %p285 = scmp.ne.s32.totalorder %s270, %s284
    %p286 = scmp.eq.s32.totalorder %s29, 0
    %p287 = por %p285, %p286
    %s289 = sadd.s32 %s288, 1
    %p292 = scmp.eq.s32.totalorder %s23, 3
    %p293 = scmp.ne.s32.totalorder %s288, %s290
    %p294 = scmp.eq.s32.totalorder %s23, 0
    %p295 = por %p293, %p294
    %p296 = scmp.ne.s32.totalorder %s288, %s290
    %p297 = scmp.eq.s32.totalorder %s28, 3
    %p298 = por %p296, %p297
    %p299 = scmp.ne.s32.totalorder %s290, %s291
    %p300 = scmp.eq.s32.totalorder %s28, 0
    %p301 = por %p299, %p300
    %p302 = scmp.ne.s32.totalorder %s290, %s291
    %p303 = scmp.eq.s32.totalorder %s29, 3
    %p304 = por %p302, %p303
    %p306 = scmp.ne.s32.totalorder %s291, %s305
    %p307 = scmp.eq.s32.totalorder %s29, 0
    %p308 = por %p306, %p307
    %s310 = sadd.s32 %s309, 1
    %p313 = scmp.eq.s32.totalorder %s23, 3
    %p314 = scmp.ne.s32.totalorder %s309, %s311
    %p315 = scmp.eq.s32.totalorder %s23, 0
    %p316 = por %p314, %p315
    %p317 = scmp.ne.s32.totalorder %s309, %s311
    %p318 = scmp.eq.s32.totalorder %s28, 3
    %p319 = por %p317, %p318
    %p320 = scmp.ne.s32.totalorder %s311, %s312
    %p321 = scmp.eq.s32.totalorder %s28, 0
    %p322 = por %p320, %p321
    %p323 = scmp.ne.s32.totalorder %s311, %s312
    %p324 = scmp.eq.s32.totalorder %s29, 3
    %p325 = por %p323, %p324
    %p327 = scmp.ne.s32.totalorder %s312, %s326
    %p328 = scmp.eq.s32.totalorder %s29, 0
    %p329 = por %p327, %p328
    %s331 = sadd.s32 %s330, 1
    %p334 = scmp.eq.s32.totalorder %s23, 3
    %p335 = scmp.ne.s32.totalorder %s330, %s332
    %p336 = scmp.eq.s32.totalorder %s23, 0
    %p337 = por %p335, %p336
    %p338 = scmp.ne.s32.totalorder %s330, %s332
    %p339 = scmp.eq.s32.totalorder %s28, 3
    %p340 = por %p338, %p339
    %p341 = scmp.ne.s32.totalorder %s332, %s333
    %p342 = scmp.eq.s32.totalorder %s28, 0
    %p343 = por %p341, %p342
    %p344 = scmp.ne.s32.totalorder %s332, %s333
    %p345 = scmp.eq.s32.totalorder %s29, 3
    %p346 = por %p344, %p345
    %p348 = scmp.ne.s32.totalorder %s333, %s347
    %p349 = scmp.eq.s32.totalorder %s29, 0
    %p350 = por %p348, %p349
    %s352 = sadd.s32 %s351, 1
    %p355 = scmp.eq.s32.totalorder %s23, 3
    %p356 = scmp.ne.s32.totalorder %s351, %s353
    %p357 = scmp.eq.s32.totalorder %s23, 0
    %p358 = por %p356, %p357
    %p359 = scmp.ne.s32.totalorder %s351, %s353
    %p360 = scmp.eq.s32.totalorder %s28, 3
    %p361 = por %p359, %p360
    %p362 = scmp.ne.s32.totalorder %s353, %s354
    %p363 = scmp.eq.s32.totalorder %s28, 0
    %p364 = por %p362, %p363
    %p365 = scmp.ne.s32.totalorder %s353, %s354
    %p366 = scmp.eq.s32.totalorder %s29, 3
    %p367 = por %p365, %p366
    %p369 = scmp.ne.s32.totalorder %s354, %s368
    %p370 = scmp.eq.s32.totalorder %s29, 0
    %p371 = por %p369, %p370
    %s373 = sadd.s32 %s372, 1
    %p376 = scmp.eq.s32.totalorder %s23, 3
    %p377 = scmp.ne.s32.totalorder %s372, %s374
    %p378 = scmp.eq.s32.totalorder %s23, 0
    %p379 = por %p377, %p378
    %p380 = scmp.ne.s32.totalorder %s372, %s374
    %p381 = scmp.eq.s32.totalorder %s28, 3
    %p382 = por %p380, %p381
    %p383 = scmp.ne.s32.totalorder %s374, %s375
    %p384 = scmp.eq.s32.totalorder %s28, 0
    %p385 = por %p383, %p384
    %p386 = scmp.ne.s32.totalorder %s374, %s375
    %p387 = scmp.eq.s32.totalorder %s29, 3
    %p388 = por %p386, %p387
    %p390 = scmp.ne.s32.totalorder %s375, %s389
    %p391 = scmp.eq.s32.totalorder %s29, 0
    %p392 = por %p390, %p391
    %s393 = ssub.s32 %s23, %s30
    %p394 = scmp.eq.s32.totalorder %s393, 0
    %s396 = sadd.s32 %s395, 1
    %s397 = scalar_select %p394, %s395, %s396
    %p400 = pneg %p394
    %p401 = scmp.eq.s32.totalorder %s23, 3
    %p402 = por %p400, %p401
    %p403 = scmp.ne.s32.totalorder %s395, %s398
    %p404 = scmp.eq.s32.totalorder %s23, 0
    %p405 = por %p403, %p404
    %p406 = scmp.ne.s32.totalorder %s395, %s398
    %p407 = scmp.eq.s32.totalorder %s28, 3
    %p408 = por %p406, %p407
    %p409 = scmp.ne.s32.totalorder %s398, %s399
    %p410 = scmp.eq.s32.totalorder %s28, 0
    %p411 = por %p409, %p410
    %p412 = scmp.ne.s32.totalorder %s398, %s399
    %p413 = scmp.eq.s32.totalorder %s29, 3
    %p414 = por %p412, %p413
    %p416 = scmp.ne.s32.totalorder %s399, %s415
    %p417 = scmp.eq.s32.totalorder %s29, 0
    %p418 = por %p416, %p417
    %p419 = scmp.le.s32.totalorder 1, %s23
    %p420 = scmp.lt.s32.totalorder %s23, 5
    %p421 = pnand %p419, %p420
    %p422 = pneg %p421
    // Predicated region
    $region9: #{tpu_custom_call.1} parent=5 // pred_check
      _
    $region10: #{tpu_custom_call.1} parent=5 // pred_check_branch
      %424 = sbr.rel (%p421) target = $region12
    $region11: #{tpu_custom_call.1} parent=5 // pred_region
      %s425 = ssub.s32 %s23, 1
      // Predicated region
      $region13: #{tpu_custom_call.1} parent=11 // pred_check
        %p426 = pneg %p70
      $region14: #{tpu_custom_call.1} parent=11 // pred_check_branch
        %428 = sbr.rel (%p426) target = $region16
      $region15: #{tpu_custom_call.1} parent=11 // pred_region
        _
      $region16: #{tpu_custom_call.1} parent=11 // pred_fallthru
        _
      // Predicated region
      $region17: #{tpu_custom_call.1} parent=11 // pred_check
        %p429 = pneg %p91
      $region18: #{tpu_custom_call.1} parent=11 // pred_check_branch
        %431 = sbr.rel (%p429) target = $region20
      $region19: #{tpu_custom_call.1} parent=11 // pred_region
        _
      $region20: #{tpu_custom_call.1} parent=11 // pred_fallthru
        _
      // Predicated region
      $region21: #{tpu_custom_call.1} parent=11 // pred_check
        %p432 = pneg %p112
      $region22: #{tpu_custom_call.1} parent=11 // pred_check_branch
        %434 = sbr.rel (%p432) target = $region24
      $region23: #{tpu_custom_call.1} parent=11 // pred_region
        _
      $region24: #{tpu_custom_call.1} parent=11 // pred_fallthru
        _
      // Predicated region
      $region25: #{tpu_custom_call.1} parent=11 // pred_check
        %p435 = pneg %p133
      $region26: #{tpu_custom_call.1} parent=11 // pred_check_branch
        %437 = sbr.rel (%p435) target = $region28
      $region27: #{tpu_custom_call.1} parent=11 // pred_region
        _
      $region28: #{tpu_custom_call.1} parent=11 // pred_fallthru
        _
      // Predicated region
      $region29: #{tpu_custom_call.1} parent=11 // pred_check
        %p438 = pneg %p154
      $region30: #{tpu_custom_call.1} parent=11 // pred_check_branch
        %440 = sbr.rel (%p438) target = $region32
      $region31: #{tpu_custom_call.1} parent=11 // pred_region
        _
      $region32: #{tpu_custom_call.1} parent=11 // pred_fallthru
        _
      // Predicated region
      $region33: #{tpu_custom_call.1} parent=11 // pred_check
        %p441 = pneg %p175
      $region34: #{tpu_custom_call.1} parent=11 // pred_check_branch
        %443 = sbr.rel (%p441) target = $region36
      $region35: #{tpu_custom_call.1} parent=11 // pred_region
        _
      $region36: #{tpu_custom_call.1} parent=11 // pred_fallthru
        _
      // Predicated region
      $region37: #{tpu_custom_call.1} parent=11 // pred_check
        %p444 = pneg %p196
      $region38: #{tpu_custom_call.1} parent=11 // pred_check_branch
        %446 = sbr.rel (%p444) target = $region40
      $region39: #{tpu_custom_call.1} parent=11 // pred_region
        _
      $region40: #{tpu_custom_call.1} parent=11 // pred_fallthru
        _
      // Predicated region
      $region41: #{tpu_custom_call.1} parent=11 // pred_check
        %p447 = pneg %p217
      $region42: #{tpu_custom_call.1} parent=11 // pred_check_branch
        %449 = sbr.rel (%p447) target = $region44
      $region43: #{tpu_custom_call.1} parent=11 // pred_region
        _
      $region44: #{tpu_custom_call.1} parent=11 // pred_fallthru
        _
      // Predicated region
      $region45: #{tpu_custom_call.1} parent=11 // pred_check
        %p450 = pneg %p238
      $region46: #{tpu_custom_call.1} parent=11 // pred_check_branch
        %452 = sbr.rel (%p450) target = $region48
      $region47: #{tpu_custom_call.1} parent=11 // pred_region
        _
      $region48: #{tpu_custom_call.1} parent=11 // pred_fallthru
        _
      // Predicated region
      $region49: #{tpu_custom_call.1} parent=11 // pred_check
        %p453 = pneg %p259
      $region50: #{tpu_custom_call.1} parent=11 // pred_check_branch
        %455 = sbr.rel (%p453) target = $region52
      $region51: #{tpu_custom_call.1} parent=11 // pred_region
        _
      $region52: #{tpu_custom_call.1} parent=11 // pred_fallthru
        _
      // Predicated region
      $region53: #{tpu_custom_call.1} parent=11 // pred_check
        %p456 = pneg %p280
      $region54: #{tpu_custom_call.1} parent=11 // pred_check_branch
        %458 = sbr.rel (%p456) target = $region56
      $region55: #{tpu_custom_call.1} parent=11 // pred_region
        _
      $region56: #{tpu_custom_call.1} parent=11 // pred_fallthru
        _
      // Predicated region
      $region57: #{tpu_custom_call.1} parent=11 // pred_check
        %p459 = pneg %p301
      $region58: #{tpu_custom_call.1} parent=11 // pred_check_branch
        %461 = sbr.rel (%p459) target = $region60
      $region59: #{tpu_custom_call.1} parent=11 // pred_region
        _
      $region60: #{tpu_custom_call.1} parent=11 // pred_fallthru
        _
      // Predicated region
      $region61: #{tpu_custom_call.1} parent=11 // pred_check
        %p462 = pneg %p322
      $region62: #{tpu_custom_call.1} parent=11 // pred_check_branch
        %464 = sbr.rel (%p462) target = $region64
      $region63: #{tpu_custom_call.1} parent=11 // pred_region
        _
      $region64: #{tpu_custom_call.1} parent=11 // pred_fallthru
        _
      // Predicated region
      $region65: #{tpu_custom_call.1} parent=11 // pred_check
        %p465 = pneg %p343
      $region66: #{tpu_custom_call.1} parent=11 // pred_check_branch
        %467 = sbr.rel (%p465) target = $region68
      $region67: #{tpu_custom_call.1} parent=11 // pred_region
        _
      $region68: #{tpu_custom_call.1} parent=11 // pred_fallthru
        _
      // Predicated region
      $region69: #{tpu_custom_call.1} parent=11 // pred_check
        %p468 = pneg %p364
      $region70: #{tpu_custom_call.1} parent=11 // pred_check_branch
        %470 = sbr.rel (%p468) target = $region72
      $region71: #{tpu_custom_call.1} parent=11 // pred_region
        _
      $region72: #{tpu_custom_call.1} parent=11 // pred_fallthru
        _
      // Predicated region
      $region73: #{tpu_custom_call.1} parent=11 // pred_check
        %p471 = pneg %p385
      $region74: #{tpu_custom_call.1} parent=11 // pred_check_branch
        %473 = sbr.rel (%p471) target = $region76
      $region75: #{tpu_custom_call.1} parent=11 // pred_region
        _
      $region76: #{tpu_custom_call.1} parent=11 // pred_fallthru
        _
    $region12: #{tpu_custom_call.1} parent=5 // pred_fallthru
      _
    %p474 = scmp.lt.s32.totalorder %s23, 4
    // Predicated region
    $region77: #{tpu_custom_call.1} parent=5 // pred_check
      %p475 = pneg %p474
    $region78: #{tpu_custom_call.1} parent=5 // pred_check_branch
      %477 = sbr.rel (%p475) target = $region80
    $region79: #{tpu_custom_call.1} parent=5 // pred_region
      // Predicated region
      $region81: #{tpu_custom_call.1} parent=79 // pred_check
        %p478 = pneg %p43
      $region82: #{tpu_custom_call.1} parent=79 // pred_check_branch
        %480 = sbr.rel (%p478) target = $region84
      $region83: #{tpu_custom_call.1} parent=79 // pred_region
        %s481 = smul.u32 2, %s23
        %p482 = scmp.lt.s32.totalorder %s481, 7
        %s483 = scalar_select %p482, %s481, 7
        %s484 = smul.addr %s483, 8
        %s485 = scalar_lea.vmem %s0, %s484
        %s486 = smul.u32 2, %s23
      $region84: #{tpu_custom_call.1} parent=79 // pred_fallthru
        _
    $region80: #{tpu_custom_call.1} parent=5 // pred_fallthru
      _
    %p487 = scmp.le.s32.totalorder 1, %s23
    %p488 = scmp.lt.s32.totalorder %s23, 5
    %p489 = pnand %p487, %p488
    %p490 = pneg %p489
    // Predicated region
    $region85: #{tpu_custom_call.1} parent=5 // pred_check
      _
    $region86: #{tpu_custom_call.1} parent=5 // pred_check_branch
      %492 = sbr.rel (%p489) target = $region88
    $region87: #{tpu_custom_call.1} parent=5 // pred_region
      %s493 = ssub.s32 %s23, 1
      %s494 = smul.u32 2, %s28
      %p495 = scmp.lt.s32.totalorder %s494, 7
      %s496 = scalar_select %p495, %s494, 7
      %s497 = smul.addr %s496, 8
      %s498 = scalar_lea.vmem %s0, %s497
      %p499 = pneg %p49
      %p500 = pneg %p46
      %p501 = pneg %p70
      %p502 = pneg %p67
      %p503 = pneg %p91
      %p504 = pneg %p88
      %p505 = pneg %p112
      %p506 = pneg %p109
      %p507 = pneg %p133
      %p508 = pneg %p130
      %p509 = pneg %p154
      %p510 = pneg %p151
      %p511 = pneg %p175
      %p512 = pneg %p172
      %p513 = pneg %p196
      %p514 = pneg %p193
      %p515 = pneg %p217
      %p516 = pneg %p214
      %p517 = pneg %p238
      %p518 = pneg %p235
      %p519 = pneg %p259
      %p520 = pneg %p256
      %p521 = pneg %p280
      %p522 = pneg %p277
      %p523 = pneg %p301
      %p524 = pneg %p298
      %p525 = pneg %p322
      %p526 = pneg %p319
      %p527 = pneg %p343
      %p528 = pneg %p340
      %p529 = pneg %p364
      %p530 = pneg %p361
      %p531 = pneg %p385
      %p532 = pneg %p382
      %p533 = pneg %p411
      %p534 = pneg %p408
      %s535 = smul.u32 2, %s28
      %p536 = scmp.lt.s32.totalorder %s535, 7
      %s537 = scalar_select %p536, %s535, 7
      %s538 = smul.addr %s537, 8
      %s539 = scalar_lea.vmem %s17, %s538
      %s540 = smul.u32 2, %s28
      %p541 = scmp.lt.s32.totalorder %s540, 7
      %s542 = scalar_select %p541, %s540, 7
      %s543 = smul.addr %s542, 8
      %s544 = scalar_lea.vmem %s0, %s543
      %s545 = smul.u32 2, %s28
      %s546 = smul.u32 2, %s28
      %p547 = scmp.lt.s32.totalorder %s546, 7
      %s548 = scalar_select %p547, %s546, 7
      %s549 = smul.addr %s548, 8
      %s550 = scalar_lea.vmem %s17, %s549
      %s551 = smul.u32 2, %s28
      %v553 = vld [vmem:[%s544] sm:$0xff]
      %v554 = vld [vmem:[%s544 + $0x8] sm:$0xff]
      %v555 = vpack.c.bf16 %v554, %v553
      %v556 = vlaneseq
      %v557 = vshrl.u32 %v556, 7
      %v558 = vadd.s32 %v557, 8
      %v559 = vcvt.s32.f32 %v557
      %v560 = vcvt.s32.f32 %v558
      %v561 = vadd.f32 %v559, 0.5
      %v562 = vadd.f32 %v560, 0.5
      %v563 = vmul.f32 %v561, 0.25
      %v564 = vmul.f32 %v562, 0.25
      %v565 = vlaneseq
      %v566 = vand.u32 %v565, 127
      %v567 = vcvt.s32.f32 %v566
      %v568 = vadd.f32 %v567, 0.5
      %v569 = vmul.f32 %v568, 0.25
      %v570 = vfloor.f32 %v563
      %v571 = vfloor.f32 %v564
      %v572 = vfloor.f32 %v569
      %vm573 = vcmp.eq.f32.partialorder %v570, %v572
      %vm574 = vcmp.eq.f32.partialorder %v571, %v572
      %v575 = vsel %vm573, 0.0, -1e+30
      %v576 = vsel %vm574, 0.0, -1e+30
      %v577 = vld [vmem:[%s1] sm:$0xf]
      %v578 = vld [vmem:[%s1 + $0x4] sm:$0xf]
      %v579 = vld [vmem:[%s1 + $0x8] sm:$0xf]
      %v580 = vld [vmem:[%s1 + $0xc] sm:$0xf]
      %v581 = vld [vmem:[%s2] sm:$0x1]
      %v583 = vperm.slane %v581, 0
      %v589 = vunpack.c.l.b16 %v577
      %v590 = vunpack.c.l.b16 %v578
      %v591 = vunpack.c.l.b16 %v579
      %v592 = vunpack.c.l.b16 %v580
      %v593 = vpack.c.b16 %v590, %v589
      %v594 = vpack.c.b16 %v592, %v591
      %vm597 = vcmask 261120
      %v599 = vsel %vm597, %v555, 0
      %601 = vmatpush.bf16.msra.mxu0 0
      %602 = vmatpush.bf16.msra.mxu0 0
      %603 = vmatpush.bf16.msra.mxu0 0
      %604 = vmatpush.bf16.msra.mxu0 0
      %605 = vmatpush.bf16.msra.mxu0 0
      %606 = vmatpush.bf16.msra.mxu0 0
      %607 = vmatpush.bf16.msra.mxu0 %v594
      %608 = vmatpush.bf16.msra.mxu0 %v593
      %609 = vmatmul.bf16.gmra.mxu0 %v599
      %v610 = vpop.f32.mrf.mxu0
      %v611 = vadd.f32 %v583, %v610
      %v612 = vpop.f32.mrf.mxu0
      %v613 = vadd.f32 %v583, %v612
      %614 = vdwg.mxu0
      %v615 = vld [vmem:[%s3] sm:$0xf]
      %v616 = vld [vmem:[%s3 + $0x4] sm:$0xf]
      %v617 = vld [vmem:[%s3 + $0x8] sm:$0xf]
      %v618 = vld [vmem:[%s3 + $0xc] sm:$0xf]
      %v619 = vld [vmem:[%s4] sm:$0x1]
      %v621 = vperm.slane %v619, 0
      %v627 = vunpack.c.l.b16 %v615
      %v628 = vunpack.c.l.b16 %v616
      %v629 = vunpack.c.l.b16 %v617
      %v630 = vunpack.c.l.b16 %v618
      %v631 = vpack.c.b16 %v628, %v627
      %v632 = vpack.c.b16 %v630, %v629
      %635 = vmatpush.bf16.msra.mxu0 0
      %636 = vmatpush.bf16.msra.mxu0 0
      %637 = vmatpush.bf16.msra.mxu0 0
      %638 = vmatpush.bf16.msra.mxu0 0
      %639 = vmatpush.bf16.msra.mxu0 0
      %640 = vmatpush.bf16.msra.mxu0 0
      %641 = vmatpush.bf16.msra.mxu0 %v632
      %642 = vmatpush.bf16.msra.mxu0 %v631
      %643 = vmatmul.bf16.gmra.mxu0 %v599
      %v644 = vpop.f32.mrf.mxu0
      %v645 = vadd.f32 %v621, %v644
      %v646 = vpop.f32.mrf.mxu0
      %v647 = vadd.f32 %v621, %v646
      %648 = vdwg.mxu0
      %v649 = vld [vmem:[%s5] sm:$0xf]
      %v650 = vld [vmem:[%s5 + $0x4] sm:$0xf]
      %v651 = vld [vmem:[%s5 + $0x8] sm:$0xf]
      %v652 = vld [vmem:[%s5 + $0xc] sm:$0xf]
      %v653 = vld [vmem:[%s6] sm:$0x1]
      %v655 = vperm.slane %v653, 0
      %v661 = vunpack.c.l.b16 %v649
      %v662 = vunpack.c.l.b16 %v650
      %v663 = vunpack.c.l.b16 %v651
      %v664 = vunpack.c.l.b16 %v652
      %v665 = vpack.c.b16 %v662, %v661
      %v666 = vpack.c.b16 %v664, %v663
      %669 = vmatpush.bf16.msra.mxu0 0
      %670 = vmatpush.bf16.msra.mxu0 0
      %671 = vmatpush.bf16.msra.mxu0 0
      %672 = vmatpush.bf16.msra.mxu0 0
      %673 = vmatpush.bf16.msra.mxu0 0
      %674 = vmatpush.bf16.msra.mxu0 0
      %675 = vmatpush.bf16.msra.mxu0 %v666
      %676 = vmatpush.bf16.msra.mxu0 %v665
      %677 = vmatmul.bf16.gmra.mxu0 %v599
      %v678 = vpop.f32.mrf.mxu0
      %v679 = vadd.f32 %v655, %v678
      %v680 = vpop.f32.mrf.mxu0
      %v681 = vadd.f32 %v655, %v680
      %682 = vdwg.mxu0
      %v683 = vpack.c.bf16 %v611, %v611
      %v684 = vpack.c.bf16 %v613, %v613
      %v685 = vpack.c.bf16 %v645, %v645
      %v686 = vpack.c.bf16 %v647, %v647
      %v687 = vpack.c.bf16 %v679, %v679
      %v688 = vpack.c.bf16 %v681, %v681
      %v691 = vunpack.c.l.b16 %v683
      %v692 = vunpack.c.l.b16 %v684
      %v693 = vpack.c.b16 %v692, %v691
      %v696 = vunpack.c.l.b16 %v685
      %v697 = vunpack.c.l.b16 %v686
      %v698 = vpack.c.b16 %v697, %v696
      %vm699 = vcmask 64512
      %v701 = vsel %vm699, %v693, 0
      %v704 = vsel %vm699, %v698, 0
      %706 = vmatpush.bf16.xpose.msra.mxu0 0
      %707 = vmatpush.bf16.xpose.msra.mxu0 0
      %708 = vmatpush.bf16.xpose.msra.mxu0 0
      %709 = vmatpush.bf16.xpose.msra.mxu0 0
      %710 = vmatpush.bf16.xpose.msra.mxu0 0
      %711 = vmatpush.bf16.xpose.msra.mxu0 0
      %712 = vmatpush.bf16.xpose.msra.mxu0 0
      %713 = vmatpush.bf16.xpose.msra.mxu0 %v704
      %714 = vmatmul.bf16.gmra.mxu0 %v701
      %v715 = vpop.f32.mrf.mxu0
      %v716 = vadd.f32 %v575, %v715
      %v717 = vpop.f32.mrf.mxu0
      %v718 = vadd.f32 %v576, %v717
      %719 = vdwg.mxu0
      %vm720 = vcmask 130048
      %v721 = vsel %vm720, %v716, -inf
      %722 = vmax.xlane.f32.xlu0 %v721
      %v723 = vpop.xlane.xlu0 %722
      %v724 = vsel %vm720, %v718, -inf
      %725 = vmax.xlane.f32.xlu0 %v724
      %v726 = vpop.xlane.xlu0 %725
      %v727 = vsub.f32 %v716, %v723
      %v728 = vsub.f32 %v718, %v726
      %v729 = vmul.f32 %v727, 1.442695
      %v730 = vpow.pop %v729
      %v731 = vmul.f32 %v728, 1.442695
      %v732 = vpow.pop %v731
      %v733 = vsel %vm720, %v730, 0.0
      %734 = vadd.xlane.f32.xlu0 %v733
      %v735 = vpop.xlane.xlu0 %734
      %v736 = vsel %vm720, %v732, 0.0
      %737 = vadd.xlane.f32.xlu0 %v736
      %v738 = vpop.xlane.xlu0 %737
      %v739 = vrcp.pop %v735
      %v740 = vrcp.pop %v738
      %v741 = vmul.f32 %v730, %v739
      %v742 = vmul.f32 %v732, %v740
      %v743 = vpack.c.bf16 %v742, %v741
      %v746 = vunpack.c.l.b16 %v687
      %v747 = vunpack.c.l.b16 %v688
      %v748 = vpack.c.b16 %v747, %v746
      %v751 = vsel %vm720, %v743, 0
      %753 = vmatpush.bf16.msra.mxu0 0
      %754 = vmatpush.bf16.msra.mxu0 0
      %755 = vmatpush.bf16.msra.mxu0 0
      %756 = vmatpush.bf16.msra.mxu0 0
      %757 = vmatpush.bf16.msra.mxu0 0
      %758 = vmatpush.bf16.msra.mxu0 0
      %759 = vmatpush.bf16.msra.mxu0 0
      %760 = vmatpush.bf16.msra.mxu0 %v748
      %761 = vmatmul.bf16.gmra.mxu0 %v751
      %v762 = vpop.f32.mrf.mxu0
      %v763 = vadd.f32 0.0, %v762
      %v764 = vpop.f32.mrf.mxu0
      %v765 = vadd.f32 0.0, %v764
      %766 = vdwg.mxu0
      %767 = vrot.lane.b32.xlu0 %v693, 120
      %v768 = vpop.permute.xlu0 %767
      %769 = vrot.lane.b32.xlu0 %v698, 120
      %v770 = vpop.permute.xlu0 %769
      %v772 = vsel %vm699, %v768, 0
      %v775 = vsel %vm699, %v770, 0
      %777 = vmatpush.bf16.xpose.msra.mxu0 0
      %778 = vmatpush.bf16.xpose.msra.mxu0 0
      %779 = vmatpush.bf16.xpose.msra.mxu0 0
      %780 = vmatpush.bf16.xpose.msra.mxu0 0
      %781 = vmatpush.bf16.xpose.msra.mxu0 0
      %782 = vmatpush.bf16.xpose.msra.mxu0 0
      %783 = vmatpush.bf16.xpose.msra.mxu0 0
      %784 = vmatpush.bf16.xpose.msra.mxu0 %v775
      %785 = vmatmul.bf16.gmra.mxu0 %v772
      %v786 = vpop.f32.mrf.mxu0
      %v787 = vadd.f32 %v575, %v786
      %v788 = vpop.f32.mrf.mxu0
      %v789 = vadd.f32 %v576, %v788
      %790 = vdwg.mxu0
      %v791 = vsel %vm720, %v787, -inf
      %792 = vmax.xlane.f32.xlu0 %v791
      %v793 = vpop.xlane.xlu0 %792
      %v794 = vsel %vm720, %v789, -inf
      %795 = vmax.xlane.f32.xlu0 %v794
      %v796 = vpop.xlane.xlu0 %795
      %v797 = vsub.f32 %v787, %v793
      %v798 = vsub.f32 %v789, %v796
      %v799 = vmul.f32 %v797, 1.442695
      %v800 = vpow.pop %v799
      %v801 = vmul.f32 %v798, 1.442695
      %v802 = vpow.pop %v801
      %v803 = vsel %vm720, %v800, 0.0
      %804 = vadd.xlane.f32.xlu0 %v803
      %v805 = vpop.xlane.xlu0 %804
      %v806 = vsel %vm720, %v802, 0.0
      %807 = vadd.xlane.f32.xlu0 %v806
      %v808 = vpop.xlane.xlu0 %807
      %v809 = vrcp.pop %v805
      %v810 = vrcp.pop %v808
      %v811 = vmul.f32 %v800, %v809
      %v812 = vmul.f32 %v802, %v810
      %v813 = vpack.c.bf16 %v812, %v811
      %814 = vrot.lane.b32.xlu0 %v748, 120
      %v815 = vpop.permute.xlu0 %814
      %v818 = vsel %vm720, %v813, 0
      %820 = vmatpush.bf16.msra.mxu0 0
      %821 = vmatpush.bf16.msra.mxu0 0
      %822 = vmatpush.bf16.msra.mxu0 0
      %823 = vmatpush.bf16.msra.mxu0 0
      %824 = vmatpush.bf16.msra.mxu0 0
      %825 = vmatpush.bf16.msra.mxu0 0
      %826 = vmatpush.bf16.msra.mxu0 0
      %827 = vmatpush.bf16.msra.mxu0 %v815
      %828 = vmatmul.bf16.gmra.mxu0 %v818
      %v829 = vpop.f32.mrf.mxu0
      %v830 = vadd.f32 0.0, %v829
      %v831 = vpop.f32.mrf.mxu0
      %v832 = vadd.f32 0.0, %v831
      %833 = vdwg.mxu0
      %834 = vrot.lane.b32.xlu0 %v693, 112
      %v835 = vpop.permute.xlu0 %834
      %836 = vrot.lane.b32.xlu0 %v698, 112
      %v837 = vpop.permute.xlu0 %836
      %v839 = vsel %vm699, %v835, 0
      %v842 = vsel %vm699, %v837, 0
      %844 = vmatpush.bf16.xpose.msra.mxu0 0
      %845 = vmatpush.bf16.xpose.msra.mxu0 0
      %846 = vmatpush.bf16.xpose.msra.mxu0 0
      %847 = vmatpush.bf16.xpose.msra.mxu0 0
      %848 = vmatpush.bf16.xpose.msra.mxu0 0
      %849 = vmatpush.bf16.xpose.msra.mxu0 0
      %850 = vmatpush.bf16.xpose.msra.mxu0 0
      %851 = vmatpush.bf16.xpose.msra.mxu0 %v842
      %852 = vmatmul.bf16.gmra.mxu0 %v839
      %v853 = vpop.f32.mrf.mxu0
      %v854 = vadd.f32 %v575, %v853
      %v855 = vpop.f32.mrf.mxu0
      %v856 = vadd.f32 %v576, %v855
      %857 = vdwg.mxu0
      %v858 = vsel %vm720, %v854, -inf
      %859 = vmax.xlane.f32.xlu0 %v858
      %v860 = vpop.xlane.xlu0 %859
      %v861 = vsel %vm720, %v856, -inf
      %862 = vmax.xlane.f32.xlu0 %v861
      %v863 = vpop.xlane.xlu0 %862
      %v864 = vsub.f32 %v854, %v860
      %v865 = vsub.f32 %v856, %v863
      %v866 = vmul.f32 %v864, 1.442695
      %v867 = vpow.pop %v866
      %v868 = vmul.f32 %v865, 1.442695
      %v869 = vpow.pop %v868
      %v870 = vsel %vm720, %v867, 0.0
      %871 = vadd.xlane.f32.xlu0 %v870
      %v872 = vpop.xlane.xlu0 %871
      %v873 = vsel %vm720, %v869, 0.0
      %874 = vadd.xlane.f32.xlu0 %v873
      %v875 = vpop.xlane.xlu0 %874
      %v876 = vrcp.pop %v872
      %v877 = vrcp.pop %v875
      %v878 = vmul.f32 %v867, %v876
      %v879 = vmul.f32 %v869, %v877
      %v880 = vpack.c.bf16 %v879, %v878
      %881 = vrot.lane.b32.xlu0 %v748, 112
      %v882 = vpop.permute.xlu0 %881
      %v885 = vsel %vm720, %v880, 0
      %887 = vmatpush.bf16.msra.mxu0 0
      %888 = vmatpush.bf16.msra.mxu0 0
      %889 = vmatpush.bf16.msra.mxu0 0
      %890 = vmatpush.bf16.msra.mxu0 0
      %891 = vmatpush.bf16.msra.mxu0 0
      %892 = vmatpush.bf16.msra.mxu0 0
      %893 = vmatpush.bf16.msra.mxu0 0
      %894 = vmatpush.bf16.msra.mxu0 %v882
      %895 = vmatmul.bf16.gmra.mxu0 %v885
      %v896 = vpop.f32.mrf.mxu0
      %v897 = vadd.f32 0.0, %v896
      %v898 = vpop.f32.mrf.mxu0
      %v899 = vadd.f32 0.0, %v898
      %900 = vdwg.mxu0
      %901 = vrot.lane.b32.xlu0 %v693, 104
      %v902 = vpop.permute.xlu0 %901
      %903 = vrot.lane.b32.xlu0 %v698, 104
      %v904 = vpop.permute.xlu0 %903
      %v906 = vsel %vm699, %v902, 0
      %v909 = vsel %vm699, %v904, 0
      %911 = vmatpush.bf16.xpose.msra.mxu0 0
      %912 = vmatpush.bf16.xpose.msra.mxu0 0
      %913 = vmatpush.bf16.xpose.msra.mxu0 0
      %914 = vmatpush.bf16.xpose.msra.mxu0 0
      %915 = vmatpush.bf16.xpose.msra.mxu0 0
      %916 = vmatpush.bf16.xpose.msra.mxu0 0
      %917 = vmatpush.bf16.xpose.msra.mxu0 0
      %918 = vmatpush.bf16.xpose.msra.mxu0 %v909
      %919 = vmatmul.bf16.gmra.mxu0 %v906
      %v920 = vpop.f32.mrf.mxu0
      %v921 = vadd.f32 %v575, %v920
      %v922 = vpop.f32.mrf.mxu0
      %v923 = vadd.f32 %v576, %v922
      %924 = vdwg.mxu0
      %v925 = vsel %vm720, %v921, -inf
      %926 = vmax.xlane.f32.xlu0 %v925
      %v927 = vpop.xlane.xlu0 %926
      %v928 = vsel %vm720, %v923, -inf
      %929 = vmax.xlane.f32.xlu0 %v928
      %v930 = vpop.xlane.xlu0 %929
      %v931 = vsub.f32 %v921, %v927
      %v932 = vsub.f32 %v923, %v930
      %v933 = vmul.f32 %v931, 1.442695
      %v934 = vpow.pop %v933
      %v935 = vmul.f32 %v932, 1.442695
      %v936 = vpow.pop %v935
      %v937 = vsel %vm720, %v934, 0.0
      %938 = vadd.xlane.f32.xlu0 %v937
      %v939 = vpop.xlane.xlu0 %938
      %v940 = vsel %vm720, %v936, 0.0
      %941 = vadd.xlane.f32.xlu0 %v940
      %v942 = vpop.xlane.xlu0 %941
      %v943 = vrcp.pop %v939
      %v944 = vrcp.pop %v942
      %v945 = vmul.f32 %v934, %v943
      %v946 = vmul.f32 %v936, %v944
      %v947 = vpack.c.bf16 %v946, %v945
      %948 = vrot.lane.b32.xlu0 %v748, 104
      %v949 = vpop.permute.xlu0 %948
      %v952 = vsel %vm720, %v947, 0
      %954 = vmatpush.bf16.msra.mxu0 0
      %955 = vmatpush.bf16.msra.mxu0 0
      %956 = vmatpush.bf16.msra.mxu0 0
      %957 = vmatpush.bf16.msra.mxu0 0
      %958 = vmatpush.bf16.msra.mxu0 0
      %959 = vmatpush.bf16.msra.mxu0 0
      %960 = vmatpush.bf16.msra.mxu0 0
      %961 = vmatpush.bf16.msra.mxu0 %v949
      %962 = vmatmul.bf16.gmra.mxu0 %v952
      %v963 = vpop.f32.mrf.mxu0
      %v964 = vadd.f32 0.0, %v963
      %v965 = vpop.f32.mrf.mxu0
      %v966 = vadd.f32 0.0, %v965
      %967 = vdwg.mxu0
      %970 = vrot.lane.b32.xlu0 %v830, 8
      %v971 = vpop.permute.xlu0 %970
      %972 = vrot.lane.b32.xlu0 %v832, 8
      %v973 = vpop.permute.xlu0 %972
      %978 = vrot.lane.b32.xlu0 %v897, 16
      %v979 = vpop.permute.xlu0 %978
      %980 = vrot.lane.b32.xlu0 %v899, 16
      %v981 = vpop.permute.xlu0 %980
      %986 = vrot.lane.b32.xlu0 %v964, 24
      %v987 = vpop.permute.xlu0 %986
      %988 = vrot.lane.b32.xlu0 %v966, 24
      %v989 = vpop.permute.xlu0 %988
      %v992 = vsel %vm699, %v763, %v971
      %v993 = vsel %vm699, %v765, %v973
      %v994 = vsel %vm720, %v992, %v979
      %v995 = vsel %vm720, %v993, %v981
      %vm996 = vcmask 195584
      %v997 = vsel %vm996, %v994, %v987
      %v998 = vsel %vm996, %v995, %v989
      %v999 = vpack.c.bf16 %v998, %v997
      %v1000 = vld [vmem:[%s7] sm:$0xf]
      %v1001 = vld [vmem:[%s7 + $0x4] sm:$0xf]
      %v1002 = vld [vmem:[%s7 + $0x8] sm:$0xf]
      %v1003 = vld [vmem:[%s7 + $0xc] sm:$0xf]
      %v1004 = vld [vmem:[%s8] sm:$0x1]
      %v1006 = vperm.slane %v1004, 0
      %v1012 = vunpack.c.l.b16 %v1000
      %v1013 = vunpack.c.l.b16 %v1001
      %v1014 = vunpack.c.l.b16 %v1002
      %v1015 = vunpack.c.l.b16 %v1003
      %v1016 = vpack.c.b16 %v1013, %v1012
      %v1017 = vpack.c.b16 %v1015, %v1014
      %v1021 = vsel %vm597, %v999, 0
      %1023 = vmatpush.bf16.msra.mxu0 0
      %1024 = vmatpush.bf16.msra.mxu0 0
      %1025 = vmatpush.bf16.msra.mxu0 0
      %1026 = vmatpush.bf16.msra.mxu0 0
      %1027 = vmatpush.bf16.msra.mxu0 0
      %1028 = vmatpush.bf16.msra.mxu0 0
      %1029 = vmatpush.bf16.msra.mxu0 %v1017
      %1030 = vmatpush.bf16.msra.mxu0 %v1016
      %1031 = vmatmul.bf16.gmra.mxu0 %v1021
      %v1032 = vpop.f32.mrf.mxu0
      %v1033 = vadd.f32 %v1006, %v1032
      %v1034 = vpop.f32.mrf.mxu0
      %v1035 = vadd.f32 %v1006, %v1034
      %1036 = vdwg.mxu0
      %v1037 = vadd.f32 %v553, %v1033
      %v1038 = vadd.f32 %v554, %v1035
      %v1039 = vsel %vm597, %v1037, 0.0
      %1040 = vadd.xlane.f32.xlu0 %v1039
      %v1041 = vpop.xlane.xlu0 %1040
      %v1042 = vsel %vm597, %v1038, 0.0
      %1043 = vadd.xlane.f32.xlu0 %v1042
      %v1044 = vpop.xlane.xlu0 %1043
      %v1045 = vrcp.pop 32.0
      %v1046 = vmul.f32 32.0, %v1045
      %v1047 = vsub.f32 1.0, %v1046
      %v1048 = vmul.f32 %v1045, %v1047
      %v1049 = vadd.f32 %v1045, %v1048
      %vm1050 = vweird.f32 %v1045
      %v1051 = vsel %vm1050, %v1045, %v1049
      %v1052 = vmul.f32 %v1041, %v1051
      %v1053 = vmul.f32 %v1044, %v1051
      %v1054 = vsub.f32 %v1037, %v1052
      %v1055 = vsub.f32 %v1038, %v1053
      %v1056 = vmul.f32 %v1054, %v1054
      %v1057 = vmul.f32 %v1055, %v1055
      %v1058 = vsel %vm597, %v1056, 0.0
      %1059 = vadd.xlane.f32.xlu0 %v1058
      %v1060 = vpop.xlane.xlu0 %1059
      %v1061 = vsel %vm597, %v1057, 0.0
      %1062 = vadd.xlane.f32.xlu0 %v1061
      %v1063 = vpop.xlane.xlu0 %1062
      %v1064 = vmul.f32 %v1060, %v1051
      %v1065 = vmul.f32 %v1063, %v1051
      %v1066 = vadd.f32 %v1064, 1e-05
      %v1067 = vadd.f32 %v1065, 1e-05
      %v1068 = vrsqrt.pop %v1066
      %v1069 = vmul.f32 %v1068, %v1066
      %v1070 = vmul.f32 %v1069, %v1068
      %v1071 = vmul.f32 0.5, %v1070
      %v1072 = vsub.f32 1.5, %v1071
      %v1073 = vmul.f32 %v1068, %v1072
      %vm1074 = vweird.f32 %v1066
      %vm1075 = vweird.f32 %v1068
      %vm1076 = vmor %vm1074, %vm1075
      %v1077 = vsel %vm1076, %v1068, %v1073
      %v1078 = vrsqrt.pop %v1067
      %v1079 = vmul.f32 %v1078, %v1067
      %v1080 = vmul.f32 %v1079, %v1078
      %v1081 = vmul.f32 0.5, %v1080
      %v1082 = vsub.f32 1.5, %v1081
      %v1083 = vmul.f32 %v1078, %v1082
      %vm1084 = vweird.f32 %v1067
      %vm1085 = vweird.f32 %v1078
      %vm1086 = vmor %vm1084, %vm1085
      %v1087 = vsel %vm1086, %v1078, %v1083
      %v1088 = vmul.f32 %v1054, %v1077
      %v1089 = vmul.f32 %v1055, %v1087
      %v1090 = vld [vmem:[%s9] sm:$0x1]
      %v1092 = vperm.slane %v1090, 0
      %v1094 = vmul.f32 %v1088, %v1092
      %v1095 = vmul.f32 %v1089, %v1092
      %v1096 = vld [vmem:[%s10] sm:$0x1]
      %v1098 = vperm.slane %v1096, 0
      %v1100 = vadd.f32 %v1094, %v1098
      %v1101 = vadd.f32 %v1095, %v1098
      %v1102 = vpack.c.bf16 %v1101, %v1100
      %v1103 = vld [vmem:[%s11] sm:$0xf]
      %v1104 = vld [vmem:[%s11 + $0x4] sm:$0xf]
      %v1105 = vld [vmem:[%s11 + $0x8] sm:$0xf]
      %v1106 = vld [vmem:[%s11 + $0xc] sm:$0xf]
      %v1107 = vld [vmem:[%s12] sm:$0x1]
      %v1109 = vperm.slane %v1107, 0
      %v1115 = vunpack.c.l.b16 %v1103
      %v1116 = vunpack.c.l.b16 %v1104
      %v1117 = vunpack.c.l.b16 %v1105
      %v1118 = vunpack.c.l.b16 %v1106
      %v1119 = vpack.c.b16 %v1116, %v1115
      %v1120 = vpack.c.b16 %v1118, %v1117
      %v1124 = vsel %vm597, %v1102, 0
      %1126 = vmatpush.bf16.msra.mxu0 0
      %1127 = vmatpush.bf16.msra.mxu0 0
      %1128 = vmatpush.bf16.msra.mxu0 0
      %1129 = vmatpush.bf16.msra.mxu0 0
      %1130 = vmatpush.bf16.msra.mxu0 0
      %1131 = vmatpush.bf16.msra.mxu0 0
      %1132 = vmatpush.bf16.msra.mxu0 %v1120
      %1133 = vmatpush.bf16.msra.mxu0 %v1119
      %1134 = vmatmul.bf16.gmra.mxu0 %v1124
      %v1135 = vpop.f32.mrf.mxu0
      %v1136 = vadd.f32 %v1109, %v1135
      %v1137 = vpop.f32.mrf.mxu0
      %v1138 = vadd.f32 %v1109, %v1137
      %1139 = vdwg.mxu0
      %v1140 = vmax.f32 %v1136, 0.0
      %v1141 = vmax.f32 %v1138, 0.0
      %v1142 = vpack.c.bf16 %v1141, %v1140
      %v1143 = vld [vmem:[%s13] sm:$0xf]
      %v1144 = vld [vmem:[%s13 + $0x4] sm:$0xf]
      %v1145 = vld [vmem:[%s13 + $0x8] sm:$0xf]
      %v1146 = vld [vmem:[%s13 + $0xc] sm:$0xf]
      %v1147 = vld [vmem:[%s13 + $0x10] sm:$0xf]
      %v1148 = vld [vmem:[%s13 + $0x14] sm:$0xf]
      %v1149 = vld [vmem:[%s13 + $0x18] sm:$0xf]
      %v1150 = vld [vmem:[%s13 + $0x1c] sm:$0xf]
      %v1151 = vld [vmem:[%s13 + $0x20] sm:$0xf]
      %v1152 = vld [vmem:[%s13 + $0x24] sm:$0xf]
      %v1153 = vld [vmem:[%s13 + $0x28] sm:$0xf]
      %v1154 = vld [vmem:[%s13 + $0x2c] sm:$0xf]
      %v1155 = vld [vmem:[%s13 + $0x30] sm:$0xf]
      %v1156 = vld [vmem:[%s13 + $0x34] sm:$0xf]
      %v1157 = vld [vmem:[%s13 + $0x38] sm:$0xf]
      %v1158 = vld [vmem:[%s13 + $0x3c] sm:$0xf]
      %v1159 = vld [vmem:[%s14] sm:$0x1]
      %v1161 = vperm.slane %v1159, 0
      %v1179 = vunpack.c.l.b16 %v1143
      %v1180 = vunpack.c.l.b16 %v1144
      %v1181 = vunpack.c.l.b16 %v1145
      %v1182 = vunpack.c.l.b16 %v1146
      %v1183 = vunpack.c.l.b16 %v1147
      %v1184 = vunpack.c.l.b16 %v1148
      %v1185 = vunpack.c.l.b16 %v1149
      %v1186 = vunpack.c.l.b16 %v1150
      %v1187 = vunpack.c.l.b16 %v1151
      %v1188 = vunpack.c.l.b16 %v1152
      %v1189 = vunpack.c.l.b16 %v1153
      %v1190 = vunpack.c.l.b16 %v1154
      %v1191 = vunpack.c.l.b16 %v1155
      %v1192 = vunpack.c.l.b16 %v1156
      %v1193 = vunpack.c.l.b16 %v1157
      %v1194 = vunpack.c.l.b16 %v1158
      %v1195 = vpack.c.b16 %v1180, %v1179
      %v1196 = vpack.c.b16 %v1182, %v1181
      %v1197 = vpack.c.b16 %v1184, %v1183
      %v1198 = vpack.c.b16 %v1186, %v1185
      %v1199 = vpack.c.b16 %v1188, %v1187
      %v1200 = vpack.c.b16 %v1190, %v1189
      %v1201 = vpack.c.b16 %v1192, %v1191
      %v1202 = vpack.c.b16 %v1194, %v1193
      %1211 = vmatpush.bf16.msra.mxu0 %v1202
      %1212 = vmatpush.bf16.msra.mxu0 %v1201
      %1213 = vmatpush.bf16.msra.mxu0 %v1200
      %1214 = vmatpush.bf16.msra.mxu0 %v1199
      %1215 = vmatpush.bf16.msra.mxu0 %v1198
      %1216 = vmatpush.bf16.msra.mxu0 %v1197
      %1217 = vmatpush.bf16.msra.mxu0 %v1196
      %1218 = vmatpush.bf16.msra.mxu0 %v1195
      %1219 = vmatmul.bf16.gmra.mxu0 %v1142
      %v1220 = vpop.f32.mrf.mxu0
      %v1221 = vadd.f32 %v1161, %v1220
      %v1222 = vpop.f32.mrf.mxu0
      %v1223 = vadd.f32 %v1161, %v1222
      %1224 = vdwg.mxu0
      %v1225 = vadd.f32 %v1100, %v1221
      %v1226 = vadd.f32 %v1101, %v1223
      %v1227 = vsel %vm597, %v1225, 0.0
      %1228 = vadd.xlane.f32.xlu0 %v1227
      %v1229 = vpop.xlane.xlu0 %1228
      %v1230 = vsel %vm597, %v1226, 0.0
      %1231 = vadd.xlane.f32.xlu0 %v1230
      %v1232 = vpop.xlane.xlu0 %1231
      %v1233 = vmul.f32 %v1229, %v1051
      %v1234 = vmul.f32 %v1232, %v1051
      %v1235 = vsub.f32 %v1225, %v1233
      %v1236 = vsub.f32 %v1226, %v1234
      %v1237 = vmul.f32 %v1235, %v1235
      %v1238 = vmul.f32 %v1236, %v1236
      %v1239 = vsel %vm597, %v1237, 0.0
      %1240 = vadd.xlane.f32.xlu0 %v1239
      %v1241 = vpop.xlane.xlu0 %1240
      %v1242 = vsel %vm597, %v1238, 0.0
      %1243 = vadd.xlane.f32.xlu0 %v1242
      %v1244 = vpop.xlane.xlu0 %1243
      %v1245 = vmul.f32 %v1241, %v1051
      %v1246 = vmul.f32 %v1244, %v1051
      %v1247 = vadd.f32 %v1245, 1e-05
      %v1248 = vadd.f32 %v1246, 1e-05
      %v1249 = vrsqrt.pop %v1247
      %v1250 = vmul.f32 %v1249, %v1247
      %v1251 = vmul.f32 %v1250, %v1249
      %v1252 = vmul.f32 0.5, %v1251
      %v1253 = vsub.f32 1.5, %v1252
      %v1254 = vmul.f32 %v1249, %v1253
      %vm1255 = vweird.f32 %v1247
      %vm1256 = vweird.f32 %v1249
      %vm1257 = vmor %vm1255, %vm1256
      %v1258 = vsel %vm1257, %v1249, %v1254
      %v1259 = vrsqrt.pop %v1248
      %v1260 = vmul.f32 %v1259, %v1248
      %v1261 = vmul.f32 %v1260, %v1259
      %v1262 = vmul.f32 0.5, %v1261
      %v1263 = vsub.f32 1.5, %v1262
      %v1264 = vmul.f32 %v1259, %v1263
      %vm1265 = vweird.f32 %v1248
      %vm1266 = vweird.f32 %v1259
      %vm1267 = vmor %vm1265, %vm1266
      %v1268 = vsel %vm1267, %v1259, %v1264
      %v1269 = vmul.f32 %v1235, %v1258
      %v1270 = vmul.f32 %v1236, %v1268
      %v1271 = vld [vmem:[%s15] sm:$0x1]
      %v1273 = vperm.slane %v1271, 0
      %v1275 = vmul.f32 %v1269, %v1273
      %v1276 = vmul.f32 %v1270, %v1273
      %v1277 = vld [vmem:[%s16] sm:$0x1]
      %v1279 = vperm.slane %v1277, 0
      %v1281 = vadd.f32 %v1275, %v1279
      %v1282 = vadd.f32 %v1276, %v1279
      %1283 = vst.msk [vmem:[%s550] sm:$0xff] %vm597, %v1281
      %1284 = vst.msk [vmem:[%s550 + $0x8] sm:$0xff] %vm597, %v1282
      %s1285 = smul.u32 2, %s28
      %p1286 = scmp.lt.s32.totalorder %s1285, 7
      %s1287 = scalar_select %p1286, %s1285, 7
      %s1288 = smul.addr %s1287, 8
      %s1289 = scalar_lea.vmem %s17, %s1288
      // Predicated region
      $region89: #{tpu_custom_call.1} parent=87 // pred_check
        %p1290 = pneg %p408
      $region90: #{tpu_custom_call.1} parent=87 // pred_check_branch
        %1292 = sbr.rel (%p1290) target = $region92
      $region91: #{tpu_custom_call.1} parent=87 // pred_region
        %s1293 = smul.u32 2, %s28
      $region92: #{tpu_custom_call.1} parent=87 // pred_fallthru
        _
    $region88: #{tpu_custom_call.1} parent=5 // pred_fallthru
      _
    %p1294 = scmp.le.s32.totalorder 2, %s23
    // Predicated region
    $region93: #{tpu_custom_call.1} parent=5 // pred_check
      %p1295 = pneg %p1294
    $region94: #{tpu_custom_call.1} parent=5 // pred_check_branch
      %1297 = sbr.rel (%p1295) target = $region96
    $region95: #{tpu_custom_call.1} parent=5 // pred_region
      %s1298 = ssub.s32 %s23, 2
      // Predicated region
      $region97: #{tpu_custom_call.1} parent=95 // pred_check
        %p1299 = pneg %p414
      $region98: #{tpu_custom_call.1} parent=95 // pred_check_branch
        %1301 = sbr.rel (%p1299) target = $region100
      $region99: #{tpu_custom_call.1} parent=95 // pred_region
        %s1302 = smul.u32 2, %s29
        %p1303 = scmp.lt.s32.totalorder %s1302, 7
        %s1304 = scalar_select %p1303, %s1302, 7
        %s1305 = smul.addr %s1304, 8
        %s1306 = scalar_lea.vmem %s17, %s1305
      $region100: #{tpu_custom_call.1} parent=95 // pred_fallthru
        _
    $region96: #{tpu_custom_call.1} parent=5 // pred_fallthru
      _
  $region6: #{tpu_custom_call.1} parent=0 // loop_footer
    %s27 = sadd.s32 1, %s23
  $region7: #{tpu_custom_call.1} parent=0 // loop_footer_branch
    %22 = sbr.rel target = $region3
  $region8: #{tpu_custom_call.1} parent=0 // loop_exit
    _

</llo_original>
